<compile_context>
chip_gen: v7x
topology: tpu7x:2x2x1
jax: 0.10.0
libtpu: 0.0.40
codegen_flags: <defaults>
</compile_context>

<pallas_src>
import functools

import jax
import jax.numpy as jnp
from jax.experimental import pallas as pl
from jax.experimental.pallas import tpu as pltpu

PRED_PAD = 128          # lane-dense padded width for the 2-wide position head
DEFAULT_VMEM_LIMIT = 32 * 1024 * 1024  # fits v5e/v6e/v7x scoped-VMEM budgets


# ----------------------------------------------------------------------------
# Kernels
# ----------------------------------------------------------------------------
def _input_proj_kernel(x_ref, w_ref, z_ref):
    """Z = X @ W1, row-tiled (computed once; feeds the first aggregation)."""
    z_ref[...] = jnp.dot(
        x_ref[...], w_ref[...], preferred_element_type=jnp.float32
    ).astype(z_ref.dtype)


def _agg_fuse_next_kernel(a_ref, z_ref, b_ref, wn_ref, zn_ref, acc_ref):
    """acc += A_tile @ Z_tile; at k==last: Z_next = relu(acc + b) @ W_next."""
    k = pl.program_id(1)

    @pl.when(k == 0)
    def _init():
        acc_ref[...] = jnp.zeros_like(acc_ref)

    acc_ref[...] += jnp.dot(a_ref[...], z_ref[...],
                            preferred_element_type=jnp.float32)

    @pl.when(k == pl.num_programs(1) - 1)
    def _finalize():
        h = jnp.maximum(acc_ref[...] + b_ref[...], 0.0)
        zn_ref[...] = jnp.dot(
            h, wn_ref[...], preferred_element_type=jnp.float32
        ).astype(zn_ref.dtype)


def _agg_head_kernel(a_ref, z_ref, b_ref, wp1_ref, bp1_ref, wp2_ref, bp2_ref,
                     hidden_ref, pred_ref, acc_ref):
    """Last GCN layer fused with the position head (lane-padded output)."""
    k = pl.program_id(1)

    @pl.when(k == 0)
    def _init():
        acc_ref[...] = jnp.zeros_like(acc_ref)

    acc_ref[...] += jnp.dot(a_ref[...], z_ref[...],
                            preferred_element_type=jnp.float32)

    @pl.when(k == pl.num_programs(1) - 1)
    def _finalize():
        h = jnp.maximum(acc_ref[...] + b_ref[...], 0.0)
        hidden_ref[...] = h
        p = jnp.maximum(
            jnp.dot(h, wp1_ref[...], preferred_element_type=jnp.float32)
            + bp1_ref[...], 0.0)
        pred_ref[...] = (
            jnp.dot(p, wp2_ref[...], preferred_element_type=jnp.float32)
            + bp2_ref[...])


# ----------------------------------------------------------------------------
# pallas_call wrappers
# ----------------------------------------------------------------------------
def _input_projection(x_pad, w, tm, z_dtype, vmem_limit):
    n_pad, f_in = x_pad.shape
    h = w.shape[1]
    return pl.pallas_call(
        _input_proj_kernel,
        out_shape=jax.ShapeDtypeStruct((n_pad, h), z_dtype),
        grid_spec=pltpu.PrefetchScalarGridSpec(
            num_scalar_prefetch=0,
            grid=(n_pad // tm,),
            in_specs=[pl.BlockSpec((tm, f_in), lambda i: (i, 0)),
                      pl.BlockSpec((f_in, h), lambda i: (0, 0))],
            out_specs=pl.BlockSpec((tm, h), lambda i: (i, 0))),
        compiler_params=pltpu.CompilerParams(
            dimension_semantics=("parallel",),
            vmem_limit_bytes=vmem_limit),
        cost_estimate=pl.CostEstimate(
            flops=2 * n_pad * f_in * h, transcendentals=0,
            bytes_accessed=x_pad.size * 4 + w.size * 4 + n_pad * h * 2),
    )(x_pad, w)


def _aggregate_fuse_next(a, z, b, w_next, tm, tk, z_dtype, vmem_limit):
    n_pad = a.shape[0]
    h = z.shape[1]
    h_next = w_next.shape[1]
    flops = 2 * n_pad * n_pad * h + 2 * n_pad * h * h_next
    bytes_accessed = (a.size * a.dtype.itemsize + z.size * z.dtype.itemsize
                      + n_pad * h_next * jnp.dtype(z_dtype).itemsize
                      + (w_next.size + b.size) * 4)
    return pl.pallas_call(
        _agg_fuse_next_kernel,
        out_shape=jax.ShapeDtypeStruct((n_pad, h_next), z_dtype),
        grid_spec=pltpu.PrefetchScalarGridSpec(
            num_scalar_prefetch=0,
            grid=(n_pad // tm, n_pad // tk),
            in_specs=[pl.BlockSpec((tm, tk), lambda i, k: (i, k)),
                      pl.BlockSpec((tk, h), lambda i, k: (k, 0)),
                      pl.BlockSpec((1, h), lambda i, k: (0, 0)),
                      pl.BlockSpec((h, h_next), lambda i, k: (0, 0))],
            out_specs=pl.BlockSpec((tm, h_next), lambda i, k: (i, 0)),
            scratch_shapes=[pltpu.VMEM((tm, h), jnp.float32)]),
        compiler_params=pltpu.CompilerParams(
            dimension_semantics=("parallel", "arbitrary"),
            vmem_limit_bytes=vmem_limit),
        cost_estimate=pl.CostEstimate(flops=flops, transcendentals=0,
                                      bytes_accessed=bytes_accessed),
    )(a, z, b, w_next)


def _aggregate_head(a, z, b3, wp1, bp1, wp2_pad, bp2_pad, tm, tk, vmem_limit):
    n_pad = a.shape[0]
    h = z.shape[1]
    p_pad = wp2_pad.shape[1]
    flops = 2 * n_pad * n_pad * h + 2 * n_pad * h * h + 2 * n_pad * h * p_pad
    bytes_accessed = (a.size * a.dtype.itemsize + z.size * z.dtype.itemsize
                      + n_pad * h * 4 + n_pad * p_pad * 4
                      + (wp1.size + wp2_pad.size + bp1.size + bp2_pad.size
                         + b3.size) * 4)
    return pl.pallas_call(
        _agg_head_kernel,
        out_shape=(jax.ShapeDtypeStruct((n_pad, h), jnp.float32),
                   jax.ShapeDtypeStruct((n_pad, p_pad), jnp.float32)),
        grid_spec=pltpu.PrefetchScalarGridSpec(
            num_scalar_prefetch=0,
            grid=(n_pad // tm, n_pad // tk),
            in_specs=[pl.BlockSpec((tm, tk), lambda i, k: (i, k)),
                      pl.BlockSpec((tk, h), lambda i, k: (k, 0)),
                      pl.BlockSpec((1, h), lambda i, k: (0, 0)),
                      pl.BlockSpec((h, h), lambda i, k: (0, 0)),
                      pl.BlockSpec((1, h), lambda i, k: (0, 0)),
                      pl.BlockSpec((h, p_pad), lambda i, k: (0, 0)),
                      pl.BlockSpec((1, p_pad), lambda i, k: (0, 0))],
            out_specs=(pl.BlockSpec((tm, h), lambda i, k: (i, 0)),
                       pl.BlockSpec((tm, p_pad), lambda i, k: (i, 0))),
            scratch_shapes=[pltpu.VMEM((tm, h), jnp.float32)]),
        compiler_params=pltpu.CompilerParams(
            dimension_semantics=("parallel", "arbitrary"),
            vmem_limit_bytes=vmem_limit),
        cost_estimate=pl.CostEstimate(flops=flops, transcendentals=0,
                                      bytes_accessed=bytes_accessed),
    )(a, z, b3, wp1, bp1, wp2_pad, bp2_pad)


# ----------------------------------------------------------------------------
# Forward pass
# ----------------------------------------------------------------------------
def shipgnn_forward(x, a_hat_pad, params, *, tm=128, tk=128,
                    agg_dtype=jnp.bfloat16, vmem_limit=DEFAULT_VMEM_LIMIT):
    """x: [N, F] f32, a_hat_pad: [Np, Np] f32 (Np multiple of tm and tk)."""
    n, f_in = x.shape
    n_pad = a_hat_pad.shape[0]
    h = params["w1"].shape[1]
    assert n_pad % tm == 0 and n_pad % tk == 0

    x_pad = jnp.zeros((n_pad, f_in), jnp.float32).at[:n].set(x)
    a = a_hat_pad.astype(agg_dtype)   # bf16 adjacency: halves HBM bytes of A@Z

    # Lane-dense padding of the 2-wide position head (masked vst avoidance).
    wp2_pad = jnp.zeros((h, PRED_PAD), jnp.float32).at[:, :2].set(params["wp2"])
    bp2_pad = jnp.zeros((1, PRED_PAD), jnp.float32).at[:, :2].set(params["bp2"])

    # TODO(synk): Dropout(p=0.3) in training mode would need in-kernel PRNG
    # (pltpu.prng_seed / prng_random_bits); inference-mode identity here.
    z1 = _input_projection(x_pad, params["w1"], tm, agg_dtype, vmem_limit)
    z2 = _aggregate_fuse_next(a, z1, params["b1"], params["w2"], tm, tk,
                              agg_dtype, vmem_limit)
    z3 = _aggregate_fuse_next(a, z2, params["b2"], params["w3"], tm, tk,
                              agg_dtype, vmem_limit)
    hidden_pad, pred_pad = _aggregate_head(a, z3, params["b3"],
                                           params["wp1"], params["bp1"],
                                           wp2_pad, bp2_pad, tm, tk,
                                           vmem_limit)
    return hidden_pad[:n], pred_pad[:n, :2]


# ----------------------------------------------------------------------------
# Glue: padded GCN normalized adjacency + xavier params + pure-JAX reference
# ----------------------------------------------------------------------------
def round_up(n, m):
    return ((n + m - 1) // m) * m


def build_gcn_adjacency(edge_index, num_nodes, n_pad):
    """Dense symmetric-normalized adjacency with self-loops, zero-padded.

    Padded rows/cols are zero, so real-node outputs are unaffected.
    TODO(synk): replace with a scalar-prefetch CSR gather for real (sparse)
    graphs; dense A_hat is O(N^2) in HBM bytes and MXU work.
    """
    src = edge_index[0]
    dst = edge_index[1]
    loop = jnp.arange(num_nodes, dtype=edge_index.dtype)
    src = jnp.concatenate([src, loop])
    dst = jnp.concatenate([dst, loop])
    ones = jnp.ones(src.shape[0], dtype=jnp.float32)
    deg = jnp.zeros((n_pad,), jnp.float32).at[dst].add(ones)
    dinv = jnp.where(deg > 0, 1.0 / jnp.sqrt(jnp.maximum(deg, 1.0)), 0.0)
    norm = dinv[src] * dinv[dst]
    # out[dst] += norm * x[src]  ->  A[dst, src] = norm
    return jnp.zeros((n_pad, n_pad), jnp.float32).at[dst, src].add(norm)


def xavier_uniform(key, shape):
    fan_in, fan_out = shape
    bound = (6.0 / (fan_in + fan_out)) ** 0.5
    return jax.random.uniform(key, shape, jnp.float32, -bound, bound)


def init_params(key, in_feats, hidden_dim):
    keys = jax.random.split(key, 5)
    return {
        "w1": xavier_uniform(keys[0], (in_feats, hidden_dim)),
        "b1": jnp.zeros((1, hidden_dim), jnp.float32),
        "w2": xavier_uniform(keys[1], (hidden_dim, hidden_dim)),
        "b2": jnp.zeros((1, hidden_dim), jnp.float32),
        "w3": xavier_uniform(keys[2], (hidden_dim, hidden_dim)),
        "b3": jnp.zeros((1, hidden_dim), jnp.float32),
        "wp1": xavier_uniform(keys[3], (hidden_dim, hidden_dim)),
        "bp1": jnp.zeros((1, hidden_dim), jnp.float32),
        "wp2": xavier_uniform(keys[4], (hidden_dim, 2)),
        "bp2": jnp.zeros((1, 2), jnp.float32),
    }


def reference_forward(x, a_hat, p, agg_dtype=jnp.bfloat16):
    """Pure-JAX reference mirroring the kernel's bf16 aggregation inputs."""
    a = a_hat.astype(agg_dtype)

    def agg(z):
        return jnp.dot(a, z.astype(agg_dtype),
                       preferred_element_type=jnp.float32)

    h = jnp.maximum(agg(x @ p["w1"]) + p["b1"], 0.0)
    h = jnp.maximum(agg(h @ p["w2"]) + p["b2"], 0.0)
    h = jnp.maximum(agg(h @ p["w3"]) + p["b3"], 0.0)
    ph = jnp.maximum(h @ p["wp1"] + p["bp1"], 0.0)
    pred = ph @ p["wp2"] + p["bp2"]
    return h, pred


if __name__ == "__main__":
    # Small shapes: 300 nodes, 8 input features, hidden_dim 128 (module
    # default), 1200 random edges. N pads to 384 -> a 3x3 tile grid, so the
    # accumulation / epilogue path is actually exercised.
    N, IN_FEATS, HIDDEN, E = 300, 8, 128, 1200
    TM = TK = 128
    n_pad = round_up(N, max(TM, TK))

    key = jax.random.PRNGKey(0)
    k_x, k_e, k_w = jax.random.split(key, 3)

    x = jax.random.normal(k_x, (N, IN_FEATS), jnp.float32)
    edge_index = jax.random.randint(k_e, (2, E), 0, N, jnp.int32)

    a_hat_pad = build_gcn_adjacency(edge_index, N, n_pad)
    params = init_params(k_w, IN_FEATS, HIDDEN)

    fwd = jax.jit(functools.partial(shipgnn_forward, tm=TM, tk=TK))
    hidden, pred = fwd(x, a_hat_pad, params)
    jax.block_until_ready((hidden, pred))

    ref_hidden, ref_pred = reference_forward(x, a_hat_pad[:N, :N], params)
    assert hidden.shape == (N, HIDDEN) and pred.shape == (N, 2)
    assert jnp.allclose(hidden, ref_hidden, atol=1e-2, rtol=1e-2), \
        float(jnp.max(jnp.abs(hidden - ref_hidden)))
    assert jnp.allclose(pred, ref_pred, atol=1e-2, rtol=1e-2), \
        float(jnp.max(jnp.abs(pred - ref_pred)))

    print("KERNEL_OK")
</pallas_src>

<mosaic_0001>
module attributes {stable_mosaic.version = 11 : i64} {
  func.func @_input_proj_kernel(%arg0: i32, %arg1: memref<128x8xf32, #tpu.memory_space<vmem>>, %arg2: memref<8x128xf32, #tpu.memory_space<vmem>>, %arg3: memref<128x128xbf16, #tpu.memory_space<vmem>>) attributes {dimension_semantics = [#tpu.dimension_semantics<parallel>], iteration_bounds = array<i64: 3>, scalar_prefetch = 0 : i64, scratch_operands = 0 : i64, tpu.core_type = #tpu.core_type<tc>, window_params = [{transform_indices = @transform_0, window_bounds = array<i64: 128, 8>}, {pipeline_mode = #tpu.pipeline_mode<synchronous>, transform_indices = @transform_1, window_bounds = array<i64: 8, 128>}, {transform_indices = @transform_2, window_bounds = array<i64: 128, 128>}]} {
    %c0 = arith.constant 0 : index
    %c0_0 = arith.constant 0 : index
    %0 = vector.load %arg1[%c0, %c0_0] : memref<128x8xf32, #tpu.memory_space<vmem>>, vector<128x8xf32>
    %c0_1 = arith.constant 0 : index
    %c0_2 = arith.constant 0 : index
    %1 = vector.load %arg2[%c0_1, %c0_2] : memref<8x128xf32, #tpu.memory_space<vmem>>, vector<8x128xf32>
    %cst = arith.constant dense<0.000000e+00> : vector<128x128xf32>
    %2 = tpu.matmul %0, %1, %cst {dimension_numbers = #tpu.dot_dimension_numbers<[1], [0], [0], [1], [0, 0, 1, 1], [], []>} : vector<128x8xf32>, vector<8x128xf32>, vector<128x128xf32> -> vector<128x128xf32>
    %3 = arith.truncf %2 : vector<128x128xf32> to vector<128x128xbf16>
    %c0_3 = arith.constant 0 : index
    %c0_4 = arith.constant 0 : index
    %4 = vector.load %arg3[%c0_3, %c0_4] : memref<128x128xbf16, #tpu.memory_space<vmem>>, vector<128x128xbf16>
    tpu.vector_store %arg3[%c0_3, %c0_4], %3 {strides = array<i32>} : memref<128x128xbf16, #tpu.memory_space<vmem>>, vector<128x128xbf16>,
    return
  }
  func.func @transform_0(%arg0: i32) -> (i32, i32) {
    %c0_i32 = arith.constant 0 : i32
    %c0_i32_0 = arith.constant 0 : i32
    return %arg0, %c0_i32 : i32, i32
  }
  func.func @transform_1(%arg0: i32) -> (i32, i32) {
    %c0_i32 = arith.constant 0 : i32
    %c0_i32_0 = arith.constant 0 : i32
    %c0_i32_1 = arith.constant 0 : i32
    return %c0_i32, %c0_i32_0 : i32, i32
  }
  func.func @transform_2(%arg0: i32) -> (i32, i32) {
    %c0_i32 = arith.constant 0 : i32
    %c0_i32_0 = arith.constant 0 : i32
    return %arg0, %c0_i32 : i32, i32
  }
}

module attributes {stable_mosaic.version = 11 : i64} {
  func.func @_agg_fuse_next_kernel(%arg0: i32, %arg1: i32, %arg2: memref<128x128xbf16, #tpu.memory_space<vmem>>, %arg3: memref<128x128xbf16, #tpu.memory_space<vmem>>, %arg4: memref<1x128xf32, #tpu.memory_space<vmem>>, %arg5: memref<128x128xf32, #tpu.memory_space<vmem>>, %arg6: memref<128x128xbf16, #tpu.memory_space<vmem>>, %arg7: memref<128x128xf32, #tpu.memory_space<vmem>>) attributes {dimension_semantics = [#tpu.dimension_semantics<parallel>, #tpu.dimension_semantics<arbitrary>], iteration_bounds = array<i64: 3, 3>, scalar_prefetch = 0 : i64, scratch_operands = 1 : i64, tpu.core_type = #tpu.core_type<tc>, window_params = [{transform_indices = @transform_0, window_bounds = array<i64: 128, 128>}, {transform_indices = @transform_1, window_bounds = array<i64: 128, 128>}, {pipeline_mode = #tpu.pipeline_mode<synchronous>, transform_indices = @transform_2, window_bounds = array<i64: 1, 128>}, {pipeline_mode = #tpu.pipeline_mode<synchronous>, transform_indices = @transform_3, window_bounds = array<i64: 128, 128>}, {transform_indices = @transform_4, window_bounds = array<i64: 128, 128>}]} {
    %c0_i32 = arith.constant 0 : i32
    %0 = arith.cmpi eq, %arg1, %c0_i32 : i32
    %1 = arith.extui %0 : i1 to i32
    %c0_i32_0 = arith.constant 0 : i32
    %2 = arith.cmpi ne, %1, %c0_i32_0 : i32
    scf.if %2 {
      %cst_9 = arith.constant 0.000000e+00 : f32
      %12 = vector.broadcast %cst_9 : f32 to vector<128x128xf32>
      %c0_10 = arith.constant 0 : index
      %c0_11 = arith.constant 0 : index
      %13 = vector.load %arg7[%c0_10, %c0_11] : memref<128x128xf32, #tpu.memory_space<vmem>>, vector<128x128xf32>
      tpu.vector_store %arg7[%c0_10, %c0_11], %12 {strides = array<i32>} : memref<128x128xf32, #tpu.memory_space<vmem>>, vector<128x128xf32>,
    } else {
    }
    %c0 = arith.constant 0 : index
    %c0_1 = arith.constant 0 : index
    %3 = vector.load %arg7[%c0, %c0_1] : memref<128x128xf32, #tpu.memory_space<vmem>>, vector<128x128xf32>
    %c0_2 = arith.constant 0 : index
    %c0_3 = arith.constant 0 : index
    %4 = vector.load %arg2[%c0_2, %c0_3] : memref<128x128xbf16, #tpu.memory_space<vmem>>, vector<128x128xbf16>
    %c0_4 = arith.constant 0 : index
    %c0_5 = arith.constant 0 : index
    %5 = vector.load %arg3[%c0_4, %c0_5] : memref<128x128xbf16, #tpu.memory_space<vmem>>, vector<128x128xbf16>
    %cst = arith.constant dense<0.000000e+00> : vector<128x128xf32>
    %6 = tpu.matmul %4, %5, %cst {dimension_numbers = #tpu.dot_dimension_numbers<[1], [0], [0], [1], [0, 0, 1, 1], [], []>} : vector<128x128xbf16>, vector<128x128xbf16>, vector<128x128xf32> -> vector<128x128xf32>
    %7 = arith.addf %3, %6 : vector<128x128xf32>
    %c0_6 = arith.constant 0 : index
    %c0_7 = arith.constant 0 : index
    %8 = vector.load %arg7[%c0_6, %c0_7] : memref<128x128xf32, #tpu.memory_space<vmem>>, vector<128x128xf32>
    tpu.vector_store %arg7[%c0_6, %c0_7], %7 {strides = array<i32>} : memref<128x128xf32, #tpu.memory_space<vmem>>, vector<128x128xf32>,
    %c2_i32 = arith.constant 2 : i32
    %9 = arith.cmpi eq, %arg1, %c2_i32 : i32
    %10 = arith.extui %9 : i1 to i32
    %c0_i32_8 = arith.constant 0 : i32
    %11 = arith.cmpi ne, %10, %c0_i32_8 : i32
    scf.if %11 {
      %c0_9 = arith.constant 0 : index
      %c0_10 = arith.constant 0 : index
      %12 = vector.load %arg7[%c0_9, %c0_10] : memref<128x128xf32, #tpu.memory_space<vmem>>, vector<128x128xf32>
      %c0_11 = arith.constant 0 : index
      %c0_12 = arith.constant 0 : index
      %13 = vector.load %arg4[%c0_11, %c0_12] : memref<1x128xf32, #tpu.memory_space<vmem>>, vector<1x128xf32>
      %14 = vector.broadcast %13 : vector<1x128xf32> to vector<128x128xf32>
      %15 = arith.addf %12, %14 : vector<128x128xf32>
      %cst_13 = arith.constant 0.000000e+00 : f32
      %16 = vector.broadcast %cst_13 : f32 to vector<128x128xf32>
      %17 = arith.maximumf %15, %16 : vector<128x128xf32>
      %c0_14 = arith.constant 0 : index
      %c0_15 = arith.constant 0 : index
      %18 = vector.load %arg5[%c0_14, %c0_15] : memref<128x128xf32, #tpu.memory_space<vmem>>, vector<128x128xf32>
      %cst_16 = arith.constant dense<0.000000e+00> : vector<128x128xf32>
      %19 = tpu.matmul %17, %18, %cst_16 {dimension_numbers = #tpu.dot_dimension_numbers<[1], [0], [0], [1], [0, 0, 1, 1], [], []>} : vector<128x128xf32>, vector<128x128xf32>, vector<128x128xf32> -> vector<128x128xf32>
      %20 = arith.truncf %19 : vector<128x128xf32> to vector<128x128xbf16>
      %c0_17 = arith.constant 0 : index
      %c0_18 = arith.constant 0 : index
      %21 = vector.load %arg6[%c0_17, %c0_18] : memref<128x128xbf16, #tpu.memory_space<vmem>>, vector<128x128xbf16>
      tpu.vector_store %arg6[%c0_17, %c0_18], %20 {strides = array<i32>} : memref<128x128xbf16, #tpu.memory_space<vmem>>, vector<128x128xbf16>,
    } else {
    }
    return
  }
  func.func @transform_0(%arg0: i32, %arg1: i32) -> (i32, i32) {
    %c0_i32 = arith.constant 0 : i32
    return %arg0, %arg1 : i32, i32
  }
  func.func @transform_1(%arg0: i32, %arg1: i32) -> (i32, i32) {
    %c0_i32 = arith.constant 0 : i32
    %c0_i32_0 = arith.constant 0 : i32
    return %arg1, %c0_i32 : i32, i32
  }
  func.func @transform_2(%arg0: i32, %arg1: i32) -> (i32, i32) {
    %c0_i32 = arith.constant 0 : i32
    %c0_i32_0 = arith.constant 0 : i32
    %c0_i32_1 = arith.constant 0 : i32
    return %c0_i32, %c0_i32_0 : i32, i32
  }
  func.func @transform_3(%arg0: i32, %arg1: i32) -> (i32, i32) {
    %c0_i32 = arith.constant 0 : i32
    %c0_i32_0 = arith.constant 0 : i32
    %c0_i32_1 = arith.constant 0 : i32
    return %c0_i32, %c0_i32_0 : i32, i32
  }
  func.func @transform_4(%arg0: i32, %arg1: i32) -> (i32, i32) {
    %c0_i32 = arith.constant 0 : i32
    %c0_i32_0 = arith.constant 0 : i32
    return %arg0, %c0_i32 : i32, i32
  }
}

module attributes {stable_mosaic.version = 11 : i64} {
  func.func @_agg_head_kernel(%arg0: i32, %arg1: i32, %arg2: memref<128x128xbf16, #tpu.memory_space<vmem>>, %arg3: memref<128x128xbf16, #tpu.memory_space<vmem>>, %arg4: memref<1x128xf32, #tpu.memory_space<vmem>>, %arg5: memref<128x128xf32, #tpu.memory_space<vmem>>, %arg6: memref<1x128xf32, #tpu.memory_space<vmem>>, %arg7: memref<128x128xf32, #tpu.memory_space<vmem>>, %arg8: memref<1x128xf32, #tpu.memory_space<vmem>>, %arg9: memref<128x128xf32, #tpu.memory_space<vmem>>, %arg10: memref<128x128xf32, #tpu.memory_space<vmem>>, %arg11: memref<128x128xf32, #tpu.memory_space<vmem>>) attributes {dimension_semantics = [#tpu.dimension_semantics<parallel>, #tpu.dimension_semantics<arbitrary>], iteration_bounds = array<i64: 3, 3>, scalar_prefetch = 0 : i64, scratch_operands = 1 : i64, tpu.core_type = #tpu.core_type<tc>, window_params = [{transform_indices = @transform_0, window_bounds = array<i64: 128, 128>}, {transform_indices = @transform_1, window_bounds = array<i64: 128, 128>}, {pipeline_mode = #tpu.pipeline_mode<synchronous>, transform_indices = @transform_2, window_bounds = array<i64: 1, 128>}, {pipeline_mode = #tpu.pipeline_mode<synchronous>, transform_indices = @transform_3, window_bounds = array<i64: 128, 128>}, {pipeline_mode = #tpu.pipeline_mode<synchronous>, transform_indices = @transform_4, window_bounds = array<i64: 1, 128>}, {pipeline_mode = #tpu.pipeline_mode<synchronous>, transform_indices = @transform_5, window_bounds = array<i64: 128, 128>}, {pipeline_mode = #tpu.pipeline_mode<synchronous>, transform_indices = @transform_6, window_bounds = array<i64: 1, 128>}, {transform_indices = @transform_7, window_bounds = array<i64: 128, 128>}, {transform_indices = @transform_8, window_bounds = array<i64: 128, 128>}]} {
    %c0_i32 = arith.constant 0 : i32
    %0 = arith.cmpi eq, %arg1, %c0_i32 : i32
    %1 = arith.extui %0 : i1 to i32
    %c0_i32_0 = arith.constant 0 : i32
    %2 = arith.cmpi ne, %1, %c0_i32_0 : i32
    scf.if %2 {
      %cst_9 = arith.constant 0.000000e+00 : f32
      %12 = vector.broadcast %cst_9 : f32 to vector<128x128xf32>
      %c0_10 = arith.constant 0 : index
      %c0_11 = arith.constant 0 : index
      %13 = vector.load %arg11[%c0_10, %c0_11] : memref<128x128xf32, #tpu.memory_space<vmem>>, vector<128x128xf32>
      tpu.vector_store %arg11[%c0_10, %c0_11], %12 {strides = array<i32>} : memref<128x128xf32, #tpu.memory_space<vmem>>, vector<128x128xf32>,
    } else {
    }
    %c0 = arith.constant 0 : index
    %c0_1 = arith.constant 0 : index
    %3 = vector.load %arg11[%c0, %c0_1] : memref<128x128xf32, #tpu.memory_space<vmem>>, vector<128x128xf32>
    %c0_2 = arith.constant 0 : index
    %c0_3 = arith.constant 0 : index
    %4 = vector.load %arg2[%c0_2, %c0_3] : memref<128x128xbf16, #tpu.memory_space<vmem>>, vector<128x128xbf16>
    %c0_4 = arith.constant 0 : index
    %c0_5 = arith.constant 0 : index
    %5 = vector.load %arg3[%c0_4, %c0_5] : memref<128x128xbf16, #tpu.memory_space<vmem>>, vector<128x128xbf16>
    %cst = arith.constant dense<0.000000e+00> : vector<128x128xf32>
    %6 = tpu.matmul %4, %5, %cst {dimension_numbers = #tpu.dot_dimension_numbers<[1], [0], [0], [1], [0, 0, 1, 1], [], []>} : vector<128x128xbf16>, vector<128x128xbf16>, vector<128x128xf32> -> vector<128x128xf32>
    %7 = arith.addf %3, %6 : vector<128x128xf32>
    %c0_6 = arith.constant 0 : index
    %c0_7 = arith.constant 0 : index
    %8 = vector.load %arg11[%c0_6, %c0_7] : memref<128x128xf32, #tpu.memory_space<vmem>>, vector<128x128xf32>
    tpu.vector_store %arg11[%c0_6, %c0_7], %7 {strides = array<i32>} : memref<128x128xf32, #tpu.memory_space<vmem>>, vector<128x128xf32>,
    %c2_i32 = arith.constant 2 : i32
    %9 = arith.cmpi eq, %arg1, %c2_i32 : i32
    %10 = arith.extui %9 : i1 to i32
    %c0_i32_8 = arith.constant 0 : i32
    %11 = arith.cmpi ne, %10, %c0_i32_8 : i32
    scf.if %11 {
      %c0_9 = arith.constant 0 : index
      %c0_10 = arith.constant 0 : index
      %12 = vector.load %arg11[%c0_9, %c0_10] : memref<128x128xf32, #tpu.memory_space<vmem>>, vector<128x128xf32>
      %c0_11 = arith.constant 0 : index
      %c0_12 = arith.constant 0 : index
      %13 = vector.load %arg4[%c0_11, %c0_12] : memref<1x128xf32, #tpu.memory_space<vmem>>, vector<1x128xf32>
      %14 = vector.broadcast %13 : vector<1x128xf32> to vector<128x128xf32>
      %15 = arith.addf %12, %14 : vector<128x128xf32>
      %cst_13 = arith.constant 0.000000e+00 : f32
      %16 = vector.broadcast %cst_13 : f32 to vector<128x128xf32>
      %17 = arith.maximumf %15, %16 : vector<128x128xf32>
      %c0_14 = arith.constant 0 : index
      %c0_15 = arith.constant 0 : index
      %18 = vector.load %arg9[%c0_14, %c0_15] : memref<128x128xf32, #tpu.memory_space<vmem>>, vector<128x128xf32>
      tpu.vector_store %arg9[%c0_14, %c0_15], %17 {strides = array<i32>} : memref<128x128xf32, #tpu.memory_space<vmem>>, vector<128x128xf32>,
      %c0_16 = arith.constant 0 : index
      %c0_17 = arith.constant 0 : index
      %19 = vector.load %arg5[%c0_16, %c0_17] : memref<128x128xf32, #tpu.memory_space<vmem>>, vector<128x128xf32>
      %cst_18 = arith.constant dense<0.000000e+00> : vector<128x128xf32>
      %20 = tpu.matmul %17, %19, %cst_18 {dimension_numbers = #tpu.dot_dimension_numbers<[1], [0], [0], [1], [0, 0, 1, 1], [], []>} : vector<128x128xf32>, vector<128x128xf32>, vector<128x128xf32> -> vector<128x128xf32>
      %c0_19 = arith.constant 0 : index
      %c0_20 = arith.constant 0 : index
      %21 = vector.load %arg6[%c0_19, %c0_20] : memref<1x128xf32, #tpu.memory_space<vmem>>, vector<1x128xf32>
      %22 = vector.broadcast %21 : vector<1x128xf32> to vector<128x128xf32>
      %23 = arith.addf %20, %22 : vector<128x128xf32>
      %cst_21 = arith.constant 0.000000e+00 : f32
      %24 = vector.broadcast %cst_21 : f32 to vector<128x128xf32>
      %25 = arith.maximumf %23, %24 : vector<128x128xf32>
      %c0_22 = arith.constant 0 : index
      %c0_23 = arith.constant 0 : index
      %26 = vector.load %arg7[%c0_22, %c0_23] : memref<128x128xf32, #tpu.memory_space<vmem>>, vector<128x128xf32>
      %cst_24 = arith.constant dense<0.000000e+00> : vector<128x128xf32>
      %27 = tpu.matmul %25, %26, %cst_24 {dimension_numbers = #tpu.dot_dimension_numbers<[1], [0], [0], [1], [0, 0, 1, 1], [], []>} : vector<128x128xf32>, vector<128x128xf32>, vector<128x128xf32> -> vector<128x128xf32>
      %c0_25 = arith.constant 0 : index
      %c0_26 = arith.constant 0 : index
      %28 = vector.load %arg8[%c0_25, %c0_26] : memref<1x128xf32, #tpu.memory_space<vmem>>, vector<1x128xf32>
      %29 = vector.broadcast %28 : vector<1x128xf32> to vector<128x128xf32>
      %30 = arith.addf %27, %29 : vector<128x128xf32>
      %c0_27 = arith.constant 0 : index
      %c0_28 = arith.constant 0 : index
      %31 = vector.load %arg10[%c0_27, %c0_28] : memref<128x128xf32, #tpu.memory_space<vmem>>, vector<128x128xf32>
      tpu.vector_store %arg10[%c0_27, %c0_28], %30 {strides = array<i32>} : memref<128x128xf32, #tpu.memory_space<vmem>>, vector<128x128xf32>,
    } else {
    }
    return
  }
  func.func @transform_0(%arg0: i32, %arg1: i32) -> (i32, i32) {
    %c0_i32 = arith.constant 0 : i32
    return %arg0, %arg1 : i32, i32
  }
  func.func @transform_1(%arg0: i32, %arg1: i32) -> (i32, i32) {
    %c0_i32 = arith.constant 0 : i32
    %c0_i32_0 = arith.constant 0 : i32
    return %arg1, %c0_i32 : i32, i32
  }
  func.func @transform_2(%arg0: i32, %arg1: i32) -> (i32, i32) {
    %c0_i32 = arith.constant 0 : i32
    %c0_i32_0 = arith.constant 0 : i32
    %c0_i32_1 = arith.constant 0 : i32
    return %c0_i32, %c0_i32_0 : i32, i32
  }
  func.func @transform_3(%arg0: i32, %arg1: i32) -> (i32, i32) {
    %c0_i32 = arith.constant 0 : i32
    %c0_i32_0 = arith.constant 0 : i32
    %c0_i32_1 = arith.constant 0 : i32
    return %c0_i32, %c0_i32_0 : i32, i32
  }
  func.func @transform_4(%arg0: i32, %arg1: i32) -> (i32, i32) {
    %c0_i32 = arith.constant 0 : i32
    %c0_i32_0 = arith.constant 0 : i32
    %c0_i32_1 = arith.constant 0 : i32
    return %c0_i32, %c0_i32_0 : i32, i32
  }
  func.func @transform_5(%arg0: i32, %arg1: i32) -> (i32, i32) {
    %c0_i32 = arith.constant 0 : i32
    %c0_i32_0 = arith.constant 0 : i32
    %c0_i32_1 = arith.constant 0 : i32
    return %c0_i32, %c0_i32_0 : i32, i32
  }
  func.func @transform_6(%arg0: i32, %arg1: i32) -> (i32, i32) {
    %c0_i32 = arith.constant 0 : i32
    %c0_i32_0 = arith.constant 0 : i32
    %c0_i32_1 = arith.constant 0 : i32
    return %c0_i32, %c0_i32_0 : i32, i32
  }
  func.func @transform_7(%arg0: i32, %arg1: i32) -> (i32, i32) {
    %c0_i32 = arith.constant 0 : i32
    %c0_i32_0 = arith.constant 0 : i32
    return %arg0, %c0_i32 : i32, i32
  }
  func.func @transform_8(%arg0: i32, %arg1: i32) -> (i32, i32) {
    %c0_i32 = arith.constant 0 : i32
    %c0_i32_0 = arith.constant 0 : i32
    return %arg0, %c0_i32 : i32, i32
  }
}

</mosaic_0001>

<llo_original>
// kernel: shipgnn_forward.4
$region0: #{shipgnn_forward.4}
  #allocation0 [shape = 'u32[]', space=smem, size = 0x4, offset = 0x4, fixed_abs, tag = 'smem constant byte address 0x4 - core index']
  #allocation1 [shape = 'u32[144,128]{1,0:T(1,128)}', space=vmem, size = 0x12000, scoped, tag = 'internal scratch']
  %s0 = inlined_call_operand.vmem [shape: f32[384,8], index: 0, kind: input, shape index: {}]
  %s1 = inlined_call_operand.vmem [shape: f32[8,128], index: 1, kind: input, shape index: {}]
  %s2 = inlined_call_operand.vmem [shape: bf16[384,128], index: 2, kind: output, shape index: {}]
  %s3 = sld [smem:[#allocation0]]
  $region41: #{shipgnn_forward.4} parent=0
    _
  %s5 = ssub.s32 1, %s3
  %s6 = scalar_select 0, %s5, %s3
  loop: start=0, step=1, limit=5
  $region2: #{shipgnn_forward.4} parent=0 // loop_pre_header
    _
  $region3: #{shipgnn_forward.4} parent=0 // loop_header
    %s8 = sphi 0, %s12
    %p9 = scmp.ge.s32.totalorder %s8, 5
    %s18 = sphi 0, %s20
    %s21 = sphi 0, %s18
    %s22 = sphi 0, %s21
    %s38 = sphi 0, %s22
    %s42 = sphi 0, %s42
    %s44 = sphi 0, %s42
    %s45 = sphi 0, %s44
    %s59 = sphi 0, %s45
    %s65 = sphi 0, %s67
    %s68 = sphi 0, %s65
    %s69 = sphi 0, %s68
    %s85 = sphi 0, %s69
  $region4: #{shipgnn_forward.4} parent=0 // loop_header_branch
    %11 = sbr.rel (%p9) target = $region8
  $region5: #{shipgnn_forward.4} parent=0 // loop_body
    %s13 = ssub.s32 %s8, 1
    %s14 = ssub.s32 %s8, 2
    %s15 = sadd.s32 %s8, 1
    %s16 = ssub.s32 %s8, %s15
    %p17 = scmp.eq.s32.totalorder %s16, 0
    %s19 = sadd.s32 %s18, 1
    %s20 = scalar_select %p17, %s18, %s19
    %p23 = pneg %p17
    %p24 = scmp.eq.s32.totalorder %s8, 2
    %p25 = por %p23, %p24
    %p26 = scmp.ne.s32.totalorder %s18, %s21
    %p27 = scmp.eq.s32.totalorder %s8, 0
    %p28 = por %p26, %p27
    %p29 = scmp.ne.s32.totalorder %s18, %s21
    %p30 = scmp.eq.s32.totalorder %s13, 2
    %p31 = por %p29, %p30
    %p32 = scmp.ne.s32.totalorder %s21, %s22
    %p33 = scmp.eq.s32.totalorder %s13, 0
    %p34 = por %p32, %p33
    %p35 = scmp.ne.s32.totalorder %s21, %s22
    %p36 = scmp.eq.s32.totalorder %s14, 2
    %p37 = por %p35, %p36
    %p39 = scmp.ne.s32.totalorder %s22, %s38
    %p40 = scmp.eq.s32.totalorder %s14, 0
    %p41 = por %p39, %p40
    %s43 = sadd.s32 %s42, 1
    %p46 = scmp.eq.s32.totalorder %s8, 2
    %p47 = scmp.ne.s32.totalorder %s42, %s44
    %p48 = scmp.eq.s32.totalorder %s8, 0
    %p49 = por %p47, %p48
    %p50 = scmp.ne.s32.totalorder %s42, %s44
    %p51 = scmp.eq.s32.totalorder %s13, 2
    %p52 = por %p50, %p51
    %p53 = scmp.ne.s32.totalorder %s44, %s45
    %p54 = scmp.eq.s32.totalorder %s13, 0
    %p55 = por %p53, %p54
    %p56 = scmp.ne.s32.totalorder %s44, %s45
    %p57 = scmp.eq.s32.totalorder %s14, 2
    %p58 = por %p56, %p57
    %p60 = scmp.ne.s32.totalorder %s45, %s59
    %p61 = scmp.eq.s32.totalorder %s14, 0
    %p62 = por %p60, %p61
    %s63 = ssub.s32 %s8, %s15
    %p64 = scmp.eq.s32.totalorder %s63, 0
    %s66 = sadd.s32 %s65, 1
    %s67 = scalar_select %p64, %s65, %s66
    %p70 = pneg %p64
    %p71 = scmp.eq.s32.totalorder %s8, 2
    %p72 = por %p70, %p71
    %p73 = scmp.ne.s32.totalorder %s65, %s68
    %p74 = scmp.eq.s32.totalorder %s8, 0
    %p75 = por %p73, %p74
    %p76 = scmp.ne.s32.totalorder %s65, %s68
    %p77 = scmp.eq.s32.totalorder %s13, 2
    %p78 = por %p76, %p77
    %p79 = scmp.ne.s32.totalorder %s68, %s69
    %p80 = scmp.eq.s32.totalorder %s13, 0
    %p81 = por %p79, %p80
    %p82 = scmp.ne.s32.totalorder %s68, %s69
    %p83 = scmp.eq.s32.totalorder %s14, 2
    %p84 = por %p82, %p83
    %p86 = scmp.ne.s32.totalorder %s69, %s85
    %p87 = scmp.eq.s32.totalorder %s14, 0
    %p88 = por %p86, %p87
    %p89 = scmp.le.s32.totalorder 1, %s8
    %p90 = scmp.lt.s32.totalorder %s8, 4
    %p91 = pnand %p89, %p90
    %p92 = pneg %p91
    // Predicated region
    $region9: #{shipgnn_forward.4} parent=5 // pred_check
      _
    $region10: #{shipgnn_forward.4} parent=5 // pred_check_branch
      %94 = sbr.rel (%p91) target = $region12
    $region11: #{shipgnn_forward.4} parent=5 // pred_region
      %s95 = ssub.s32 %s8, 1
      // Predicated region
      $region13: #{shipgnn_forward.4} parent=11 // pred_check
        %p96 = pneg %p55
      $region14: #{shipgnn_forward.4} parent=11 // pred_check_branch
        %98 = sbr.rel (%p96) target = $region16
      $region15: #{shipgnn_forward.4} parent=11 // pred_region
        _
      $region16: #{shipgnn_forward.4} parent=11 // pred_fallthru
        _
    $region12: #{shipgnn_forward.4} parent=5 // pred_fallthru
      _
    %p99 = scmp.lt.s32.totalorder %s8, 3
    // Predicated region
    $region17: #{shipgnn_forward.4} parent=5 // pred_check
      %p100 = pneg %p99
    $region18: #{shipgnn_forward.4} parent=5 // pred_check_branch
      %102 = sbr.rel (%p100) target = $region20
    $region19: #{shipgnn_forward.4} parent=5 // pred_region
      // Predicated region
      $region21: #{shipgnn_forward.4} parent=19 // pred_check
        %p103 = pneg %p28
      $region22: #{shipgnn_forward.4} parent=19 // pred_check_branch
        %105 = sbr.rel (%p103) target = $region24
      $region23: #{shipgnn_forward.4} parent=19 // pred_region
        %s106 = smul.u32 16, %s8
        %p107 = scmp.lt.s32.totalorder %s106, 47
        %s108 = scalar_select %p107, %s106, 47
        %s109 = smul.addr %s108, 8
        %s110 = scalar_lea.vmem %s0, %s109
        %s111 = smul.u32 16, %s8
      $region24: #{shipgnn_forward.4} parent=19 // pred_fallthru
        _
    $region20: #{shipgnn_forward.4} parent=5 // pred_fallthru
      _
    %p112 = scmp.le.s32.totalorder 1, %s8
    %p113 = scmp.lt.s32.totalorder %s8, 4
    %p114 = pnand %p112, %p113
    %p115 = pneg %p114
    // Predicated region
    $region25: #{shipgnn_forward.4} parent=5 // pred_check
      _
    $region26: #{shipgnn_forward.4} parent=5 // pred_check_branch
      %117 = sbr.rel (%p114) target = $region28
    $region27: #{shipgnn_forward.4} parent=5 // pred_region
      %s118 = ssub.s32 %s8, 1
      %s119 = smul.u32 16, %s13
      %p120 = scmp.lt.s32.totalorder %s119, 47
      %s121 = scalar_select %p120, %s119, 47
      %s122 = smul.addr %s121, 8
      %s123 = scalar_lea.vmem %s0, %s122
      %p124 = pneg %p34
      %p125 = pneg %p31
      %p126 = pneg %p55
      %p127 = pneg %p52
      %p128 = pneg %p81
      %p129 = pneg %p78
      %s130 = smul.u32 16, %s13
      %p131 = scmp.lt.s32.totalorder %s130, 47
      %s132 = scalar_select %p131, %s130, 47
      %s133 = smul.addr %s132, 4
      %s134 = scalar_lea.vmem %s2, %s133
      %s135 = smul.u32 16, %s13
      %p136 = scmp.lt.s32.totalorder %s135, 47
      %s137 = scalar_select %p136, %s135, 47
      %s138 = smul.addr %s137, 8
      %s139 = scalar_lea.vmem %s0, %s138
      %s140 = smul.u32 16, %s13
      %s141 = smul.u32 16, %s13
      %p142 = scmp.lt.s32.totalorder %s141, 47
      %s143 = scalar_select %p142, %s141, 47
      %s144 = smul.addr %s143, 4
      %s145 = scalar_lea.vmem %s2, %s144
      %s146 = smul.u32 16, %s13
      %v147 = vld [vmem:[%s139] sm:$0xff]
      %v148 = vld [vmem:[%s139 + $0x8] sm:$0xff]
      %v149 = vld [vmem:[%s139 + $0x10] sm:$0xff]
      %v150 = vld [vmem:[%s139 + $0x18] sm:$0xff]
      %v151 = vld [vmem:[%s139 + $0x20] sm:$0xff]
      %v152 = vld [vmem:[%s139 + $0x28] sm:$0xff]
      %v153 = vld [vmem:[%s139 + $0x30] sm:$0xff]
      %v154 = vld [vmem:[%s139 + $0x38] sm:$0xff]
      %v155 = vld [vmem:[%s139 + $0x40] sm:$0xff]
      %v156 = vld [vmem:[%s139 + $0x48] sm:$0xff]
      %v157 = vld [vmem:[%s139 + $0x50] sm:$0xff]
      %v158 = vld [vmem:[%s139 + $0x58] sm:$0xff]
      %v159 = vld [vmem:[%s139 + $0x60] sm:$0xff]
      %v160 = vld [vmem:[%s139 + $0x68] sm:$0xff]
      %v161 = vld [vmem:[%s139 + $0x70] sm:$0xff]
      %v162 = vld [vmem:[%s139 + $0x78] sm:$0xff]
      %v163 = vld [vmem:[%s1] sm:$0xff]
      %vm164 = vcmask 64512
      %v166 = vsel %vm164, %v147, 0
      %v169 = vsel %vm164, %v148, 0
      %v172 = vsel %vm164, %v149, 0
      %v175 = vsel %vm164, %v150, 0
      %v178 = vsel %vm164, %v151, 0
      %v181 = vsel %vm164, %v152, 0
      %v184 = vsel %vm164, %v153, 0
      %v187 = vsel %vm164, %v154, 0
      %v190 = vsel %vm164, %v155, 0
      %v193 = vsel %vm164, %v156, 0
      %v196 = vsel %vm164, %v157, 0
      %v199 = vsel %vm164, %v158, 0
      %v202 = vsel %vm164, %v159, 0
      %v205 = vsel %vm164, %v160, 0
      %v208 = vsel %vm164, %v161, 0
      %v211 = vsel %vm164, %v162, 0
      %213 = vmatprep.subr.mxu0 0.0
      %214 = vmatpush1.msra.mxu0 %v163
      %215 = vmatprep.subr.mxu0 0.0
      %216 = vmatpush1.msra.mxu0 0.0
      %217 = vmatprep.subr.mxu0 0.0
      %218 = vmatpush1.msra.mxu0 0.0
      %219 = vmatprep.subr.mxu0 0.0
      %220 = vmatpush1.msra.mxu0 0.0
      %221 = vmatprep.subr.mxu0 0.0
      %222 = vmatpush1.msra.mxu0 0.0
      %223 = vmatprep.subr.mxu0 0.0
      %224 = vmatpush1.msra.mxu0 0.0
      %225 = vmatprep.subr.mxu0 0.0
      %226 = vmatpush1.msra.mxu0 0.0
      %227 = vmatprep.subr.mxu0 0.0
      %228 = vmatpush1.msra.mxu0 0.0
      %229 = vmatprep.subr.mxu0 0.0
      %230 = vmatpush1.msra.mxu0 0.0
      %231 = vmatprep.subr.mxu0 0.0
      %232 = vmatpush1.msra.mxu0 0.0
      %233 = vmatprep.subr.mxu0 0.0
      %234 = vmatpush1.msra.mxu0 0.0
      %235 = vmatprep.subr.mxu0 0.0
      %236 = vmatpush1.msra.mxu0 0.0
      %237 = vmatprep.subr.mxu0 0.0
      %238 = vmatpush1.msra.mxu0 0.0
      %239 = vmatprep.subr.mxu0 0.0
      %240 = vmatpush1.msra.mxu0 0.0
      %241 = vmatprep.subr.mxu0 0.0
      %242 = vmatpush1.msra.mxu0 0.0
      %243 = vmatprep.subr.mxu0 0.0
      %244 = vmatpush1.msra.mxu0 0.0
      %245 = vmatprep.subr.mxu0 0.0
      %246 = vmatpush1.msra.mxu0 0.0
      %247 = vmatprep.subr.mxu0 0.0
      %248 = vmatpush1.msra.mxu0 0.0
      %249 = vmatprep.subr.mxu0 0.0
      %250 = vmatpush1.msra.mxu0 0.0
      %251 = vmatprep.subr.mxu0 0.0
      %252 = vmatpush1.msra.mxu0 0.0
      %253 = vmatprep.subr.mxu0 0.0
      %254 = vmatpush1.msra.mxu0 0.0
      %255 = vmatprep.subr.mxu0 0.0
      %256 = vmatpush1.msra.mxu0 0.0
      %257 = vmatprep.subr.mxu0 0.0
      %258 = vmatpush1.msra.mxu0 0.0
      %259 = vmatprep.subr.mxu0 0.0
      %260 = vmatpush1.msra.mxu0 0.0
      %261 = vmatprep.subr.mxu0 0.0
      %262 = vmatpush1.msra.mxu0 0.0
      %263 = vmatprep.subr.mxu0 0.0
      %264 = vmatpush1.msra.mxu0 0.0
      %265 = vmatprep.subr.mxu0 0.0
      %266 = vmatpush1.msra.mxu0 0.0
      %267 = vmatprep.subr.mxu0 0.0
      %268 = vmatpush1.msra.mxu0 0.0
      %269 = vmatprep.subr.mxu0 0.0
      %270 = vmatpush1.msra.mxu0 0.0
      %271 = vmatprep.subr.mxu0 0.0
      %272 = vmatpush1.msra.mxu0 0.0
      %273 = vmatprep.subr.mxu0 0.0
      %274 = vmatpush1.msra.mxu0 0.0
      %275 = vmatprep.subr.mxu0 0.0
      %276 = vmatpush1.msra.mxu0 0.0
      %277 = vmatprep.mubr.f32.mxu0 0.0
      %278 = vmatmul.mubr.f32.gmra.mrb[0].mxu0 %v166
      %v279 = vpop.f32.mrb[0].mxu0
      %v280 = vadd.f32 0.0, %v279
      %v281 = vpop.f32.mrb[0].mxu0
      %282 = vmatprep.mubr.f32.mxu0 0.0
      %283 = vmatmul.mubr.f32.gmra.mrb[0].mxu0 %v169
      %v284 = vpop.f32.mrb[0].mxu0
      %v285 = vadd.f32 0.0, %v284
      %v286 = vpop.f32.mrb[0].mxu0
      %287 = vmatprep.mubr.f32.mxu0 0.0
      %288 = vmatmul.mubr.f32.gmra.mrb[0].mxu0 %v172
      %v289 = vpop.f32.mrb[0].mxu0
      %v290 = vadd.f32 0.0, %v289
      %v291 = vpop.f32.mrb[0].mxu0
      %292 = vmatprep.mubr.f32.mxu0 0.0
      %293 = vmatmul.mubr.f32.gmra.mrb[0].mxu0 %v175
      %v294 = vpop.f32.mrb[0].mxu0
      %v295 = vadd.f32 0.0, %v294
      %v296 = vpop.f32.mrb[0].mxu0
      %297 = vmatprep.mubr.f32.mxu0 0.0
      %298 = vmatmul.mubr.f32.gmra.mrb[0].mxu0 %v178
      %v299 = vpop.f32.mrb[0].mxu0
      %v300 = vadd.f32 0.0, %v299
      %v301 = vpop.f32.mrb[0].mxu0
      %302 = vmatprep.mubr.f32.mxu0 0.0
      %303 = vmatmul.mubr.f32.gmra.mrb[0].mxu0 %v181
      %v304 = vpop.f32.mrb[0].mxu0
      %v305 = vadd.f32 0.0, %v304
      %v306 = vpop.f32.mrb[0].mxu0
      %307 = vmatprep.mubr.f32.mxu0 0.0
      %308 = vmatmul.mubr.f32.gmra.mrb[0].mxu0 %v184
      %v309 = vpop.f32.mrb[0].mxu0
      %v310 = vadd.f32 0.0, %v309
      %v311 = vpop.f32.mrb[0].mxu0
      %312 = vmatprep.mubr.f32.mxu0 0.0
      %313 = vmatmul.mubr.f32.gmra.mrb[0].mxu0 %v187
      %v314 = vpop.f32.mrb[0].mxu0
      %v315 = vadd.f32 0.0, %v314
      %v316 = vpop.f32.mrb[0].mxu0
      %317 = vmatprep.mubr.f32.mxu0 0.0
      %318 = vmatmul.mubr.f32.gmra.mrb[0].mxu0 %v190
      %v319 = vpop.f32.mrb[0].mxu0
      %v320 = vadd.f32 0.0, %v319
      %v321 = vpop.f32.mrb[0].mxu0
      %322 = vmatprep.mubr.f32.mxu0 0.0
      %323 = vmatmul.mubr.f32.gmra.mrb[0].mxu0 %v193
      %v324 = vpop.f32.mrb[0].mxu0
      %v325 = vadd.f32 0.0, %v324
      %v326 = vpop.f32.mrb[0].mxu0
      %327 = vmatprep.mubr.f32.mxu0 0.0
      %328 = vmatmul.mubr.f32.gmra.mrb[0].mxu0 %v196
      %v329 = vpop.f32.mrb[0].mxu0
      %v330 = vadd.f32 0.0, %v329
      %v331 = vpop.f32.mrb[0].mxu0
      %332 = vmatprep.mubr.f32.mxu0 0.0
      %333 = vmatmul.mubr.f32.gmra.mrb[0].mxu0 %v199
      %v334 = vpop.f32.mrb[0].mxu0
      %v335 = vadd.f32 0.0, %v334
      %v336 = vpop.f32.mrb[0].mxu0
      %337 = vmatprep.mubr.f32.mxu0 0.0
      %338 = vmatmul.mubr.f32.gmra.mrb[0].mxu0 %v202
      %v339 = vpop.f32.mrb[0].mxu0
      %v340 = vadd.f32 0.0, %v339
      %v341 = vpop.f32.mrb[0].mxu0
      %342 = vmatprep.mubr.f32.mxu0 0.0
      %343 = vmatmul.mubr.f32.gmra.mrb[0].mxu0 %v205
      %v344 = vpop.f32.mrb[0].mxu0
      %v345 = vadd.f32 0.0, %v344
      %v346 = vpop.f32.mrb[0].mxu0
      %347 = vmatprep.mubr.f32.mxu0 0.0
      %348 = vmatmul.mubr.f32.gmra.mrb[0].mxu0 %v208
      %v349 = vpop.f32.mrb[0].mxu0
      %v350 = vadd.f32 0.0, %v349
      %v351 = vpop.f32.mrb[0].mxu0
      %352 = vmatprep.mubr.f32.mxu0 0.0
      %353 = vmatmul.mubr.f32.gmra.mrb[0].mxu0 %v211
      %v354 = vpop.f32.mrb[0].mxu0
      %v355 = vadd.f32 0.0, %v354
      %v356 = vpop.f32.mrb[0].mxu0
      %357 = vdwg.mxu0
      %v358 = vpack.c.bf16 %v285, %v280
      %v359 = vpack.c.bf16 %v295, %v290
      %v360 = vpack.c.bf16 %v305, %v300
      %v361 = vpack.c.bf16 %v315, %v310
      %v362 = vpack.c.bf16 %v325, %v320
      %v363 = vpack.c.bf16 %v335, %v330
      %v364 = vpack.c.bf16 %v345, %v340
      %v365 = vpack.c.bf16 %v355, %v350
      %v374 = vunpack.c.l.b16 %v358
      %v375 = vunpack.c.h.b16 %v358
      %v376 = vunpack.c.l.b16 %v359
      %v377 = vunpack.c.h.b16 %v359
      %v378 = vunpack.c.l.b16 %v360
      %v379 = vunpack.c.h.b16 %v360
      %v380 = vunpack.c.l.b16 %v361
      %v381 = vunpack.c.h.b16 %v361
      %v382 = vunpack.c.l.b16 %v362
      %v383 = vunpack.c.h.b16 %v362
      %v384 = vunpack.c.l.b16 %v363
      %v385 = vunpack.c.h.b16 %v363
      %v386 = vunpack.c.l.b16 %v364
      %v387 = vunpack.c.h.b16 %v364
      %v388 = vunpack.c.l.b16 %v365
      %v389 = vunpack.c.h.b16 %v365
      %v390 = vpack.c.b16 %v374, %v374
      %v391 = vpack.c.b16 %v375, %v375
      %v392 = vpack.c.b16 %v376, %v376
      %v393 = vpack.c.b16 %v377, %v377
      %v394 = vpack.c.b16 %v378, %v378
      %v395 = vpack.c.b16 %v379, %v379
      %v396 = vpack.c.b16 %v380, %v380
      %v397 = vpack.c.b16 %v381, %v381
      %v398 = vpack.c.b16 %v382, %v382
      %v399 = vpack.c.b16 %v383, %v383
      %v400 = vpack.c.b16 %v384, %v384
      %v401 = vpack.c.b16 %v385, %v385
      %v402 = vpack.c.b16 %v386, %v386
      %v403 = vpack.c.b16 %v387, %v387
      %v404 = vpack.c.b16 %v388, %v388
      %v405 = vpack.c.b16 %v389, %v389
      %422 = vst [vmem:[%s145] sm:$0xf] %v390
      %423 = vst [vmem:[%s145 + $0x4] sm:$0xf] %v391
      %424 = vst [vmem:[%s145 + $0x8] sm:$0xf] %v392
      %425 = vst [vmem:[%s145 + $0xc] sm:$0xf] %v393
      %426 = vst [vmem:[%s145 + $0x10] sm:$0xf] %v394
      %427 = vst [vmem:[%s145 + $0x14] sm:$0xf] %v395
      %428 = vst [vmem:[%s145 + $0x18] sm:$0xf] %v396
      %429 = vst [vmem:[%s145 + $0x1c] sm:$0xf] %v397
      %430 = vst [vmem:[%s145 + $0x20] sm:$0xf] %v398
      %431 = vst [vmem:[%s145 + $0x24] sm:$0xf] %v399
      %432 = vst [vmem:[%s145 + $0x28] sm:$0xf] %v400
      %433 = vst [vmem:[%s145 + $0x2c] sm:$0xf] %v401
      %434 = vst [vmem:[%s145 + $0x30] sm:$0xf] %v402
      %435 = vst [vmem:[%s145 + $0x34] sm:$0xf] %v403
      %436 = vst [vmem:[%s145 + $0x38] sm:$0xf] %v404
      %437 = vst [vmem:[%s145 + $0x3c] sm:$0xf] %v405
      %s438 = smul.u32 16, %s13
      %p439 = scmp.lt.s32.totalorder %s438, 47
      %s440 = scalar_select %p439, %s438, 47
      %s441 = smul.addr %s440, 4
      %s442 = scalar_lea.vmem %s2, %s441
      // Predicated region
      $region29: #{shipgnn_forward.4} parent=27 // pred_check
        %p443 = pneg %p78
      $region30: #{shipgnn_forward.4} parent=27 // pred_check_branch
        %445 = sbr.rel (%p443) target = $region32
      $region31: #{shipgnn_forward.4} parent=27 // pred_region
        %s446 = smul.u32 16, %s13
      $region32: #{shipgnn_forward.4} parent=27 // pred_fallthru
        _
    $region28: #{shipgnn_forward.4} parent=5 // pred_fallthru
      _
    %p447 = scmp.le.s32.totalorder 2, %s8
    // Predicated region
    $region33: #{shipgnn_forward.4} parent=5 // pred_check
      %p448 = pneg %p447
    $region34: #{shipgnn_forward.4} parent=5 // pred_check_branch
      %450 = sbr.rel (%p448) target = $region36
    $region35: #{shipgnn_forward.4} parent=5 // pred_region
      %s451 = ssub.s32 %s8, 2
      // Predicated region
      $region37: #{shipgnn_forward.4} parent=35 // pred_check
        %p452 = pneg %p84
      $region38: #{shipgnn_forward.4} parent=35 // pred_check_branch
        %454 = sbr.rel (%p452) target = $region40
      $region39: #{shipgnn_forward.4} parent=35 // pred_region
        %s455 = smul.u32 16, %s14
        %p456 = scmp.lt.s32.totalorder %s455, 47
        %s457 = scalar_select %p456, %s455, 47
        %s458 = smul.addr %s457, 4
        %s459 = scalar_lea.vmem %s2, %s458
      $region40: #{shipgnn_forward.4} parent=35 // pred_fallthru
        _
    $region36: #{shipgnn_forward.4} parent=5 // pred_fallthru
      _
  $region6: #{shipgnn_forward.4} parent=0 // loop_footer
    %s12 = sadd.s32 1, %s8
  $region7: #{shipgnn_forward.4} parent=0 // loop_footer_branch
    %7 = sbr.rel target = $region3
  $region8: #{shipgnn_forward.4} parent=0 // loop_exit
    _

// kernel: shipgnn_forward.5
$region0: #{shipgnn_forward.5}
  #allocation0 [shape = 'u32[]', space=smem, size = 0x4, offset = 0x4, fixed_abs, tag = 'smem constant byte address 0x4 - core index']
  #allocation1 [shape = 'u32[144,128]{1,0:T(1,128)}', space=vmem, size = 0x12000, scoped, tag = 'internal scratch']
  #allocation2 [shape = 'f32[128,128]{1,0:T(8,128)}', space=vmem, size = 0x10000, scoped, tag = 'scratch operand']
  %s0 = inlined_call_operand.vmem [shape: bf16[384,384], index: 0, kind: input, shape index: {}]
  %s1 = inlined_call_operand.vmem [shape: bf16[384,128], index: 1, kind: input, shape index: {}]
  %s2 = inlined_call_operand.vmem [shape: f32[1,128], index: 2, kind: input, shape index: {}]
  %s3 = inlined_call_operand.vmem [shape: f32[128,128], index: 3, kind: input, shape index: {}]
  %s4 = inlined_call_operand.vmem [shape: bf16[384,128], index: 4, kind: output, shape index: {}]
  %s5 = sld [smem:[#allocation0]]
  $region98: #{shipgnn_forward.5} parent=0
    _
  %s7 = ssub.s32 1, %s5
  %s8 = scalar_select 0, %s7, %s5
  $region1: #{shipgnn_forward.5} parent=0
    #allocation3 [shape = 'u8[65536]{0}', space=vmem, size = 0x10000, scoped, tag = 'input window, operand 0']
    loop: start=0, step=1, limit=11
    $region2: #{shipgnn_forward.5} parent=1 // loop_pre_header
      _
    $region3: #{shipgnn_forward.5} parent=1 // loop_header
      %s10 = sphi 0, %s14
      %p11 = scmp.ge.s32.totalorder %s10, 11
      %s17 = sphi 0, %s29
      %s18 = sphi 0, %s25
      %s19 = sphi 0, %s17
      %s20 = sphi 0, %s18
      %s21 = sphi 0, %s19
      %s22 = sphi 0, %s20
      %s34 = sphi 0, %s36
      %s37 = sphi 0, %s34
      %s38 = sphi 0, %s37
      %s54 = sphi 0, %s38
      %s60 = sphi 0, %s62
      %s63 = sphi 0, %s60
      %s64 = sphi 0, %s63
      %s80 = sphi 0, %s64
      %s84 = sphi 0, %s84
      %s86 = sphi 0, %s84
      %s87 = sphi 0, %s86
      %s101 = sphi 0, %s87
      %s105 = sphi 0, %s105
      %s107 = sphi 0, %s105
      %s108 = sphi 0, %s107
      %s122 = sphi 0, %s108
      %s128 = sphi 0, %s130
      %s131 = sphi 0, %s128
      %s132 = sphi 0, %s131
      %s148 = sphi 0, %s132
    $region4: #{shipgnn_forward.5} parent=1 // loop_header_branch
      %13 = sbr.rel (%p11) target = $region8
    $region5: #{shipgnn_forward.5} parent=1 // loop_body
      %s15 = ssub.s32 %s10, 1
      %s16 = ssub.s32 %s10, 2
      %s23 = sadd.s32 1, %s18
      %p24 = scmp.ge.s32.totalorder %s23, 3
      %s25 = scalar_select %p24, 0, %s23
      %s26 = sadd.s32 1, %s17
      %s27 = scalar_select %p24, %s26, %s17
      %p28 = scmp.ge.s32.totalorder %s27, 3
      %s29 = scalar_select %p28, 0, %s27
      %s30 = ssub.s32 %s17, %s29
      %s31 = ssub.s32 %s18, %s25
      %s32 = sor.u32 %s30, %s31
      %p33 = scmp.eq.s32.totalorder %s32, 0
      %s35 = sadd.s32 %s34, 1
      %s36 = scalar_select %p33, %s34, %s35
      %p39 = pneg %p33
      %p40 = scmp.eq.s32.totalorder %s10, 8
      %p41 = por %p39, %p40
      %p42 = scmp.ne.s32.totalorder %s34, %s37
      %p43 = scmp.eq.s32.totalorder %s10, 0
      %p44 = por %p42, %p43
      %p45 = scmp.ne.s32.totalorder %s34, %s37
      %p46 = scmp.eq.s32.totalorder %s15, 8
      %p47 = por %p45, %p46
      %p48 = scmp.ne.s32.totalorder %s37, %s38
      %p49 = scmp.eq.s32.totalorder %s15, 0
      %p50 = por %p48, %p49
      %p51 = scmp.ne.s32.totalorder %s37, %s38
      %p52 = scmp.eq.s32.totalorder %s16, 8
      %p53 = por %p51, %p52
      %p55 = scmp.ne.s32.totalorder %s38, %s54
      %p56 = scmp.eq.s32.totalorder %s16, 0
      %p57 = por %p55, %p56
      %s58 = ssub.s32 %s18, %s25
      %p59 = scmp.eq.s32.totalorder %s58, 0
      %s61 = sadd.s32 %s60, 1
      %s62 = scalar_select %p59, %s60, %s61
      %p65 = pneg %p59
      %p66 = scmp.eq.s32.totalorder %s10, 8
      %p67 = por %p65, %p66
      %p68 = scmp.ne.s32.totalorder %s60, %s63
      %p69 = scmp.eq.s32.totalorder %s10, 0
      %p70 = por %p68, %p69
      %p71 = scmp.ne.s32.totalorder %s60, %s63
      %p72 = scmp.eq.s32.totalorder %s15, 8
      %p73 = por %p71, %p72
      %p74 = scmp.ne.s32.totalorder %s63, %s64
      %p75 = scmp.eq.s32.totalorder %s15, 0
      %p76 = por %p74, %p75
      %p77 = scmp.ne.s32.totalorder %s63, %s64
      %p78 = scmp.eq.s32.totalorder %s16, 8
      %p79 = por %p77, %p78
      %p81 = scmp.ne.s32.totalorder %s64, %s80
      %p82 = scmp.eq.s32.totalorder %s16, 0
      %p83 = por %p81, %p82
      %s85 = sadd.s32 %s84, 1
      %p88 = scmp.eq.s32.totalorder %s10, 8
      %p89 = scmp.ne.s32.totalorder %s84, %s86
      %p90 = scmp.eq.s32.totalorder %s10, 0
      %p91 = por %p89, %p90
      %p92 = scmp.ne.s32.totalorder %s84, %s86
      %p93 = scmp.eq.s32.totalorder %s15, 8
      %p94 = por %p92, %p93
      %p95 = scmp.ne.s32.totalorder %s86, %s87
      %p96 = scmp.eq.s32.totalorder %s15, 0
      %p97 = por %p95, %p96
      %p98 = scmp.ne.s32.totalorder %s86, %s87
      %p99 = scmp.eq.s32.totalorder %s16, 8
      %p100 = por %p98, %p99
      %p102 = scmp.ne.s32.totalorder %s87, %s101
      %p103 = scmp.eq.s32.totalorder %s16, 0
      %p104 = por %p102, %p103
      %s106 = sadd.s32 %s105, 1
      %p109 = scmp.eq.s32.totalorder %s10, 8
      %p110 = scmp.ne.s32.totalorder %s105, %s107
      %p111 = scmp.eq.s32.totalorder %s10, 0
      %p112 = por %p110, %p111
      %p113 = scmp.ne.s32.totalorder %s105, %s107
      %p114 = scmp.eq.s32.totalorder %s15, 8
      %p115 = por %p113, %p114
      %p116 = scmp.ne.s32.totalorder %s107, %s108
      %p117 = scmp.eq.s32.totalorder %s15, 0
      %p118 = por %p116, %p117
      %p119 = scmp.ne.s32.totalorder %s107, %s108
      %p120 = scmp.eq.s32.totalorder %s16, 8
      %p121 = por %p119, %p120
      %p123 = scmp.ne.s32.totalorder %s108, %s122
      %p124 = scmp.eq.s32.totalorder %s16, 0
      %p125 = por %p123, %p124
      %s126 = ssub.s32 %s17, %s29
      %p127 = scmp.eq.s32.totalorder %s126, 0
      %s129 = sadd.s32 %s128, 1
      %s130 = scalar_select %p127, %s128, %s129
      %p133 = pneg %p127
      %p134 = scmp.eq.s32.totalorder %s10, 8
      %p135 = por %p133, %p134
      %p136 = scmp.ne.s32.totalorder %s128, %s131
      %p137 = scmp.eq.s32.totalorder %s10, 0
      %p138 = por %p136, %p137
      %p139 = scmp.ne.s32.totalorder %s128, %s131
      %p140 = scmp.eq.s32.totalorder %s15, 8
      %p141 = por %p139, %p140
      %p142 = scmp.ne.s32.totalorder %s131, %s132
      %p143 = scmp.eq.s32.totalorder %s15, 0
      %p144 = por %p142, %p143
      %p145 = scmp.ne.s32.totalorder %s131, %s132
      %p146 = scmp.eq.s32.totalorder %s16, 8
      %p147 = por %p145, %p146
      %p149 = scmp.ne.s32.totalorder %s132, %s148
      %p150 = scmp.eq.s32.totalorder %s16, 0
      %p151 = por %p149, %p150
      %p152 = scmp.le.s32.totalorder 1, %s10
      %p153 = scmp.lt.s32.totalorder %s10, 10
      %p154 = pnand %p152, %p153
      %p155 = pneg %p154
      // Predicated region
      $region9: #{shipgnn_forward.5} parent=5 // pred_check
        _
      $region10: #{shipgnn_forward.5} parent=5 // pred_check_branch
        %157 = sbr.rel (%p154) target = $region12
      $region11: #{shipgnn_forward.5} parent=5 // pred_region
        %s158 = ssub.s32 %s10, 1
        // Predicated region
        $region13: #{shipgnn_forward.5} parent=11 // pred_check
          %p159 = pneg %p97
        $region14: #{shipgnn_forward.5} parent=11 // pred_check_branch
          %161 = sbr.rel (%p159) target = $region16
        $region15: #{shipgnn_forward.5} parent=11 // pred_region
          _
        $region16: #{shipgnn_forward.5} parent=11 // pred_fallthru
          _
        // Predicated region
        $region17: #{shipgnn_forward.5} parent=11 // pred_check
          %p162 = pneg %p118
        $region18: #{shipgnn_forward.5} parent=11 // pred_check_branch
          %164 = sbr.rel (%p162) target = $region20
        $region19: #{shipgnn_forward.5} parent=11 // pred_region
          _
        $region20: #{shipgnn_forward.5} parent=11 // pred_fallthru
          _
      $region12: #{shipgnn_forward.5} parent=5 // pred_fallthru
        _
      %p165 = scmp.lt.s32.totalorder %s10, 9
      // Predicated region
      $region21: #{shipgnn_forward.5} parent=5 // pred_check
        %p166 = pneg %p165
      $region22: #{shipgnn_forward.5} parent=5 // pred_check_branch
        %168 = sbr.rel (%p166) target = $region24
      $region23: #{shipgnn_forward.5} parent=5 // pred_region
        // Predicated region
        $region25: #{shipgnn_forward.5} parent=23 // pred_check
          %p169 = pneg %p44
        $region26: #{shipgnn_forward.5} parent=23 // pred_check_branch
          %171 = sbr.rel (%p169) target = $region28
        $region27: #{shipgnn_forward.5} parent=23 // pred_region
          %s172 = sand.u32 %s34, 1
          %s173 = sand.u32 %s34, 1
          %s174 = smul.addr %s173, 64
          %s175 = scalar_lea.vmem [#allocation3], %s174
          %s176 = smul.u32 16, %s17
          %s177 = smul.addr %s176, 3
          %s178 = sadd.s32 %s18, %s177
          %s179 = smul.addr %s178, 4
          %s180 = scalar_lea.vmem %s0, %s179
          // Predicated region
          $region29: #{shipgnn_forward.5} parent=27 // pred_check
            _
          $region30: #{shipgnn_forward.5} parent=27 // pred_check_branch
            %182 = sbr.rel (0) target = $region32
          $region31: #{shipgnn_forward.5} parent=27 // pred_region
            // Predicated region
            $region33: #{shipgnn_forward.5} parent=31 // pred_check
              _
            $region34: #{shipgnn_forward.5} parent=31 // pred_check_branch
              %184 = sbr.rel target = $region36
            $region35: #{shipgnn_forward.5} parent=31 // pred_region
              // Predicated region
              $region48: #{shipgnn_forward.5} parent=35 // pred_check
                _
              $region49: #{shipgnn_forward.5} parent=35 // pred_check_branch
                %229 = sbr.rel (0) target = $region51
              $region50: #{shipgnn_forward.5} parent=35 // pred_region
                loop: start=0, step=1, limit=1
                $region52: #{shipgnn_forward.5} parent=50 // loop_pre_header
                  _
                $region53: #{shipgnn_forward.5} parent=50 // loop_header
                  %s231 = sphi 0, %s235
                  %p232 = scmp.ge.s32.totalorder %s231, 1
                  %s236 = sphi %s180, %s180
                  %s237 = sphi %s175, %s175
                $region54: #{shipgnn_forward.5} parent=50 // loop_header_branch
                  %234 = sbr.rel (%p232) target = $region58
                $region55: #{shipgnn_forward.5} parent=50 // loop_body
                  _
                $region56: #{shipgnn_forward.5} parent=50 // loop_footer
                  %s235 = sadd.s32 1, %s231
                $region57: #{shipgnn_forward.5} parent=50 // loop_footer_branch
                  %230 = sbr.rel target = $region53
                $region58: #{shipgnn_forward.5} parent=50 // loop_exit
                  _
                loop: start=0, step=1, limit=1
                $region59: #{shipgnn_forward.5} parent=50 // loop_pre_header
                  _
                $region60: #{shipgnn_forward.5} parent=50 // loop_header
                  %s240 = sphi 0, %s244
                  %p241 = scmp.ge.s32.totalorder %s240, 1
                  %s245 = sphi %s180, %s180
                  %s246 = sphi %s175, %s175
                $region61: #{shipgnn_forward.5} parent=50 // loop_header_branch
                  %243 = sbr.rel (%p241) target = $region65
                $region62: #{shipgnn_forward.5} parent=50 // loop_body
                  %v247 = vld [vmem:[%s245] sm:$0xf]
                  %248 = vst [vmem:[%s246] sm:$0xf] %v247
                  %v249 = vld [vmem:[%s245 + $0xc] sm:$0xf]
                  %250 = vst [vmem:[%s246 + $0x4] sm:$0xf] %v249
                  %v251 = vld [vmem:[%s245 + $0x18] sm:$0xf]
                  %252 = vst [vmem:[%s246 + $0x8] sm:$0xf] %v251
                  %v253 = vld [vmem:[%s245 + $0x24] sm:$0xf]
                  %254 = vst [vmem:[%s246 + $0xc] sm:$0xf] %v253
                  %v255 = vld [vmem:[%s245 + $0x30] sm:$0xf]
                  %256 = vst [vmem:[%s246 + $0x10] sm:$0xf] %v255
                  %v257 = vld [vmem:[%s245 + $0x3c] sm:$0xf]
                  %258 = vst [vmem:[%s246 + $0x14] sm:$0xf] %v257
                  %v259 = vld [vmem:[%s245 + $0x48] sm:$0xf]
                  %260 = vst [vmem:[%s246 + $0x18] sm:$0xf] %v259
                  %v261 = vld [vmem:[%s245 + $0x54] sm:$0xf]
                  %262 = vst [vmem:[%s246 + $0x1c] sm:$0xf] %v261
                  %v263 = vld [vmem:[%s245 + $0x60] sm:$0xf]
                  %264 = vst [vmem:[%s246 + $0x20] sm:$0xf] %v263
                  %v265 = vld [vmem:[%s245 + $0x6c] sm:$0xf]
                  %266 = vst [vmem:[%s246 + $0x24] sm:$0xf] %v265
                  %v267 = vld [vmem:[%s245 + $0x78] sm:$0xf]
                  %268 = vst [vmem:[%s246 + $0x28] sm:$0xf] %v267
                  %v269 = vld [vmem:[%s245 + $0x84] sm:$0xf]
                  %270 = vst [vmem:[%s246 + $0x2c] sm:$0xf] %v269
                  %v271 = vld [vmem:[%s245 + $0x90] sm:$0xf]
                  %272 = vst [vmem:[%s246 + $0x30] sm:$0xf] %v271
                  %v273 = vld [vmem:[%s245 + $0x9c] sm:$0xf]
                  %274 = vst [vmem:[%s246 + $0x34] sm:$0xf] %v273
                  %v275 = vld [vmem:[%s245 + $0xa8] sm:$0xf]
                  %276 = vst [vmem:[%s246 + $0x38] sm:$0xf] %v275
                  %v277 = vld [vmem:[%s245 + $0xb4] sm:$0xf]
                  %278 = vst [vmem:[%s246 + $0x3c] sm:$0xf] %v277
                $region63: #{shipgnn_forward.5} parent=50 // loop_footer
                  %s244 = sadd.s32 1, %s240
                $region64: #{shipgnn_forward.5} parent=50 // loop_footer_branch
                  %239 = sbr.rel target = $region60
                $region65: #{shipgnn_forward.5} parent=50 // loop_exit
                  _
              $region51: #{shipgnn_forward.5} parent=35 // pred_fallthru
                _
            $region36: #{shipgnn_forward.5} parent=31 // pred_fallthru
              _
            // Predicated region
            $region37: #{shipgnn_forward.5} parent=31 // pred_check
              _
            $region38: #{shipgnn_forward.5} parent=31 // pred_check_branch
              %186 = sbr.rel (0) target = $region40
            $region39: #{shipgnn_forward.5} parent=31 // pred_region
              loop: start=0, step=1, limit=1
              $region41: #{shipgnn_forward.5} parent=39 // loop_pre_header
                _
              $region42: #{shipgnn_forward.5} parent=39 // loop_header
                %s189 = sphi 0, %s193
                %p190 = scmp.ge.s32.totalorder %s189, 1
                %s194 = sphi %s180, %s180
                %s195 = sphi %s175, %s175
              $region43: #{shipgnn_forward.5} parent=39 // loop_header_branch
                %192 = sbr.rel (%p190) target = $region47
              $region44: #{shipgnn_forward.5} parent=39 // loop_body
                %v196 = vld [vmem:[%s194] sm:$0xf]
                %197 = vst [vmem:[%s195] sm:$0xf] %v196
                %v198 = vld [vmem:[%s194 + $0xc] sm:$0xf]
                %199 = vst [vmem:[%s195 + $0x4] sm:$0xf] %v198
                %v200 = vld [vmem:[%s194 + $0x18] sm:$0xf]
                %201 = vst [vmem:[%s195 + $0x8] sm:$0xf] %v200
                %v202 = vld [vmem:[%s194 + $0x24] sm:$0xf]
                %203 = vst [vmem:[%s195 + $0xc] sm:$0xf] %v202
                %v204 = vld [vmem:[%s194 + $0x30] sm:$0xf]
                %205 = vst [vmem:[%s195 + $0x10] sm:$0xf] %v204
                %v206 = vld [vmem:[%s194 + $0x3c] sm:$0xf]
                %207 = vst [vmem:[%s195 + $0x14] sm:$0xf] %v206
                %v208 = vld [vmem:[%s194 + $0x48] sm:$0xf]
                %209 = vst [vmem:[%s195 + $0x18] sm:$0xf] %v208
                %v210 = vld [vmem:[%s194 + $0x54] sm:$0xf]
                %211 = vst [vmem:[%s195 + $0x1c] sm:$0xf] %v210
                %v212 = vld [vmem:[%s194 + $0x60] sm:$0xf]
                %213 = vst [vmem:[%s195 + $0x20] sm:$0xf] %v212
                %v214 = vld [vmem:[%s194 + $0x6c] sm:$0xf]
                %215 = vst [vmem:[%s195 + $0x24] sm:$0xf] %v214
                %v216 = vld [vmem:[%s194 + $0x78] sm:$0xf]
                %217 = vst [vmem:[%s195 + $0x28] sm:$0xf] %v216
                %v218 = vld [vmem:[%s194 + $0x84] sm:$0xf]
                %219 = vst [vmem:[%s195 + $0x2c] sm:$0xf] %v218
                %v220 = vld [vmem:[%s194 + $0x90] sm:$0xf]
                %221 = vst [vmem:[%s195 + $0x30] sm:$0xf] %v220
                %v222 = vld [vmem:[%s194 + $0x9c] sm:$0xf]
                %223 = vst [vmem:[%s195 + $0x34] sm:$0xf] %v222
                %v224 = vld [vmem:[%s194 + $0xa8] sm:$0xf]
                %225 = vst [vmem:[%s195 + $0x38] sm:$0xf] %v224
                %v226 = vld [vmem:[%s194 + $0xb4] sm:$0xf]
                %227 = vst [vmem:[%s195 + $0x3c] sm:$0xf] %v226
              $region45: #{shipgnn_forward.5} parent=39 // loop_footer
                %s193 = sadd.s32 1, %s189
              $region46: #{shipgnn_forward.5} parent=39 // loop_footer_branch
                %188 = sbr.rel target = $region42
              $region47: #{shipgnn_forward.5} parent=39 // loop_exit
                _
            $region40: #{shipgnn_forward.5} parent=31 // pred_fallthru
              _
          $region32: #{shipgnn_forward.5} parent=27 // pred_fallthru
            _
          %279 = vnop
        $region28: #{shipgnn_forward.5} parent=23 // pred_fallthru
          _
        // Predicated region
        $region66: #{shipgnn_forward.5} parent=23 // pred_check
          %p280 = pneg %p70
        $region67: #{shipgnn_forward.5} parent=23 // pred_check_branch
          %282 = sbr.rel (%p280) target = $region69
        $region68: #{shipgnn_forward.5} parent=23 // pred_region
          %s283 = smul.u32 16, %s18
          %p284 = scmp.lt.s32.totalorder %s283, 47
          %s285 = scalar_select %p284, %s283, 47
          %s286 = smul.addr %s285, 4
          %s287 = scalar_lea.vmem %s1, %s286
          %s288 = smul.u32 16, %s18
        $region69: #{shipgnn_forward.5} parent=23 // pred_fallthru
          _
      $region24: #{shipgnn_forward.5} parent=5 // pred_fallthru
        _
      %p289 = scmp.le.s32.totalorder 1, %s10
      %p290 = scmp.lt.s32.totalorder %s10, 10
      %p291 = pnand %p289, %p290
      %p292 = pneg %p291
      // Predicated region
      $region70: #{shipgnn_forward.5} parent=5 // pred_check
        _
      $region71: #{shipgnn_forward.5} parent=5 // pred_check_branch
        %294 = sbr.rel (%p291) target = $region73
      $region72: #{shipgnn_forward.5} parent=5 // pred_region
        %s295 = ssub.s32 %s10, 1
        %s296 = sand.u32 %s37, 1
        %s297 = sand.u32 %s37, 1
        %s298 = smul.addr %s297, 64
        %s299 = scalar_lea.vmem [#allocation3], %s298
        // Predicated region
        $region74: #{shipgnn_forward.5} parent=72 // pred_check
          %p300 = pneg %p50
        $region75: #{shipgnn_forward.5} parent=72 // pred_check_branch
          %302 = sbr.rel (%p300) target = $region77
        $region76: #{shipgnn_forward.5} parent=72 // pred_region
          _
        $region77: #{shipgnn_forward.5} parent=72 // pred_fallthru
          _
        %s303 = sand.u32 %s37, 1
        %s304 = sand.u32 %s37, 1
        %s305 = smul.addr %s304, 64
        %s306 = scalar_lea.vmem [#allocation3], %s305
        %p307 = pneg %p50
        %p308 = pneg %p47
        %s309 = smul.u32 16, %s20
        %p310 = scmp.lt.s32.totalorder %s309, 47
        %s311 = scalar_select %p310, %s309, 47
        %s312 = smul.addr %s311, 4
        %s313 = scalar_lea.vmem %s1, %s312
        %p314 = pneg %p76
        %p315 = pneg %p73
        %p316 = pneg %p97
        %p317 = pneg %p94
        %p318 = pneg %p118
        %p319 = pneg %p115
        %p320 = pneg %p144
        %p321 = pneg %p141
        %s322 = smul.u32 16, %s19
        %p323 = scmp.lt.s32.totalorder %s322, 47
        %s324 = scalar_select %p323, %s322, 47
        %s325 = smul.addr %s324, 4
        %s326 = scalar_lea.vmem %s4, %s325
        %s327 = smul.u32 16, %s19
        %s328 = smul.u32 16, %s20
        %p329 = scmp.lt.s32.totalorder %s328, 47
        %s330 = scalar_select %p329, %s328, 47
        %s331 = smul.addr %s330, 4
        %s332 = scalar_lea.vmem %s1, %s331
        %s333 = smul.u32 16, %s20
        %s334 = smul.u32 16, %s19
        %p335 = scmp.lt.s32.totalorder %s334, 47
        %s336 = scalar_select %p335, %s334, 47
        %s337 = smul.addr %s336, 4
        %s338 = scalar_lea.vmem %s4, %s337
        %s339 = smul.u32 16, %s19
        %p341 = scmp.eq.s32.totalorder %s20, 0
        // Predicated region
        $region78: #{shipgnn_forward.5} parent=72 // pred_check
          %p342 = pneg %p341
        $region79: #{shipgnn_forward.5} parent=72 // pred_check_branch
          %344 = sbr.rel (%p342) target = $region81
        $region80: #{shipgnn_forward.5} parent=72 // pred_region
          %345 = vst [vmem:[#allocation2] sm:$0xff] 0.0
          %346 = vst [vmem:[#allocation2 + $0x8] sm:$0xff] 0.0
          %347 = vst [vmem:[#allocation2 + $0x10] sm:$0xff] 0.0
          %348 = vst [vmem:[#allocation2 + $0x18] sm:$0xff] 0.0
          %349 = vst [vmem:[#allocation2 + $0x20] sm:$0xff] 0.0
          %350 = vst [vmem:[#allocation2 + $0x28] sm:$0xff] 0.0
          %351 = vst [vmem:[#allocation2 + $0x30] sm:$0xff] 0.0
          %352 = vst [vmem:[#allocation2 + $0x38] sm:$0xff] 0.0
          %353 = vst [vmem:[#allocation2 + $0x40] sm:$0xff] 0.0
          %354 = vst [vmem:[#allocation2 + $0x48] sm:$0xff] 0.0
          %355 = vst [vmem:[#allocation2 + $0x50] sm:$0xff] 0.0
          %356 = vst [vmem:[#allocation2 + $0x58] sm:$0xff] 0.0
          %357 = vst [vmem:[#allocation2 + $0x60] sm:$0xff] 0.0
          %358 = vst [vmem:[#allocation2 + $0x68] sm:$0xff] 0.0
          %359 = vst [vmem:[#allocation2 + $0x70] sm:$0xff] 0.0
          %360 = vst [vmem:[#allocation2 + $0x78] sm:$0xff] 0.0
        $region81: #{shipgnn_forward.5} parent=72 // pred_fallthru
          _
        %v361 = vld [vmem:[#allocation2] sm:$0xff]
        %v362 = vld [vmem:[#allocation2 + $0x8] sm:$0xff]
        %v363 = vld [vmem:[#allocation2 + $0x10] sm:$0xff]
        %v364 = vld [vmem:[#allocation2 + $0x18] sm:$0xff]
        %v365 = vld [vmem:[#allocation2 + $0x20] sm:$0xff]
        %v366 = vld [vmem:[#allocation2 + $0x28] sm:$0xff]
        %v367 = vld [vmem:[#allocation2 + $0x30] sm:$0xff]
        %v368 = vld [vmem:[#allocation2 + $0x38] sm:$0xff]
        %v369 = vld [vmem:[#allocation2 + $0x40] sm:$0xff]
        %v370 = vld [vmem:[#allocation2 + $0x48] sm:$0xff]
        %v371 = vld [vmem:[#allocation2 + $0x50] sm:$0xff]
        %v372 = vld [vmem:[#allocation2 + $0x58] sm:$0xff]
        %v373 = vld [vmem:[#allocation2 + $0x60] sm:$0xff]
        %v374 = vld [vmem:[#allocation2 + $0x68] sm:$0xff]
        %v375 = vld [vmem:[#allocation2 + $0x70] sm:$0xff]
        %v376 = vld [vmem:[#allocation2 + $0x78] sm:$0xff]
        %v377 = vld [vmem:[%s299] sm:$0xf]
        %v378 = vld [vmem:[%s299 + $0x4] sm:$0xf]
        %v379 = vld [vmem:[%s299 + $0x8] sm:$0xf]
        %v380 = vld [vmem:[%s299 + $0xc] sm:$0xf]
        %v381 = vld [vmem:[%s299 + $0x10] sm:$0xf]
        %v382 = vld [vmem:[%s299 + $0x14] sm:$0xf]
        %v383 = vld [vmem:[%s299 + $0x18] sm:$0xf]
        %v384 = vld [vmem:[%s299 + $0x1c] sm:$0xf]
        %v385 = vld [vmem:[%s299 + $0x20] sm:$0xf]
        %v386 = vld [vmem:[%s299 + $0x24] sm:$0xf]
        %v387 = vld [vmem:[%s299 + $0x28] sm:$0xf]
        %v388 = vld [vmem:[%s299 + $0x2c] sm:$0xf]
        %v389 = vld [vmem:[%s299 + $0x30] sm:$0xf]
        %v390 = vld [vmem:[%s299 + $0x34] sm:$0xf]
        %v391 = vld [vmem:[%s299 + $0x38] sm:$0xf]
        %v392 = vld [vmem:[%s299 + $0x3c] sm:$0xf]
        %v393 = vld [vmem:[%s332] sm:$0xf]
        %v394 = vld [vmem:[%s332 + $0x4] sm:$0xf]
        %v395 = vld [vmem:[%s332 + $0x8] sm:$0xf]
        %v396 = vld [vmem:[%s332 + $0xc] sm:$0xf]
        %v397 = vld [vmem:[%s332 + $0x10] sm:$0xf]
        %v398 = vld [vmem:[%s332 + $0x14] sm:$0xf]
        %v399 = vld [vmem:[%s332 + $0x18] sm:$0xf]
        %v400 = vld [vmem:[%s332 + $0x1c] sm:$0xf]
        %v401 = vld [vmem:[%s332 + $0x20] sm:$0xf]
        %v402 = vld [vmem:[%s332 + $0x24] sm:$0xf]
        %v403 = vld [vmem:[%s332 + $0x28] sm:$0xf]
        %v404 = vld [vmem:[%s332 + $0x2c] sm:$0xf]
        %v405 = vld [vmem:[%s332 + $0x30] sm:$0xf]
        %v406 = vld [vmem:[%s332 + $0x34] sm:$0xf]
        %v407 = vld [vmem:[%s332 + $0x38] sm:$0xf]
        %v408 = vld [vmem:[%s332 + $0x3c] sm:$0xf]
        %v425 = vunpack.c.l.b16 %v377
        %v426 = vunpack.c.l.b16 %v378
        %v427 = vunpack.c.l.b16 %v379
        %v428 = vunpack.c.l.b16 %v380
        %v429 = vunpack.c.l.b16 %v381
        %v430 = vunpack.c.l.b16 %v382
        %v431 = vunpack.c.l.b16 %v383
        %v432 = vunpack.c.l.b16 %v384
        %v433 = vunpack.c.l.b16 %v385
        %v434 = vunpack.c.l.b16 %v386
        %v435 = vunpack.c.l.b16 %v387
        %v436 = vunpack.c.l.b16 %v388
        %v437 = vunpack.c.l.b16 %v389
        %v438 = vunpack.c.l.b16 %v390
        %v439 = vunpack.c.l.b16 %v391
        %v440 = vunpack.c.l.b16 %v392
        %v441 = vpack.c.b16 %v426, %v425
        %v442 = vpack.c.b16 %v428, %v427
        %v443 = vpack.c.b16 %v430, %v429
        %v444 = vpack.c.b16 %v432, %v431
        %v445 = vpack.c.b16 %v434, %v433
        %v446 = vpack.c.b16 %v436, %v435
        %v447 = vpack.c.b16 %v438, %v437
        %v448 = vpack.c.b16 %v440, %v439
        %v473 = vunpack.c.l.b16 %v393
        %v474 = vunpack.c.l.b16 %v394
        %v475 = vunpack.c.l.b16 %v395
        %v476 = vunpack.c.l.b16 %v396
        %v477 = vunpack.c.l.b16 %v397
        %v478 = vunpack.c.l.b16 %v398
        %v479 = vunpack.c.l.b16 %v399
        %v480 = vunpack.c.l.b16 %v400
        %v481 = vunpack.c.l.b16 %v401
        %v482 = vunpack.c.l.b16 %v402
        %v483 = vunpack.c.l.b16 %v403
        %v484 = vunpack.c.l.b16 %v404
        %v485 = vunpack.c.l.b16 %v405
        %v486 = vunpack.c.l.b16 %v406
        %v487 = vunpack.c.l.b16 %v407
        %v488 = vunpack.c.l.b16 %v408
        %v489 = vpack.c.b16 %v474, %v473
        %v490 = vpack.c.b16 %v476, %v475
        %v491 = vpack.c.b16 %v478, %v477
        %v492 = vpack.c.b16 %v480, %v479
        %v493 = vpack.c.b16 %v482, %v481
        %v494 = vpack.c.b16 %v484, %v483
        %v495 = vpack.c.b16 %v486, %v485
        %v496 = vpack.c.b16 %v488, %v487
        %505 = vmatprep.subr.bf16.mxu0 0
        %506 = vmatpush1.bf16.msra.mxu0 %v489
        %507 = vmatprep.subr.bf16.mxu0 0
        %508 = vmatpush1.bf16.msra.mxu0 %v490
        %509 = vmatprep.subr.bf16.mxu0 0
        %510 = vmatpush1.bf16.msra.mxu0 %v491
        %511 = vmatprep.subr.bf16.mxu0 0
        %512 = vmatpush1.bf16.msra.mxu0 %v492
        %513 = vmatprep.subr.bf16.mxu0 0
        %514 = vmatpush1.bf16.msra.mxu0 %v493
        %515 = vmatprep.subr.bf16.mxu0 0
        %516 = vmatpush1.bf16.msra.mxu0 %v494
        %517 = vmatprep.subr.bf16.mxu0 0
        %518 = vmatpush1.bf16.msra.mxu0 %v495
        %519 = vmatprep.subr.bf16.mxu0 0
        %520 = vmatpush1.bf16.msra.mxu0 %v496
        %521 = vmatprep.subr.bf16.mxu0 0
        %522 = vmatpush1.bf16.msra.mxu0 0
        %523 = vmatprep.subr.bf16.mxu0 0
        %524 = vmatpush1.bf16.msra.mxu0 0
        %525 = vmatprep.subr.bf16.mxu0 0
        %526 = vmatpush1.bf16.msra.mxu0 0
        %527 = vmatprep.subr.bf16.mxu0 0
        %528 = vmatpush1.bf16.msra.mxu0 0
        %529 = vmatprep.subr.bf16.mxu0 0
        %530 = vmatpush1.bf16.msra.mxu0 0
        %531 = vmatprep.subr.bf16.mxu0 0
        %532 = vmatpush1.bf16.msra.mxu0 0
        %533 = vmatprep.subr.bf16.mxu0 0
        %534 = vmatpush1.bf16.msra.mxu0 0
        %535 = vmatprep.subr.bf16.mxu0 0
        %536 = vmatpush1.bf16.msra.mxu0 0
        %537 = vmatprep.mubr.bf16.mxu0 0
        %538 = vmatmul.mubr.bf16.gmra.mrb[0].mxu0 %v441
        %v539 = vpop.f32.mrb[0].mxu0
        %v540 = vadd.f32 0.0, %v539
        %v541 = vpop.f32.mrb[0].mxu0
        %v542 = vpop.f32.mrb[0].mxu0
        %v543 = vadd.f32 0.0, %v542
        %v544 = vpop.f32.mrb[0].mxu0
        %545 = vmatprep.mubr.bf16.mxu0 0
        %546 = vmatmul.mubr.bf16.gmra.mrb[0].mxu0 %v442
        %v547 = vpop.f32.mrb[0].mxu0
        %v548 = vadd.f32 0.0, %v547
        %v549 = vpop.f32.mrb[0].mxu0
        %v550 = vpop.f32.mrb[0].mxu0
        %v551 = vadd.f32 0.0, %v550
        %v552 = vpop.f32.mrb[0].mxu0
        %553 = vmatprep.mubr.bf16.mxu0 0
        %554 = vmatmul.mubr.bf16.gmra.mrb[0].mxu0 %v443
        %v555 = vpop.f32.mrb[0].mxu0
        %v556 = vadd.f32 0.0, %v555
        %v557 = vpop.f32.mrb[0].mxu0
        %v558 = vpop.f32.mrb[0].mxu0
        %v559 = vadd.f32 0.0, %v558
        %v560 = vpop.f32.mrb[0].mxu0
        %561 = vmatprep.mubr.bf16.mxu0 0
        %562 = vmatmul.mubr.bf16.gmra.mrb[0].mxu0 %v444
        %v563 = vpop.f32.mrb[0].mxu0
        %v564 = vadd.f32 0.0, %v563
        %v565 = vpop.f32.mrb[0].mxu0
        %v566 = vpop.f32.mrb[0].mxu0
        %v567 = vadd.f32 0.0, %v566
        %v568 = vpop.f32.mrb[0].mxu0
        %569 = vmatprep.mubr.bf16.mxu0 0
        %570 = vmatmul.mubr.bf16.gmra.mrb[0].mxu0 %v445
        %v571 = vpop.f32.mrb[0].mxu0
        %v572 = vadd.f32 0.0, %v571
        %v573 = vpop.f32.mrb[0].mxu0
        %v574 = vpop.f32.mrb[0].mxu0
        %v575 = vadd.f32 0.0, %v574
        %v576 = vpop.f32.mrb[0].mxu0
        %577 = vmatprep.mubr.bf16.mxu0 0
        %578 = vmatmul.mubr.bf16.gmra.mrb[0].mxu0 %v446
        %v579 = vpop.f32.mrb[0].mxu0
        %v580 = vadd.f32 0.0, %v579
        %v581 = vpop.f32.mrb[0].mxu0
        %v582 = vpop.f32.mrb[0].mxu0
        %v583 = vadd.f32 0.0, %v582
        %v584 = vpop.f32.mrb[0].mxu0
        %585 = vmatprep.mubr.bf16.mxu0 0
        %586 = vmatmul.mubr.bf16.gmra.mrb[0].mxu0 %v447
        %v587 = vpop.f32.mrb[0].mxu0
        %v588 = vadd.f32 0.0, %v587
        %v589 = vpop.f32.mrb[0].mxu0
        %v590 = vpop.f32.mrb[0].mxu0
        %v591 = vadd.f32 0.0, %v590
        %v592 = vpop.f32.mrb[0].mxu0
        %593 = vmatprep.mubr.bf16.mxu0 0
        %594 = vmatmul.mubr.bf16.gmra.mrb[0].mxu0 %v448
        %v595 = vpop.f32.mrb[0].mxu0
        %v596 = vadd.f32 0.0, %v595
        %v597 = vpop.f32.mrb[0].mxu0
        %v598 = vpop.f32.mrb[0].mxu0
        %v599 = vadd.f32 0.0, %v598
        %v600 = vpop.f32.mrb[0].mxu0
        %601 = vdwg.mxu0
        %v602 = vadd.f32 %v361, %v540
        %v603 = vadd.f32 %v362, %v543
        %v604 = vadd.f32 %v363, %v548
        %v605 = vadd.f32 %v364, %v551
        %v606 = vadd.f32 %v365, %v556
        %v607 = vadd.f32 %v366, %v559
        %v608 = vadd.f32 %v367, %v564
        %v609 = vadd.f32 %v368, %v567
        %v610 = vadd.f32 %v369, %v572
        %v611 = vadd.f32 %v370, %v575
        %v612 = vadd.f32 %v371, %v580
        %v613 = vadd.f32 %v372, %v583
        %v614 = vadd.f32 %v373, %v588
        %v615 = vadd.f32 %v374, %v591
        %v616 = vadd.f32 %v375, %v596
        %v617 = vadd.f32 %v376, %v599
        %618 = vst [vmem:[#allocation2] sm:$0xff] %v602
        %619 = vst [vmem:[#allocation2 + $0x8] sm:$0xff] %v603
        %620 = vst [vmem:[#allocation2 + $0x10] sm:$0xff] %v604
        %621 = vst [vmem:[#allocation2 + $0x18] sm:$0xff] %v605
        %622 = vst [vmem:[#allocation2 + $0x20] sm:$0xff] %v606
        %623 = vst [vmem:[#allocation2 + $0x28] sm:$0xff] %v607
        %624 = vst [vmem:[#allocation2 + $0x30] sm:$0xff] %v608
        %625 = vst [vmem:[#allocation2 + $0x38] sm:$0xff] %v609
        %626 = vst [vmem:[#allocation2 + $0x40] sm:$0xff] %v610
        %627 = vst [vmem:[#allocation2 + $0x48] sm:$0xff] %v611
        %628 = vst [vmem:[#allocation2 + $0x50] sm:$0xff] %v612
        %629 = vst [vmem:[#allocation2 + $0x58] sm:$0xff] %v613
        %630 = vst [vmem:[#allocation2 + $0x60] sm:$0xff] %v614
        %631 = vst [vmem:[#allocation2 + $0x68] sm:$0xff] %v615
        %632 = vst [vmem:[#allocation2 + $0x70] sm:$0xff] %v616
        %633 = vst [vmem:[#allocation2 + $0x78] sm:$0xff] %v617
        %p634 = scmp.eq.s32.totalorder %s20, 2
        // Predicated region
        $region82: #{shipgnn_forward.5} parent=72 // pred_check
          %p635 = pneg %p634
        $region83: #{shipgnn_forward.5} parent=72 // pred_check_branch
          %637 = sbr.rel (%p635) target = $region85
        $region84: #{shipgnn_forward.5} parent=72 // pred_region
          %v638 = vld [vmem:[#allocation2] sm:$0xff]
          %v639 = vld [vmem:[#allocation2 + $0x8] sm:$0xff]
          %v640 = vld [vmem:[#allocation2 + $0x10] sm:$0xff]
          %v641 = vld [vmem:[#allocation2 + $0x18] sm:$0xff]
          %v642 = vld [vmem:[#allocation2 + $0x20] sm:$0xff]
          %v643 = vld [vmem:[#allocation2 + $0x28] sm:$0xff]
          %v644 = vld [vmem:[#allocation2 + $0x30] sm:$0xff]
          %v645 = vld [vmem:[#allocation2 + $0x38] sm:$0xff]
          %v646 = vld [vmem:[#allocation2 + $0x40] sm:$0xff]
          %v647 = vld [vmem:[#allocation2 + $0x48] sm:$0xff]
          %v648 = vld [vmem:[#allocation2 + $0x50] sm:$0xff]
          %v649 = vld [vmem:[#allocation2 + $0x58] sm:$0xff]
          %v650 = vld [vmem:[#allocation2 + $0x60] sm:$0xff]
          %v651 = vld [vmem:[#allocation2 + $0x68] sm:$0xff]
          %v652 = vld [vmem:[#allocation2 + $0x70] sm:$0xff]
          %v653 = vld [vmem:[#allocation2 + $0x78] sm:$0xff]
          %v654 = vld [vmem:[%s2] sm:$0x1]
          %v656 = vlaneseq
          %v657 = vshrl.u32 %v656, 7
          %v658 = vsub.s32 0, %v657
          %v659 = vrot.slane %v654, %v658
          %v661 = vadd.f32 %v638, %v659
          %v662 = vadd.f32 %v639, %v659
          %v663 = vadd.f32 %v640, %v659
          %v664 = vadd.f32 %v641, %v659
          %v665 = vadd.f32 %v642, %v659
          %v666 = vadd.f32 %v643, %v659
          %v667 = vadd.f32 %v644, %v659
          %v668 = vadd.f32 %v645, %v659
          %v669 = vadd.f32 %v646, %v659
          %v670 = vadd.f32 %v647, %v659
          %v671 = vadd.f32 %v648, %v659
          %v672 = vadd.f32 %v649, %v659
          %v673 = vadd.f32 %v650, %v659
          %v674 = vadd.f32 %v651, %v659
          %v675 = vadd.f32 %v652, %v659
          %v676 = vadd.f32 %v653, %v659
          %v677 = vmax.f32 %v661, 0.0
          %v678 = vmax.f32 %v662, 0.0
          %v679 = vmax.f32 %v663, 0.0
          %v680 = vmax.f32 %v664, 0.0
          %v681 = vmax.f32 %v665, 0.0
          %v682 = vmax.f32 %v666, 0.0
          %v683 = vmax.f32 %v667, 0.0
          %v684 = vmax.f32 %v668, 0.0
          %v685 = vmax.f32 %v669, 0.0
          %v686 = vmax.f32 %v670, 0.0
          %v687 = vmax.f32 %v671, 0.0
          %v688 = vmax.f32 %v672, 0.0
          %v689 = vmax.f32 %v673, 0.0
          %v690 = vmax.f32 %v674, 0.0
          %v691 = vmax.f32 %v675, 0.0
          %v692 = vmax.f32 %v676, 0.0
          %v693 = vld [vmem:[%s3] sm:$0xff]
          %v694 = vld [vmem:[%s3 + $0x8] sm:$0xff]
          %v695 = vld [vmem:[%s3 + $0x10] sm:$0xff]
          %v696 = vld [vmem:[%s3 + $0x18] sm:$0xff]
          %v697 = vld [vmem:[%s3 + $0x20] sm:$0xff]
          %v698 = vld [vmem:[%s3 + $0x28] sm:$0xff]
          %v699 = vld [vmem:[%s3 + $0x30] sm:$0xff]
          %v700 = vld [vmem:[%s3 + $0x38] sm:$0xff]
          %v701 = vld [vmem:[%s3 + $0x40] sm:$0xff]
          %v702 = vld [vmem:[%s3 + $0x48] sm:$0xff]
          %v703 = vld [vmem:[%s3 + $0x50] sm:$0xff]
          %v704 = vld [vmem:[%s3 + $0x58] sm:$0xff]
          %v705 = vld [vmem:[%s3 + $0x60] sm:$0xff]
          %v706 = vld [vmem:[%s3 + $0x68] sm:$0xff]
          %v707 = vld [vmem:[%s3 + $0x70] sm:$0xff]
          %v708 = vld [vmem:[%s3 + $0x78] sm:$0xff]
          %709 = vmatprep.subr.mxu0 0.0
          %710 = vmatpush1.msra.mxu0 %v693
          %711 = vmatprep.subr.mxu0 0.0
          %712 = vmatpush1.msra.mxu0 %v694
          %713 = vmatprep.subr.mxu0 0.0
          %714 = vmatpush1.msra.mxu0 %v695
          %715 = vmatprep.subr.mxu0 0.0
          %716 = vmatpush1.msra.mxu0 %v696
          %717 = vmatprep.subr.mxu0 0.0
          %718 = vmatpush1.msra.mxu0 %v697
          %719 = vmatprep.subr.mxu0 0.0
          %720 = vmatpush1.msra.mxu0 %v698
          %721 = vmatprep.subr.mxu0 0.0
          %722 = vmatpush1.msra.mxu0 %v699
          %723 = vmatprep.subr.mxu0 0.0
          %724 = vmatpush1.msra.mxu0 %v700
          %725 = vmatprep.subr.mxu0 0.0
          %726 = vmatpush1.msra.mxu0 %v701
          %727 = vmatprep.subr.mxu0 0.0
          %728 = vmatpush1.msra.mxu0 %v702
          %729 = vmatprep.subr.mxu0 0.0
          %730 = vmatpush1.msra.mxu0 %v703
          %731 = vmatprep.subr.mxu0 0.0
          %732 = vmatpush1.msra.mxu0 %v704
          %733 = vmatprep.subr.mxu0 0.0
          %734 = vmatpush1.msra.mxu0 %v705
          %735 = vmatprep.subr.mxu0 0.0
          %736 = vmatpush1.msra.mxu0 %v706
          %737 = vmatprep.subr.mxu0 0.0
          %738 = vmatpush1.msra.mxu0 %v707
          %739 = vmatprep.subr.mxu0 0.0
          %740 = vmatpush1.msra.mxu0 %v708
          %741 = vmatprep.subr.mxu0 0.0
          %742 = vmatpush1.msra.mxu0 0.0
          %743 = vmatprep.subr.mxu0 0.0
          %744 = vmatpush1.msra.mxu0 0.0
          %745 = vmatprep.subr.mxu0 0.0
          %746 = vmatpush1.msra.mxu0 0.0
          %747 = vmatprep.subr.mxu0 0.0
          %748 = vmatpush1.msra.mxu0 0.0
          %749 = vmatprep.subr.mxu0 0.0
          %750 = vmatpush1.msra.mxu0 0.0
          %751 = vmatprep.subr.mxu0 0.0
          %752 = vmatpush1.msra.mxu0 0.0
          %753 = vmatprep.subr.mxu0 0.0
          %754 = vmatpush1.msra.mxu0 0.0
          %755 = vmatprep.subr.mxu0 0.0
          %756 = vmatpush1.msra.mxu0 0.0
          %757 = vmatprep.subr.mxu0 0.0
          %758 = vmatpush1.msra.mxu0 0.0
          %759 = vmatprep.subr.mxu0 0.0
          %760 = vmatpush1.msra.mxu0 0.0
          %761 = vmatprep.subr.mxu0 0.0
          %762 = vmatpush1.msra.mxu0 0.0
          %763 = vmatprep.subr.mxu0 0.0
          %764 = vmatpush1.msra.mxu0 0.0
          %765 = vmatprep.subr.mxu0 0.0
          %766 = vmatpush1.msra.mxu0 0.0
          %767 = vmatprep.subr.mxu0 0.0
          %768 = vmatpush1.msra.mxu0 0.0
          %769 = vmatprep.subr.mxu0 0.0
          %770 = vmatpush1.msra.mxu0 0.0
          %771 = vmatprep.subr.mxu0 0.0
          %772 = vmatpush1.msra.mxu0 0.0
          %773 = vmatprep.mubr.f32.mxu0 0.0
          %774 = vmatmul.mubr.f32.gmra.mrb[0].mxu0 %v677
          %v775 = vpop.f32.mrb[0].mxu0
          %v776 = vadd.f32 0.0, %v775
          %v777 = vpop.f32.mrb[0].mxu0
          %778 = vmatprep.mubr.f32.mxu0 0.0
          %779 = vmatmul.mubr.f32.gmra.mrb[0].mxu0 %v678
          %v780 = vpop.f32.mrb[0].mxu0
          %v781 = vadd.f32 0.0, %v780
          %v782 = vpop.f32.mrb[0].mxu0
          %783 = vmatprep.mubr.f32.mxu0 0.0
          %784 = vmatmul.mubr.f32.gmra.mrb[0].mxu0 %v679
          %v785 = vpop.f32.mrb[0].mxu0
          %v786 = vadd.f32 0.0, %v785
          %v787 = vpop.f32.mrb[0].mxu0
          %788 = vmatprep.mubr.f32.mxu0 0.0
          %789 = vmatmul.mubr.f32.gmra.mrb[0].mxu0 %v680
          %v790 = vpop.f32.mrb[0].mxu0
          %v791 = vadd.f32 0.0, %v790
          %v792 = vpop.f32.mrb[0].mxu0
          %793 = vmatprep.mubr.f32.mxu0 0.0
          %794 = vmatmul.mubr.f32.gmra.mrb[0].mxu0 %v681
          %v795 = vpop.f32.mrb[0].mxu0
          %v796 = vadd.f32 0.0, %v795
          %v797 = vpop.f32.mrb[0].mxu0
          %798 = vmatprep.mubr.f32.mxu0 0.0
          %799 = vmatmul.mubr.f32.gmra.mrb[0].mxu0 %v682
          %v800 = vpop.f32.mrb[0].mxu0
          %v801 = vadd.f32 0.0, %v800
          %v802 = vpop.f32.mrb[0].mxu0
          %803 = vmatprep.mubr.f32.mxu0 0.0
          %804 = vmatmul.mubr.f32.gmra.mrb[0].mxu0 %v683
          %v805 = vpop.f32.mrb[0].mxu0
          %v806 = vadd.f32 0.0, %v805
          %v807 = vpop.f32.mrb[0].mxu0
          %808 = vmatprep.mubr.f32.mxu0 0.0
          %809 = vmatmul.mubr.f32.gmra.mrb[0].mxu0 %v684
          %v810 = vpop.f32.mrb[0].mxu0
          %v811 = vadd.f32 0.0, %v810
          %v812 = vpop.f32.mrb[0].mxu0
          %813 = vmatprep.mubr.f32.mxu0 0.0
          %814 = vmatmul.mubr.f32.gmra.mrb[0].mxu0 %v685
          %v815 = vpop.f32.mrb[0].mxu0
          %v816 = vadd.f32 0.0, %v815
          %v817 = vpop.f32.mrb[0].mxu0
          %818 = vmatprep.mubr.f32.mxu0 0.0
          %819 = vmatmul.mubr.f32.gmra.mrb[0].mxu0 %v686
          %v820 = vpop.f32.mrb[0].mxu0
          %v821 = vadd.f32 0.0, %v820
          %v822 = vpop.f32.mrb[0].mxu0
          %823 = vmatprep.mubr.f32.mxu0 0.0
          %824 = vmatmul.mubr.f32.gmra.mrb[0].mxu0 %v687
          %v825 = vpop.f32.mrb[0].mxu0
          %v826 = vadd.f32 0.0, %v825
          %v827 = vpop.f32.mrb[0].mxu0
          %828 = vmatprep.mubr.f32.mxu0 0.0
          %829 = vmatmul.mubr.f32.gmra.mrb[0].mxu0 %v688
          %v830 = vpop.f32.mrb[0].mxu0
          %v831 = vadd.f32 0.0, %v830
          %v832 = vpop.f32.mrb[0].mxu0
          %833 = vmatprep.mubr.f32.mxu0 0.0
          %834 = vmatmul.mubr.f32.gmra.mrb[0].mxu0 %v689
          %v835 = vpop.f32.mrb[0].mxu0
          %v836 = vadd.f32 0.0, %v835
          %v837 = vpop.f32.mrb[0].mxu0
          %838 = vmatprep.mubr.f32.mxu0 0.0
          %839 = vmatmul.mubr.f32.gmra.mrb[0].mxu0 %v690
          %v840 = vpop.f32.mrb[0].mxu0
          %v841 = vadd.f32 0.0, %v840
          %v842 = vpop.f32.mrb[0].mxu0
          %843 = vmatprep.mubr.f32.mxu0 0.0
          %844 = vmatmul.mubr.f32.gmra.mrb[0].mxu0 %v691
          %v845 = vpop.f32.mrb[0].mxu0
          %v846 = vadd.f32 0.0, %v845
          %v847 = vpop.f32.mrb[0].mxu0
          %848 = vmatprep.mubr.f32.mxu0 0.0
          %849 = vmatmul.mubr.f32.gmra.mrb[0].mxu0 %v692
          %v850 = vpop.f32.mrb[0].mxu0
          %v851 = vadd.f32 0.0, %v850
          %v852 = vpop.f32.mrb[0].mxu0
          %853 = vdwg.mxu0
          %v854 = vpack.c.bf16 %v781, %v776
          %v855 = vpack.c.bf16 %v791, %v786
          %v856 = vpack.c.bf16 %v801, %v796
          %v857 = vpack.c.bf16 %v811, %v806
          %v858 = vpack.c.bf16 %v821, %v816
          %v859 = vpack.c.bf16 %v831, %v826
          %v860 = vpack.c.bf16 %v841, %v836
          %v861 = vpack.c.bf16 %v851, %v846
          %v870 = vunpack.c.l.b16 %v854
          %v871 = vunpack.c.h.b16 %v854
          %v872 = vunpack.c.l.b16 %v855
          %v873 = vunpack.c.h.b16 %v855
          %v874 = vunpack.c.l.b16 %v856
          %v875 = vunpack.c.h.b16 %v856
          %v876 = vunpack.c.l.b16 %v857
          %v877 = vunpack.c.h.b16 %v857
          %v878 = vunpack.c.l.b16 %v858
          %v879 = vunpack.c.h.b16 %v858
          %v880 = vunpack.c.l.b16 %v859
          %v881 = vunpack.c.h.b16 %v859
          %v882 = vunpack.c.l.b16 %v860
          %v883 = vunpack.c.h.b16 %v860
          %v884 = vunpack.c.l.b16 %v861
          %v885 = vunpack.c.h.b16 %v861
          %v886 = vpack.c.b16 %v870, %v870
          %v887 = vpack.c.b16 %v871, %v871
          %v888 = vpack.c.b16 %v872, %v872
          %v889 = vpack.c.b16 %v873, %v873
          %v890 = vpack.c.b16 %v874, %v874
          %v891 = vpack.c.b16 %v875, %v875
          %v892 = vpack.c.b16 %v876, %v876
          %v893 = vpack.c.b16 %v877, %v877
          %v894 = vpack.c.b16 %v878, %v878
          %v895 = vpack.c.b16 %v879, %v879
          %v896 = vpack.c.b16 %v880, %v880
          %v897 = vpack.c.b16 %v881, %v881
          %v898 = vpack.c.b16 %v882, %v882
          %v899 = vpack.c.b16 %v883, %v883
          %v900 = vpack.c.b16 %v884, %v884
          %v901 = vpack.c.b16 %v885, %v885
          %918 = vst [vmem:[%s338] sm:$0xf] %v886
          %919 = vst [vmem:[%s338 + $0x4] sm:$0xf] %v887
          %920 = vst [vmem:[%s338 + $0x8] sm:$0xf] %v888
          %921 = vst [vmem:[%s338 + $0xc] sm:$0xf] %v889
          %922 = vst [vmem:[%s338 + $0x10] sm:$0xf] %v890
          %923 = vst [vmem:[%s338 + $0x14] sm:$0xf] %v891
          %924 = vst [vmem:[%s338 + $0x18] sm:$0xf] %v892
          %925 = vst [vmem:[%s338 + $0x1c] sm:$0xf] %v893
          %926 = vst [vmem:[%s338 + $0x20] sm:$0xf] %v894
          %927 = vst [vmem:[%s338 + $0x24] sm:$0xf] %v895
          %928 = vst [vmem:[%s338 + $0x28] sm:$0xf] %v896
          %929 = vst [vmem:[%s338 + $0x2c] sm:$0xf] %v897
          %930 = vst [vmem:[%s338 + $0x30] sm:$0xf] %v898
          %931 = vst [vmem:[%s338 + $0x34] sm:$0xf] %v899
          %932 = vst [vmem:[%s338 + $0x38] sm:$0xf] %v900
          %933 = vst [vmem:[%s338 + $0x3c] sm:$0xf] %v901
        $region85: #{shipgnn_forward.5} parent=72 // pred_fallthru
          _
        %s934 = smul.u32 16, %s19
        %p935 = scmp.lt.s32.totalorder %s934, 47
        %s936 = scalar_select %p935, %s934, 47
        %s937 = smul.addr %s936, 4
        %s938 = scalar_lea.vmem %s4, %s937
        // Predicated region
        $region86: #{shipgnn_forward.5} parent=72 // pred_check
          %p939 = pneg %p141
        $region87: #{shipgnn_forward.5} parent=72 // pred_check_branch
          %941 = sbr.rel (%p939) target = $region89
        $region88: #{shipgnn_forward.5} parent=72 // pred_region
          %s942 = smul.u32 16, %s19
        $region89: #{shipgnn_forward.5} parent=72 // pred_fallthru
          _
      $region73: #{shipgnn_forward.5} parent=5 // pred_fallthru
        _
      %p943 = scmp.le.s32.totalorder 2, %s10
      // Predicated region
      $region90: #{shipgnn_forward.5} parent=5 // pred_check
        %p944 = pneg %p943
      $region91: #{shipgnn_forward.5} parent=5 // pred_check_branch
        %946 = sbr.rel (%p944) target = $region93
      $region92: #{shipgnn_forward.5} parent=5 // pred_region
        %s947 = ssub.s32 %s10, 2
        // Predicated region
        $region94: #{shipgnn_forward.5} parent=92 // pred_check
          %p948 = pneg %p147
        $region95: #{shipgnn_forward.5} parent=92 // pred_check_branch
          %950 = sbr.rel (%p948) target = $region97
        $region96: #{shipgnn_forward.5} parent=92 // pred_region
          %s951 = smul.u32 16, %s21
          %p952 = scmp.lt.s32.totalorder %s951, 47
          %s953 = scalar_select %p952, %s951, 47
          %s954 = smul.addr %s953, 4
          %s955 = scalar_lea.vmem %s4, %s954
        $region97: #{shipgnn_forward.5} parent=92 // pred_fallthru
          _
      $region93: #{shipgnn_forward.5} parent=5 // pred_fallthru
        _
    $region6: #{shipgnn_forward.5} parent=1 // loop_footer
      %s14 = sadd.s32 1, %s10
    $region7: #{shipgnn_forward.5} parent=1 // loop_footer_branch
      %9 = sbr.rel target = $region3
    $region8: #{shipgnn_forward.5} parent=1 // loop_exit
      _

// kernel: shipgnn_forward.7
$region0: #{shipgnn_forward.7}
  #allocation0 [shape = 'u32[]', space=smem, size = 0x4, offset = 0x4, fixed_abs, tag = 'smem constant byte address 0x4 - core index']
  #allocation1 [shape = 'u32[144,128]{1,0:T(1,128)}', space=vmem, size = 0x12000, scoped, tag = 'internal scratch']
  #allocation2 [shape = 'f32[128,128]{1,0:T(8,128)}', space=vmem, size = 0x10000, scoped, tag = 'scratch operand']
  %s0 = inlined_call_operand.vmem [shape: bf16[384,384], index: 0, kind: input, shape index: {}]
  %s1 = inlined_call_operand.vmem [shape: bf16[384,128], index: 1, kind: input, shape index: {}]
  %s2 = inlined_call_operand.vmem [shape: f32[1,128], index: 2, kind: input, shape index: {}]
  %s3 = inlined_call_operand.vmem [shape: f32[128,128], index: 3, kind: input, shape index: {}]
  %s4 = inlined_call_operand.vmem [shape: f32[1,128], index: 4, kind: input, shape index: {}]
  %s5 = inlined_call_operand.vmem [shape: f32[128,128], index: 5, kind: input, shape index: {}]
  %s6 = inlined_call_operand.vmem [shape: f32[1,128], index: 6, kind: input, shape index: {}]
  %s7 = inlined_call_operand.vmem [shape: f32[384,128], index: 7, kind: output, shape index: {0}]
  %s8 = inlined_call_operand.vmem [shape: f32[384,128], index: 8, kind: output, shape index: {1}]
  %9 = xla_tuple %s7, %s8
  %s10 = sld [smem:[#allocation0]]
  $region118: #{shipgnn_forward.7} parent=0
    _
  %s12 = ssub.s32 1, %s10
  %s13 = scalar_select 0, %s12, %s10
  $region1: #{shipgnn_forward.7} parent=0
    #allocation3 [shape = 'u8[65536]{0}', space=vmem, size = 0x10000, scoped, tag = 'input window, operand 0']
    loop: start=0, step=1, limit=11
    $region2: #{shipgnn_forward.7} parent=1 // loop_pre_header
      _
    $region3: #{shipgnn_forward.7} parent=1 // loop_header
      %s15 = sphi 0, %s19
      %p16 = scmp.ge.s32.totalorder %s15, 11
      %s22 = sphi 0, %s34
      %s23 = sphi 0, %s30
      %s24 = sphi 0, %s22
      %s25 = sphi 0, %s23
      %s26 = sphi 0, %s24
      %s27 = sphi 0, %s25
      %s39 = sphi 0, %s41
      %s42 = sphi 0, %s39
      %s43 = sphi 0, %s42
      %s59 = sphi 0, %s43
      %s65 = sphi 0, %s67
      %s68 = sphi 0, %s65
      %s69 = sphi 0, %s68
      %s85 = sphi 0, %s69
      %s89 = sphi 0, %s89
      %s91 = sphi 0, %s89
      %s92 = sphi 0, %s91
      %s106 = sphi 0, %s92
      %s110 = sphi 0, %s110
      %s112 = sphi 0, %s110
      %s113 = sphi 0, %s112
      %s127 = sphi 0, %s113
      %s131 = sphi 0, %s131
      %s133 = sphi 0, %s131
      %s134 = sphi 0, %s133
      %s148 = sphi 0, %s134
      %s152 = sphi 0, %s152
      %s154 = sphi 0, %s152
      %s155 = sphi 0, %s154
      %s169 = sphi 0, %s155
      %s173 = sphi 0, %s173
      %s175 = sphi 0, %s173
      %s176 = sphi 0, %s175
      %s190 = sphi 0, %s176
      %s196 = sphi 0, %s198
      %s199 = sphi 0, %s196
      %s200 = sphi 0, %s199
      %s216 = sphi 0, %s200
      %s222 = sphi 0, %s224
      %s225 = sphi 0, %s222
      %s226 = sphi 0, %s225
      %s242 = sphi 0, %s226
    $region4: #{shipgnn_forward.7} parent=1 // loop_header_branch
      %18 = sbr.rel (%p16) target = $region8
    $region5: #{shipgnn_forward.7} parent=1 // loop_body
      %s20 = ssub.s32 %s15, 1
      %s21 = ssub.s32 %s15, 2
      %s28 = sadd.s32 1, %s23
      %p29 = scmp.ge.s32.totalorder %s28, 3
      %s30 = scalar_select %p29, 0, %s28
      %s31 = sadd.s32 1, %s22
      %s32 = scalar_select %p29, %s31, %s22
      %p33 = scmp.ge.s32.totalorder %s32, 3
      %s34 = scalar_select %p33, 0, %s32
      %s35 = ssub.s32 %s22, %s34
      %s36 = ssub.s32 %s23, %s30
      %s37 = sor.u32 %s35, %s36
      %p38 = scmp.eq.s32.totalorder %s37, 0
      %s40 = sadd.s32 %s39, 1
      %s41 = scalar_select %p38, %s39, %s40
      %p44 = pneg %p38
      %p45 = scmp.eq.s32.totalorder %s15, 8
      %p46 = por %p44, %p45
      %p47 = scmp.ne.s32.totalorder %s39, %s42
      %p48 = scmp.eq.s32.totalorder %s15, 0
      %p49 = por %p47, %p48
      %p50 = scmp.ne.s32.totalorder %s39, %s42
      %p51 = scmp.eq.s32.totalorder %s20, 8
      %p52 = por %p50, %p51
      %p53 = scmp.ne.s32.totalorder %s42, %s43
      %p54 = scmp.eq.s32.totalorder %s20, 0
      %p55 = por %p53, %p54
      %p56 = scmp.ne.s32.totalorder %s42, %s43
      %p57 = scmp.eq.s32.totalorder %s21, 8
      %p58 = por %p56, %p57
      %p60 = scmp.ne.s32.totalorder %s43, %s59
      %p61 = scmp.eq.s32.totalorder %s21, 0
      %p62 = por %p60, %p61
      %s63 = ssub.s32 %s23, %s30
      %p64 = scmp.eq.s32.totalorder %s63, 0
      %s66 = sadd.s32 %s65, 1
      %s67 = scalar_select %p64, %s65, %s66
      %p70 = pneg %p64
      %p71 = scmp.eq.s32.totalorder %s15, 8
      %p72 = por %p70, %p71
      %p73 = scmp.ne.s32.totalorder %s65, %s68
      %p74 = scmp.eq.s32.totalorder %s15, 0
      %p75 = por %p73, %p74
      %p76 = scmp.ne.s32.totalorder %s65, %s68
      %p77 = scmp.eq.s32.totalorder %s20, 8
      %p78 = por %p76, %p77
      %p79 = scmp.ne.s32.totalorder %s68, %s69
      %p80 = scmp.eq.s32.totalorder %s20, 0
      %p81 = por %p79, %p80
      %p82 = scmp.ne.s32.totalorder %s68, %s69
      %p83 = scmp.eq.s32.totalorder %s21, 8
      %p84 = por %p82, %p83
      %p86 = scmp.ne.s32.totalorder %s69, %s85
      %p87 = scmp.eq.s32.totalorder %s21, 0
      %p88 = por %p86, %p87
      %s90 = sadd.s32 %s89, 1
      %p93 = scmp.eq.s32.totalorder %s15, 8
      %p94 = scmp.ne.s32.totalorder %s89, %s91
      %p95 = scmp.eq.s32.totalorder %s15, 0
      %p96 = por %p94, %p95
      %p97 = scmp.ne.s32.totalorder %s89, %s91
      %p98 = scmp.eq.s32.totalorder %s20, 8
      %p99 = por %p97, %p98
      %p100 = scmp.ne.s32.totalorder %s91, %s92
      %p101 = scmp.eq.s32.totalorder %s20, 0
      %p102 = por %p100, %p101
      %p103 = scmp.ne.s32.totalorder %s91, %s92
      %p104 = scmp.eq.s32.totalorder %s21, 8
      %p105 = por %p103, %p104
      %p107 = scmp.ne.s32.totalorder %s92, %s106
      %p108 = scmp.eq.s32.totalorder %s21, 0
      %p109 = por %p107, %p108
      %s111 = sadd.s32 %s110, 1
      %p114 = scmp.eq.s32.totalorder %s15, 8
      %p115 = scmp.ne.s32.totalorder %s110, %s112
      %p116 = scmp.eq.s32.totalorder %s15, 0
      %p117 = por %p115, %p116
      %p118 = scmp.ne.s32.totalorder %s110, %s112
      %p119 = scmp.eq.s32.totalorder %s20, 8
      %p120 = por %p118, %p119
      %p121 = scmp.ne.s32.totalorder %s112, %s113
      %p122 = scmp.eq.s32.totalorder %s20, 0
      %p123 = por %p121, %p122
      %p124 = scmp.ne.s32.totalorder %s112, %s113
      %p125 = scmp.eq.s32.totalorder %s21, 8
      %p126 = por %p124, %p125
      %p128 = scmp.ne.s32.totalorder %s113, %s127
      %p129 = scmp.eq.s32.totalorder %s21, 0
      %p130 = por %p128, %p129
      %s132 = sadd.s32 %s131, 1
      %p135 = scmp.eq.s32.totalorder %s15, 8
      %p136 = scmp.ne.s32.totalorder %s131, %s133
      %p137 = scmp.eq.s32.totalorder %s15, 0
      %p138 = por %p136, %p137
      %p139 = scmp.ne.s32.totalorder %s131, %s133
      %p140 = scmp.eq.s32.totalorder %s20, 8
      %p141 = por %p139, %p140
      %p142 = scmp.ne.s32.totalorder %s133, %s134
      %p143 = scmp.eq.s32.totalorder %s20, 0
      %p144 = por %p142, %p143
      %p145 = scmp.ne.s32.totalorder %s133, %s134
      %p146 = scmp.eq.s32.totalorder %s21, 8
      %p147 = por %p145, %p146
      %p149 = scmp.ne.s32.totalorder %s134, %s148
      %p150 = scmp.eq.s32.totalorder %s21, 0
      %p151 = por %p149, %p150
      %s153 = sadd.s32 %s152, 1
      %p156 = scmp.eq.s32.totalorder %s15, 8
      %p157 = scmp.ne.s32.totalorder %s152, %s154
      %p158 = scmp.eq.s32.totalorder %s15, 0
      %p159 = por %p157, %p158
      %p160 = scmp.ne.s32.totalorder %s152, %s154
      %p161 = scmp.eq.s32.totalorder %s20, 8
      %p162 = por %p160, %p161
      %p163 = scmp.ne.s32.totalorder %s154, %s155
      %p164 = scmp.eq.s32.totalorder %s20, 0
      %p165 = por %p163, %p164
      %p166 = scmp.ne.s32.totalorder %s154, %s155
      %p167 = scmp.eq.s32.totalorder %s21, 8
      %p168 = por %p166, %p167
      %p170 = scmp.ne.s32.totalorder %s155, %s169
      %p171 = scmp.eq.s32.totalorder %s21, 0
      %p172 = por %p170, %p171
      %s174 = sadd.s32 %s173, 1
      %p177 = scmp.eq.s32.totalorder %s15, 8
      %p178 = scmp.ne.s32.totalorder %s173, %s175
      %p179 = scmp.eq.s32.totalorder %s15, 0
      %p180 = por %p178, %p179
      %p181 = scmp.ne.s32.totalorder %s173, %s175
      %p182 = scmp.eq.s32.totalorder %s20, 8
      %p183 = por %p181, %p182
      %p184 = scmp.ne.s32.totalorder %s175, %s176
      %p185 = scmp.eq.s32.totalorder %s20, 0
      %p186 = por %p184, %p185
      %p187 = scmp.ne.s32.totalorder %s175, %s176
      %p188 = scmp.eq.s32.totalorder %s21, 8
      %p189 = por %p187, %p188
      %p191 = scmp.ne.s32.totalorder %s176, %s190
      %p192 = scmp.eq.s32.totalorder %s21, 0
      %p193 = por %p191, %p192
      %s194 = ssub.s32 %s22, %s34
      %p195 = scmp.eq.s32.totalorder %s194, 0
      %s197 = sadd.s32 %s196, 1
      %s198 = scalar_select %p195, %s196, %s197
      %p201 = pneg %p195
      %p202 = scmp.eq.s32.totalorder %s15, 8
      %p203 = por %p201, %p202
      %p204 = scmp.ne.s32.totalorder %s196, %s199
      %p205 = scmp.eq.s32.totalorder %s15, 0
      %p206 = por %p204, %p205
      %p207 = scmp.ne.s32.totalorder %s196, %s199
      %p208 = scmp.eq.s32.totalorder %s20, 8
      %p209 = por %p207, %p208
      %p210 = scmp.ne.s32.totalorder %s199, %s200
      %p211 = scmp.eq.s32.totalorder %s20, 0
      %p212 = por %p210, %p211
      %p213 = scmp.ne.s32.totalorder %s199, %s200
      %p214 = scmp.eq.s32.totalorder %s21, 8
      %p215 = por %p213, %p214
      %p217 = scmp.ne.s32.totalorder %s200, %s216
      %p218 = scmp.eq.s32.totalorder %s21, 0
      %p219 = por %p217, %p218
      %s220 = ssub.s32 %s22, %s34
      %p221 = scmp.eq.s32.totalorder %s220, 0
      %s223 = sadd.s32 %s222, 1
      %s224 = scalar_select %p221, %s222, %s223
      %p227 = pneg %p221
      %p228 = scmp.eq.s32.totalorder %s15, 8
      %p229 = por %p227, %p228
      %p230 = scmp.ne.s32.totalorder %s222, %s225
      %p231 = scmp.eq.s32.totalorder %s15, 0
      %p232 = por %p230, %p231
      %p233 = scmp.ne.s32.totalorder %s222, %s225
      %p234 = scmp.eq.s32.totalorder %s20, 8
      %p235 = por %p233, %p234
      %p236 = scmp.ne.s32.totalorder %s225, %s226
      %p237 = scmp.eq.s32.totalorder %s20, 0
      %p238 = por %p236, %p237
      %p239 = scmp.ne.s32.totalorder %s225, %s226
      %p240 = scmp.eq.s32.totalorder %s21, 8
      %p241 = por %p239, %p240
      %p243 = scmp.ne.s32.totalorder %s226, %s242
      %p244 = scmp.eq.s32.totalorder %s21, 0
      %p245 = por %p243, %p244
      %p246 = scmp.le.s32.totalorder 1, %s15
      %p247 = scmp.lt.s32.totalorder %s15, 10
      %p248 = pnand %p246, %p247
      %p249 = pneg %p248
      // Predicated region
      $region9: #{shipgnn_forward.7} parent=5 // pred_check
        _
      $region10: #{shipgnn_forward.7} parent=5 // pred_check_branch
        %251 = sbr.rel (%p248) target = $region12
      $region11: #{shipgnn_forward.7} parent=5 // pred_region
        %s252 = ssub.s32 %s15, 1
        // Predicated region
        $region13: #{shipgnn_forward.7} parent=11 // pred_check
          %p253 = pneg %p102
        $region14: #{shipgnn_forward.7} parent=11 // pred_check_branch
          %255 = sbr.rel (%p253) target = $region16
        $region15: #{shipgnn_forward.7} parent=11 // pred_region
          _
        $region16: #{shipgnn_forward.7} parent=11 // pred_fallthru
          _
        // Predicated region
        $region17: #{shipgnn_forward.7} parent=11 // pred_check
          %p256 = pneg %p123
        $region18: #{shipgnn_forward.7} parent=11 // pred_check_branch
          %258 = sbr.rel (%p256) target = $region20
        $region19: #{shipgnn_forward.7} parent=11 // pred_region
          _
        $region20: #{shipgnn_forward.7} parent=11 // pred_fallthru
          _
        // Predicated region
        $region21: #{shipgnn_forward.7} parent=11 // pred_check
          %p259 = pneg %p144
        $region22: #{shipgnn_forward.7} parent=11 // pred_check_branch
          %261 = sbr.rel (%p259) target = $region24
        $region23: #{shipgnn_forward.7} parent=11 // pred_region
          _
        $region24: #{shipgnn_forward.7} parent=11 // pred_fallthru
          _
        // Predicated region
        $region25: #{shipgnn_forward.7} parent=11 // pred_check
          %p262 = pneg %p165
        $region26: #{shipgnn_forward.7} parent=11 // pred_check_branch
          %264 = sbr.rel (%p262) target = $region28
        $region27: #{shipgnn_forward.7} parent=11 // pred_region
          _
        $region28: #{shipgnn_forward.7} parent=11 // pred_fallthru
          _
        // Predicated region
        $region29: #{shipgnn_forward.7} parent=11 // pred_check
          %p265 = pneg %p186
        $region30: #{shipgnn_forward.7} parent=11 // pred_check_branch
          %267 = sbr.rel (%p265) target = $region32
        $region31: #{shipgnn_forward.7} parent=11 // pred_region
          _
        $region32: #{shipgnn_forward.7} parent=11 // pred_fallthru
          _
      $region12: #{shipgnn_forward.7} parent=5 // pred_fallthru
        _
      %p268 = scmp.lt.s32.totalorder %s15, 9
      // Predicated region
      $region33: #{shipgnn_forward.7} parent=5 // pred_check
        %p269 = pneg %p268
      $region34: #{shipgnn_forward.7} parent=5 // pred_check_branch
        %271 = sbr.rel (%p269) target = $region36
      $region35: #{shipgnn_forward.7} parent=5 // pred_region
        // Predicated region
        $region37: #{shipgnn_forward.7} parent=35 // pred_check
          %p272 = pneg %p49
        $region38: #{shipgnn_forward.7} parent=35 // pred_check_branch
          %274 = sbr.rel (%p272) target = $region40
        $region39: #{shipgnn_forward.7} parent=35 // pred_region
          %s275 = sand.u32 %s39, 1
          %s276 = sand.u32 %s39, 1
          %s277 = smul.addr %s276, 64
          %s278 = scalar_lea.vmem [#allocation3], %s277
          %s279 = smul.u32 16, %s22
          %s280 = smul.addr %s279, 3
          %s281 = sadd.s32 %s23, %s280
          %s282 = smul.addr %s281, 4
          %s283 = scalar_lea.vmem %s0, %s282
          // Predicated region
          $region41: #{shipgnn_forward.7} parent=39 // pred_check
            _
          $region42: #{shipgnn_forward.7} parent=39 // pred_check_branch
            %285 = sbr.rel (0) target = $region44
          $region43: #{shipgnn_forward.7} parent=39 // pred_region
            // Predicated region
            $region45: #{shipgnn_forward.7} parent=43 // pred_check
              _
            $region46: #{shipgnn_forward.7} parent=43 // pred_check_branch
              %287 = sbr.rel target = $region48
            $region47: #{shipgnn_forward.7} parent=43 // pred_region
              // Predicated region
              $region60: #{shipgnn_forward.7} parent=47 // pred_check
                _
              $region61: #{shipgnn_forward.7} parent=47 // pred_check_branch
                %332 = sbr.rel (0) target = $region63
              $region62: #{shipgnn_forward.7} parent=47 // pred_region
                loop: start=0, step=1, limit=1
                $region64: #{shipgnn_forward.7} parent=62 // loop_pre_header
                  _
                $region65: #{shipgnn_forward.7} parent=62 // loop_header
                  %s334 = sphi 0, %s338
                  %p335 = scmp.ge.s32.totalorder %s334, 1
                  %s339 = sphi %s283, %s283
                  %s340 = sphi %s278, %s278
                $region66: #{shipgnn_forward.7} parent=62 // loop_header_branch
                  %337 = sbr.rel (%p335) target = $region70
                $region67: #{shipgnn_forward.7} parent=62 // loop_body
                  _
                $region68: #{shipgnn_forward.7} parent=62 // loop_footer
                  %s338 = sadd.s32 1, %s334
                $region69: #{shipgnn_forward.7} parent=62 // loop_footer_branch
                  %333 = sbr.rel target = $region65
                $region70: #{shipgnn_forward.7} parent=62 // loop_exit
                  _
                loop: start=0, step=1, limit=1
                $region71: #{shipgnn_forward.7} parent=62 // loop_pre_header
                  _
                $region72: #{shipgnn_forward.7} parent=62 // loop_header
                  %s343 = sphi 0, %s347
                  %p344 = scmp.ge.s32.totalorder %s343, 1
                  %s348 = sphi %s283, %s283
                  %s349 = sphi %s278, %s278
                $region73: #{shipgnn_forward.7} parent=62 // loop_header_branch
                  %346 = sbr.rel (%p344) target = $region77
                $region74: #{shipgnn_forward.7} parent=62 // loop_body
                  %v350 = vld [vmem:[%s348] sm:$0xf]
                  %351 = vst [vmem:[%s349] sm:$0xf] %v350
                  %v352 = vld [vmem:[%s348 + $0xc] sm:$0xf]
                  %353 = vst [vmem:[%s349 + $0x4] sm:$0xf] %v352
                  %v354 = vld [vmem:[%s348 + $0x18] sm:$0xf]
                  %355 = vst [vmem:[%s349 + $0x8] sm:$0xf] %v354
                  %v356 = vld [vmem:[%s348 + $0x24] sm:$0xf]
                  %357 = vst [vmem:[%s349 + $0xc] sm:$0xf] %v356
                  %v358 = vld [vmem:[%s348 + $0x30] sm:$0xf]
                  %359 = vst [vmem:[%s349 + $0x10] sm:$0xf] %v358
                  %v360 = vld [vmem:[%s348 + $0x3c] sm:$0xf]
                  %361 = vst [vmem:[%s349 + $0x14] sm:$0xf] %v360
                  %v362 = vld [vmem:[%s348 + $0x48] sm:$0xf]
                  %363 = vst [vmem:[%s349 + $0x18] sm:$0xf] %v362
                  %v364 = vld [vmem:[%s348 + $0x54] sm:$0xf]
                  %365 = vst [vmem:[%s349 + $0x1c] sm:$0xf] %v364
                  %v366 = vld [vmem:[%s348 + $0x60] sm:$0xf]
                  %367 = vst [vmem:[%s349 + $0x20] sm:$0xf] %v366
                  %v368 = vld [vmem:[%s348 + $0x6c] sm:$0xf]
                  %369 = vst [vmem:[%s349 + $0x24] sm:$0xf] %v368
                  %v370 = vld [vmem:[%s348 + $0x78] sm:$0xf]
                  %371 = vst [vmem:[%s349 + $0x28] sm:$0xf] %v370
                  %v372 = vld [vmem:[%s348 + $0x84] sm:$0xf]
                  %373 = vst [vmem:[%s349 + $0x2c] sm:$0xf] %v372
                  %v374 = vld [vmem:[%s348 + $0x90] sm:$0xf]
                  %375 = vst [vmem:[%s349 + $0x30] sm:$0xf] %v374
                  %v376 = vld [vmem:[%s348 + $0x9c] sm:$0xf]
                  %377 = vst [vmem:[%s349 + $0x34] sm:$0xf] %v376
                  %v378 = vld [vmem:[%s348 + $0xa8] sm:$0xf]
                  %379 = vst [vmem:[%s349 + $0x38] sm:$0xf] %v378
                  %v380 = vld [vmem:[%s348 + $0xb4] sm:$0xf]
                  %381 = vst [vmem:[%s349 + $0x3c] sm:$0xf] %v380
                $region75: #{shipgnn_forward.7} parent=62 // loop_footer
                  %s347 = sadd.s32 1, %s343
                $region76: #{shipgnn_forward.7} parent=62 // loop_footer_branch
                  %342 = sbr.rel target = $region72
                $region77: #{shipgnn_forward.7} parent=62 // loop_exit
                  _
              $region63: #{shipgnn_forward.7} parent=47 // pred_fallthru
                _
            $region48: #{shipgnn_forward.7} parent=43 // pred_fallthru
              _
            // Predicated region
            $region49: #{shipgnn_forward.7} parent=43 // pred_check
              _
            $region50: #{shipgnn_forward.7} parent=43 // pred_check_branch
              %289 = sbr.rel (0) target = $region52
            $region51: #{shipgnn_forward.7} parent=43 // pred_region
              loop: start=0, step=1, limit=1
              $region53: #{shipgnn_forward.7} parent=51 // loop_pre_header
                _
              $region54: #{shipgnn_forward.7} parent=51 // loop_header
                %s292 = sphi 0, %s296
                %p293 = scmp.ge.s32.totalorder %s292, 1
                %s297 = sphi %s283, %s283
                %s298 = sphi %s278, %s278
              $region55: #{shipgnn_forward.7} parent=51 // loop_header_branch
                %295 = sbr.rel (%p293) target = $region59
              $region56: #{shipgnn_forward.7} parent=51 // loop_body
                %v299 = vld [vmem:[%s297] sm:$0xf]
                %300 = vst [vmem:[%s298] sm:$0xf] %v299
                %v301 = vld [vmem:[%s297 + $0xc] sm:$0xf]
                %302 = vst [vmem:[%s298 + $0x4] sm:$0xf] %v301
                %v303 = vld [vmem:[%s297 + $0x18] sm:$0xf]
                %304 = vst [vmem:[%s298 + $0x8] sm:$0xf] %v303
                %v305 = vld [vmem:[%s297 + $0x24] sm:$0xf]
                %306 = vst [vmem:[%s298 + $0xc] sm:$0xf] %v305
                %v307 = vld [vmem:[%s297 + $0x30] sm:$0xf]
                %308 = vst [vmem:[%s298 + $0x10] sm:$0xf] %v307
                %v309 = vld [vmem:[%s297 + $0x3c] sm:$0xf]
                %310 = vst [vmem:[%s298 + $0x14] sm:$0xf] %v309
                %v311 = vld [vmem:[%s297 + $0x48] sm:$0xf]
                %312 = vst [vmem:[%s298 + $0x18] sm:$0xf] %v311
                %v313 = vld [vmem:[%s297 + $0x54] sm:$0xf]
                %314 = vst [vmem:[%s298 + $0x1c] sm:$0xf] %v313
                %v315 = vld [vmem:[%s297 + $0x60] sm:$0xf]
                %316 = vst [vmem:[%s298 + $0x20] sm:$0xf] %v315
                %v317 = vld [vmem:[%s297 + $0x6c] sm:$0xf]
                %318 = vst [vmem:[%s298 + $0x24] sm:$0xf] %v317
                %v319 = vld [vmem:[%s297 + $0x78] sm:$0xf]
                %320 = vst [vmem:[%s298 + $0x28] sm:$0xf] %v319
                %v321 = vld [vmem:[%s297 + $0x84] sm:$0xf]
                %322 = vst [vmem:[%s298 + $0x2c] sm:$0xf] %v321
                %v323 = vld [vmem:[%s297 + $0x90] sm:$0xf]
                %324 = vst [vmem:[%s298 + $0x30] sm:$0xf] %v323
                %v325 = vld [vmem:[%s297 + $0x9c] sm:$0xf]
                %326 = vst [vmem:[%s298 + $0x34] sm:$0xf] %v325
                %v327 = vld [vmem:[%s297 + $0xa8] sm:$0xf]
                %328 = vst [vmem:[%s298 + $0x38] sm:$0xf] %v327
                %v329 = vld [vmem:[%s297 + $0xb4] sm:$0xf]
                %330 = vst [vmem:[%s298 + $0x3c] sm:$0xf] %v329
              $region57: #{shipgnn_forward.7} parent=51 // loop_footer
                %s296 = sadd.s32 1, %s292
              $region58: #{shipgnn_forward.7} parent=51 // loop_footer_branch
                %291 = sbr.rel target = $region54
              $region59: #{shipgnn_forward.7} parent=51 // loop_exit
                _
            $region52: #{shipgnn_forward.7} parent=43 // pred_fallthru
              _
          $region44: #{shipgnn_forward.7} parent=39 // pred_fallthru
            _
          %382 = vnop
        $region40: #{shipgnn_forward.7} parent=35 // pred_fallthru
          _
        // Predicated region
        $region78: #{shipgnn_forward.7} parent=35 // pred_check
          %p383 = pneg %p75
        $region79: #{shipgnn_forward.7} parent=35 // pred_check_branch
          %385 = sbr.rel (%p383) target = $region81
        $region80: #{shipgnn_forward.7} parent=35 // pred_region
          %s386 = smul.u32 16, %s23
          %p387 = scmp.lt.s32.totalorder %s386, 47
          %s388 = scalar_select %p387, %s386, 47
          %s389 = smul.addr %s388, 4
          %s390 = scalar_lea.vmem %s1, %s389
          %s391 = smul.u32 16, %s23
        $region81: #{shipgnn_forward.7} parent=35 // pred_fallthru
          _
      $region36: #{shipgnn_forward.7} parent=5 // pred_fallthru
        _
      %p392 = scmp.le.s32.totalorder 1, %s15
      %p393 = scmp.lt.s32.totalorder %s15, 10
      %p394 = pnand %p392, %p393
      %p395 = pneg %p394
      // Predicated region
      $region82: #{shipgnn_forward.7} parent=5 // pred_check
        _
      $region83: #{shipgnn_forward.7} parent=5 // pred_check_branch
        %397 = sbr.rel (%p394) target = $region85
      $region84: #{shipgnn_forward.7} parent=5 // pred_region
        %s398 = ssub.s32 %s15, 1
        %s399 = sand.u32 %s42, 1
        %s400 = sand.u32 %s42, 1
        %s401 = smul.addr %s400, 64
        %s402 = scalar_lea.vmem [#allocation3], %s401
        // Predicated region
        $region86: #{shipgnn_forward.7} parent=84 // pred_check
          %p403 = pneg %p55
        $region87: #{shipgnn_forward.7} parent=84 // pred_check_branch
          %405 = sbr.rel (%p403) target = $region89
        $region88: #{shipgnn_forward.7} parent=84 // pred_region
          _
        $region89: #{shipgnn_forward.7} parent=84 // pred_fallthru
          _
        %s406 = sand.u32 %s42, 1
        %s407 = sand.u32 %s42, 1
        %s408 = smul.addr %s407, 64
        %s409 = scalar_lea.vmem [#allocation3], %s408
        %p410 = pneg %p55
        %p411 = pneg %p52
        %s412 = smul.u32 16, %s25
        %p413 = scmp.lt.s32.totalorder %s412, 47
        %s414 = scalar_select %p413, %s412, 47
        %s415 = smul.addr %s414, 4
        %s416 = scalar_lea.vmem %s1, %s415
        %p417 = pneg %p81
        %p418 = pneg %p78
        %p419 = pneg %p102
        %p420 = pneg %p99
        %p421 = pneg %p123
        %p422 = pneg %p120
        %p423 = pneg %p144
        %p424 = pneg %p141
        %p425 = pneg %p165
        %p426 = pneg %p162
        %p427 = pneg %p186
        %p428 = pneg %p183
        %p429 = pneg %p212
        %p430 = pneg %p209
        %s431 = smul.u32 16, %s24
        %p432 = scmp.lt.s32.totalorder %s431, 47
        %s433 = scalar_select %p432, %s431, 47
        %s434 = smul.addr %s433, 8
        %s435 = scalar_lea.vmem %s7, %s434
        %p436 = pneg %p238
        %p437 = pneg %p235
        %s438 = smul.u32 16, %s24
        %p439 = scmp.lt.s32.totalorder %s438, 47
        %s440 = scalar_select %p439, %s438, 47
        %s441 = smul.addr %s440, 8
        %s442 = scalar_lea.vmem %s8, %s441
        %s443 = smul.u32 16, %s24
        %s444 = smul.u32 16, %s25
        %p445 = scmp.lt.s32.totalorder %s444, 47
        %s446 = scalar_select %p445, %s444, 47
        %s447 = smul.addr %s446, 4
        %s448 = scalar_lea.vmem %s1, %s447
        %s449 = smul.u32 16, %s25
        %s450 = smul.u32 16, %s24
        %p451 = scmp.lt.s32.totalorder %s450, 47
        %s452 = scalar_select %p451, %s450, 47
        %s453 = smul.addr %s452, 8
        %s454 = scalar_lea.vmem %s7, %s453
        %s455 = smul.u32 16, %s24
        %s456 = smul.u32 16, %s24
        %p457 = scmp.lt.s32.totalorder %s456, 47
        %s458 = scalar_select %p457, %s456, 47
        %s459 = smul.addr %s458, 8
        %s460 = scalar_lea.vmem %s8, %s459
        %s461 = smul.u32 16, %s24
        %p463 = scmp.eq.s32.totalorder %s25, 0
        // Predicated region
        $region90: #{shipgnn_forward.7} parent=84 // pred_check
          %p464 = pneg %p463
        $region91: #{shipgnn_forward.7} parent=84 // pred_check_branch
          %466 = sbr.rel (%p464) target = $region93
        $region92: #{shipgnn_forward.7} parent=84 // pred_region
          %467 = vst [vmem:[#allocation2] sm:$0xff] 0.0
          %468 = vst [vmem:[#allocation2 + $0x8] sm:$0xff] 0.0
          %469 = vst [vmem:[#allocation2 + $0x10] sm:$0xff] 0.0
          %470 = vst [vmem:[#allocation2 + $0x18] sm:$0xff] 0.0
          %471 = vst [vmem:[#allocation2 + $0x20] sm:$0xff] 0.0
          %472 = vst [vmem:[#allocation2 + $0x28] sm:$0xff] 0.0
          %473 = vst [vmem:[#allocation2 + $0x30] sm:$0xff] 0.0
          %474 = vst [vmem:[#allocation2 + $0x38] sm:$0xff] 0.0
          %475 = vst [vmem:[#allocation2 + $0x40] sm:$0xff] 0.0
          %476 = vst [vmem:[#allocation2 + $0x48] sm:$0xff] 0.0
          %477 = vst [vmem:[#allocation2 + $0x50] sm:$0xff] 0.0
          %478 = vst [vmem:[#allocation2 + $0x58] sm:$0xff] 0.0
          %479 = vst [vmem:[#allocation2 + $0x60] sm:$0xff] 0.0
          %480 = vst [vmem:[#allocation2 + $0x68] sm:$0xff] 0.0
          %481 = vst [vmem:[#allocation2 + $0x70] sm:$0xff] 0.0
          %482 = vst [vmem:[#allocation2 + $0x78] sm:$0xff] 0.0
        $region93: #{shipgnn_forward.7} parent=84 // pred_fallthru
          _
        %v483 = vld [vmem:[#allocation2] sm:$0xff]
        %v484 = vld [vmem:[#allocation2 + $0x8] sm:$0xff]
        %v485 = vld [vmem:[#allocation2 + $0x10] sm:$0xff]
        %v486 = vld [vmem:[#allocation2 + $0x18] sm:$0xff]
        %v487 = vld [vmem:[#allocation2 + $0x20] sm:$0xff]
        %v488 = vld [vmem:[#allocation2 + $0x28] sm:$0xff]
        %v489 = vld [vmem:[#allocation2 + $0x30] sm:$0xff]
        %v490 = vld [vmem:[#allocation2 + $0x38] sm:$0xff]
        %v491 = vld [vmem:[#allocation2 + $0x40] sm:$0xff]
        %v492 = vld [vmem:[#allocation2 + $0x48] sm:$0xff]
        %v493 = vld [vmem:[#allocation2 + $0x50] sm:$0xff]
        %v494 = vld [vmem:[#allocation2 + $0x58] sm:$0xff]
        %v495 = vld [vmem:[#allocation2 + $0x60] sm:$0xff]
        %v496 = vld [vmem:[#allocation2 + $0x68] sm:$0xff]
        %v497 = vld [vmem:[#allocation2 + $0x70] sm:$0xff]
        %v498 = vld [vmem:[#allocation2 + $0x78] sm:$0xff]
        %v499 = vld [vmem:[%s402] sm:$0xf]
        %v500 = vld [vmem:[%s402 + $0x4] sm:$0xf]
        %v501 = vld [vmem:[%s402 + $0x8] sm:$0xf]
        %v502 = vld [vmem:[%s402 + $0xc] sm:$0xf]
        %v503 = vld [vmem:[%s402 + $0x10] sm:$0xf]
        %v504 = vld [vmem:[%s402 + $0x14] sm:$0xf]
        %v505 = vld [vmem:[%s402 + $0x18] sm:$0xf]
        %v506 = vld [vmem:[%s402 + $0x1c] sm:$0xf]
        %v507 = vld [vmem:[%s402 + $0x20] sm:$0xf]
        %v508 = vld [vmem:[%s402 + $0x24] sm:$0xf]
        %v509 = vld [vmem:[%s402 + $0x28] sm:$0xf]
        %v510 = vld [vmem:[%s402 + $0x2c] sm:$0xf]
        %v511 = vld [vmem:[%s402 + $0x30] sm:$0xf]
        %v512 = vld [vmem:[%s402 + $0x34] sm:$0xf]
        %v513 = vld [vmem:[%s402 + $0x38] sm:$0xf]
        %v514 = vld [vmem:[%s402 + $0x3c] sm:$0xf]
        %v515 = vld [vmem:[%s448] sm:$0xf]
        %v516 = vld [vmem:[%s448 + $0x4] sm:$0xf]
        %v517 = vld [vmem:[%s448 + $0x8] sm:$0xf]
        %v518 = vld [vmem:[%s448 + $0xc] sm:$0xf]
        %v519 = vld [vmem:[%s448 + $0x10] sm:$0xf]
        %v520 = vld [vmem:[%s448 + $0x14] sm:$0xf]
        %v521 = vld [vmem:[%s448 + $0x18] sm:$0xf]
        %v522 = vld [vmem:[%s448 + $0x1c] sm:$0xf]
        %v523 = vld [vmem:[%s448 + $0x20] sm:$0xf]
        %v524 = vld [vmem:[%s448 + $0x24] sm:$0xf]
        %v525 = vld [vmem:[%s448 + $0x28] sm:$0xf]
        %v526 = vld [vmem:[%s448 + $0x2c] sm:$0xf]
        %v527 = vld [vmem:[%s448 + $0x30] sm:$0xf]
        %v528 = vld [vmem:[%s448 + $0x34] sm:$0xf]
        %v529 = vld [vmem:[%s448 + $0x38] sm:$0xf]
        %v530 = vld [vmem:[%s448 + $0x3c] sm:$0xf]
        %v547 = vunpack.c.l.b16 %v499
        %v548 = vunpack.c.l.b16 %v500
        %v549 = vunpack.c.l.b16 %v501
        %v550 = vunpack.c.l.b16 %v502
        %v551 = vunpack.c.l.b16 %v503
        %v552 = vunpack.c.l.b16 %v504
        %v553 = vunpack.c.l.b16 %v505
        %v554 = vunpack.c.l.b16 %v506
        %v555 = vunpack.c.l.b16 %v507
        %v556 = vunpack.c.l.b16 %v508
        %v557 = vunpack.c.l.b16 %v509
        %v558 = vunpack.c.l.b16 %v510
        %v559 = vunpack.c.l.b16 %v511
        %v560 = vunpack.c.l.b16 %v512
        %v561 = vunpack.c.l.b16 %v513
        %v562 = vunpack.c.l.b16 %v514
        %v563 = vpack.c.b16 %v548, %v547
        %v564 = vpack.c.b16 %v550, %v549
        %v565 = vpack.c.b16 %v552, %v551
        %v566 = vpack.c.b16 %v554, %v553
        %v567 = vpack.c.b16 %v556, %v555
        %v568 = vpack.c.b16 %v558, %v557
        %v569 = vpack.c.b16 %v560, %v559
        %v570 = vpack.c.b16 %v562, %v561
        %v595 = vunpack.c.l.b16 %v515
        %v596 = vunpack.c.l.b16 %v516
        %v597 = vunpack.c.l.b16 %v517
        %v598 = vunpack.c.l.b16 %v518
        %v599 = vunpack.c.l.b16 %v519
        %v600 = vunpack.c.l.b16 %v520
        %v601 = vunpack.c.l.b16 %v521
        %v602 = vunpack.c.l.b16 %v522
        %v603 = vunpack.c.l.b16 %v523
        %v604 = vunpack.c.l.b16 %v524
        %v605 = vunpack.c.l.b16 %v525
        %v606 = vunpack.c.l.b16 %v526
        %v607 = vunpack.c.l.b16 %v527
        %v608 = vunpack.c.l.b16 %v528
        %v609 = vunpack.c.l.b16 %v529
        %v610 = vunpack.c.l.b16 %v530
        %v611 = vpack.c.b16 %v596, %v595
        %v612 = vpack.c.b16 %v598, %v597
        %v613 = vpack.c.b16 %v600, %v599
        %v614 = vpack.c.b16 %v602, %v601
        %v615 = vpack.c.b16 %v604, %v603
        %v616 = vpack.c.b16 %v606, %v605
        %v617 = vpack.c.b16 %v608, %v607
        %v618 = vpack.c.b16 %v610, %v609
        %627 = vmatprep.subr.bf16.mxu0 0
        %628 = vmatpush1.bf16.msra.mxu0 %v611
        %629 = vmatprep.subr.bf16.mxu0 0
        %630 = vmatpush1.bf16.msra.mxu0 %v612
        %631 = vmatprep.subr.bf16.mxu0 0
        %632 = vmatpush1.bf16.msra.mxu0 %v613
        %633 = vmatprep.subr.bf16.mxu0 0
        %634 = vmatpush1.bf16.msra.mxu0 %v614
        %635 = vmatprep.subr.bf16.mxu0 0
        %636 = vmatpush1.bf16.msra.mxu0 %v615
        %637 = vmatprep.subr.bf16.mxu0 0
        %638 = vmatpush1.bf16.msra.mxu0 %v616
        %639 = vmatprep.subr.bf16.mxu0 0
        %640 = vmatpush1.bf16.msra.mxu0 %v617
        %641 = vmatprep.subr.bf16.mxu0 0
        %642 = vmatpush1.bf16.msra.mxu0 %v618
        %643 = vmatprep.subr.bf16.mxu0 0
        %644 = vmatpush1.bf16.msra.mxu0 0
        %645 = vmatprep.subr.bf16.mxu0 0
        %646 = vmatpush1.bf16.msra.mxu0 0
        %647 = vmatprep.subr.bf16.mxu0 0
        %648 = vmatpush1.bf16.msra.mxu0 0
        %649 = vmatprep.subr.bf16.mxu0 0
        %650 = vmatpush1.bf16.msra.mxu0 0
        %651 = vmatprep.subr.bf16.mxu0 0
        %652 = vmatpush1.bf16.msra.mxu0 0
        %653 = vmatprep.subr.bf16.mxu0 0
        %654 = vmatpush1.bf16.msra.mxu0 0
        %655 = vmatprep.subr.bf16.mxu0 0
        %656 = vmatpush1.bf16.msra.mxu0 0
        %657 = vmatprep.subr.bf16.mxu0 0
        %658 = vmatpush1.bf16.msra.mxu0 0
        %659 = vmatprep.mubr.bf16.mxu0 0
        %660 = vmatmul.mubr.bf16.gmra.mrb[0].mxu0 %v563
        %v661 = vpop.f32.mrb[0].mxu0
        %v662 = vadd.f32 0.0, %v661
        %v663 = vpop.f32.mrb[0].mxu0
        %v664 = vpop.f32.mrb[0].mxu0
        %v665 = vadd.f32 0.0, %v664
        %v666 = vpop.f32.mrb[0].mxu0
        %667 = vmatprep.mubr.bf16.mxu0 0
        %668 = vmatmul.mubr.bf16.gmra.mrb[0].mxu0 %v564
        %v669 = vpop.f32.mrb[0].mxu0
        %v670 = vadd.f32 0.0, %v669
        %v671 = vpop.f32.mrb[0].mxu0
        %v672 = vpop.f32.mrb[0].mxu0
        %v673 = vadd.f32 0.0, %v672
        %v674 = vpop.f32.mrb[0].mxu0
        %675 = vmatprep.mubr.bf16.mxu0 0
        %676 = vmatmul.mubr.bf16.gmra.mrb[0].mxu0 %v565
        %v677 = vpop.f32.mrb[0].mxu0
        %v678 = vadd.f32 0.0, %v677
        %v679 = vpop.f32.mrb[0].mxu0
        %v680 = vpop.f32.mrb[0].mxu0
        %v681 = vadd.f32 0.0, %v680
        %v682 = vpop.f32.mrb[0].mxu0
        %683 = vmatprep.mubr.bf16.mxu0 0
        %684 = vmatmul.mubr.bf16.gmra.mrb[0].mxu0 %v566
        %v685 = vpop.f32.mrb[0].mxu0
        %v686 = vadd.f32 0.0, %v685
        %v687 = vpop.f32.mrb[0].mxu0
        %v688 = vpop.f32.mrb[0].mxu0
        %v689 = vadd.f32 0.0, %v688
        %v690 = vpop.f32.mrb[0].mxu0
        %691 = vmatprep.mubr.bf16.mxu0 0
        %692 = vmatmul.mubr.bf16.gmra.mrb[0].mxu0 %v567
        %v693 = vpop.f32.mrb[0].mxu0
        %v694 = vadd.f32 0.0, %v693
        %v695 = vpop.f32.mrb[0].mxu0
        %v696 = vpop.f32.mrb[0].mxu0
        %v697 = vadd.f32 0.0, %v696
        %v698 = vpop.f32.mrb[0].mxu0
        %699 = vmatprep.mubr.bf16.mxu0 0
        %700 = vmatmul.mubr.bf16.gmra.mrb[0].mxu0 %v568
        %v701 = vpop.f32.mrb[0].mxu0
        %v702 = vadd.f32 0.0, %v701
        %v703 = vpop.f32.mrb[0].mxu0
        %v704 = vpop.f32.mrb[0].mxu0
        %v705 = vadd.f32 0.0, %v704
        %v706 = vpop.f32.mrb[0].mxu0
        %707 = vmatprep.mubr.bf16.mxu0 0
        %708 = vmatmul.mubr.bf16.gmra.mrb[0].mxu0 %v569
        %v709 = vpop.f32.mrb[0].mxu0
        %v710 = vadd.f32 0.0, %v709
        %v711 = vpop.f32.mrb[0].mxu0
        %v712 = vpop.f32.mrb[0].mxu0
        %v713 = vadd.f32 0.0, %v712
        %v714 = vpop.f32.mrb[0].mxu0
        %715 = vmatprep.mubr.bf16.mxu0 0
        %716 = vmatmul.mubr.bf16.gmra.mrb[0].mxu0 %v570
        %v717 = vpop.f32.mrb[0].mxu0
        %v718 = vadd.f32 0.0, %v717
        %v719 = vpop.f32.mrb[0].mxu0
        %v720 = vpop.f32.mrb[0].mxu0
        %v721 = vadd.f32 0.0, %v720
        %v722 = vpop.f32.mrb[0].mxu0
        %723 = vdwg.mxu0
        %v724 = vadd.f32 %v483, %v662
        %v725 = vadd.f32 %v484, %v665
        %v726 = vadd.f32 %v485, %v670
        %v727 = vadd.f32 %v486, %v673
        %v728 = vadd.f32 %v487, %v678
        %v729 = vadd.f32 %v488, %v681
        %v730 = vadd.f32 %v489, %v686
        %v731 = vadd.f32 %v490, %v689
        %v732 = vadd.f32 %v491, %v694
        %v733 = vadd.f32 %v492, %v697
        %v734 = vadd.f32 %v493, %v702
        %v735 = vadd.f32 %v494, %v705
        %v736 = vadd.f32 %v495, %v710
        %v737 = vadd.f32 %v496, %v713
        %v738 = vadd.f32 %v497, %v718
        %v739 = vadd.f32 %v498, %v721
        %740 = vst [vmem:[#allocation2] sm:$0xff] %v724
        %741 = vst [vmem:[#allocation2 + $0x8] sm:$0xff] %v725
        %742 = vst [vmem:[#allocation2 + $0x10] sm:$0xff] %v726
        %743 = vst [vmem:[#allocation2 + $0x18] sm:$0xff] %v727
        %744 = vst [vmem:[#allocation2 + $0x20] sm:$0xff] %v728
        %745 = vst [vmem:[#allocation2 + $0x28] sm:$0xff] %v729
        %746 = vst [vmem:[#allocation2 + $0x30] sm:$0xff] %v730
        %747 = vst [vmem:[#allocation2 + $0x38] sm:$0xff] %v731
        %748 = vst [vmem:[#allocation2 + $0x40] sm:$0xff] %v732
        %749 = vst [vmem:[#allocation2 + $0x48] sm:$0xff] %v733
        %750 = vst [vmem:[#allocation2 + $0x50] sm:$0xff] %v734
        %751 = vst [vmem:[#allocation2 + $0x58] sm:$0xff] %v735
        %752 = vst [vmem:[#allocation2 + $0x60] sm:$0xff] %v736
        %753 = vst [vmem:[#allocation2 + $0x68] sm:$0xff] %v737
        %754 = vst [vmem:[#allocation2 + $0x70] sm:$0xff] %v738
        %755 = vst [vmem:[#allocation2 + $0x78] sm:$0xff] %v739
        %p756 = scmp.eq.s32.totalorder %s25, 2
        // Predicated region
        $region94: #{shipgnn_forward.7} parent=84 // pred_check
          %p757 = pneg %p756
        $region95: #{shipgnn_forward.7} parent=84 // pred_check_branch
          %759 = sbr.rel (%p757) target = $region97
        $region96: #{shipgnn_forward.7} parent=84 // pred_region
          %v760 = vld [vmem:[#allocation2] sm:$0xff]
          %v761 = vld [vmem:[#allocation2 + $0x8] sm:$0xff]
          %v762 = vld [vmem:[#allocation2 + $0x10] sm:$0xff]
          %v763 = vld [vmem:[#allocation2 + $0x18] sm:$0xff]
          %v764 = vld [vmem:[#allocation2 + $0x20] sm:$0xff]
          %v765 = vld [vmem:[#allocation2 + $0x28] sm:$0xff]
          %v766 = vld [vmem:[#allocation2 + $0x30] sm:$0xff]
          %v767 = vld [vmem:[#allocation2 + $0x38] sm:$0xff]
          %v768 = vld [vmem:[#allocation2 + $0x40] sm:$0xff]
          %v769 = vld [vmem:[#allocation2 + $0x48] sm:$0xff]
          %v770 = vld [vmem:[#allocation2 + $0x50] sm:$0xff]
          %v771 = vld [vmem:[#allocation2 + $0x58] sm:$0xff]
          %v772 = vld [vmem:[#allocation2 + $0x60] sm:$0xff]
          %v773 = vld [vmem:[#allocation2 + $0x68] sm:$0xff]
          %v774 = vld [vmem:[#allocation2 + $0x70] sm:$0xff]
          %v775 = vld [vmem:[#allocation2 + $0x78] sm:$0xff]
          %v776 = vld [vmem:[%s2] sm:$0x1]
          %v778 = vlaneseq
          %v779 = vshrl.u32 %v778, 7
          %v780 = vsub.s32 0, %v779
          %v781 = vrot.slane %v776, %v780
          %v783 = vadd.f32 %v760, %v781
          %v784 = vadd.f32 %v761, %v781
          %v785 = vadd.f32 %v762, %v781
          %v786 = vadd.f32 %v763, %v781
          %v787 = vadd.f32 %v764, %v781
          %v788 = vadd.f32 %v765, %v781
          %v789 = vadd.f32 %v766, %v781
          %v790 = vadd.f32 %v767, %v781
          %v791 = vadd.f32 %v768, %v781
          %v792 = vadd.f32 %v769, %v781
          %v793 = vadd.f32 %v770, %v781
          %v794 = vadd.f32 %v771, %v781
          %v795 = vadd.f32 %v772, %v781
          %v796 = vadd.f32 %v773, %v781
          %v797 = vadd.f32 %v774, %v781
          %v798 = vadd.f32 %v775, %v781
          %v799 = vmax.f32 %v783, 0.0
          %v800 = vmax.f32 %v784, 0.0
          %v801 = vmax.f32 %v785, 0.0
          %v802 = vmax.f32 %v786, 0.0
          %v803 = vmax.f32 %v787, 0.0
          %v804 = vmax.f32 %v788, 0.0
          %v805 = vmax.f32 %v789, 0.0
          %v806 = vmax.f32 %v790, 0.0
          %v807 = vmax.f32 %v791, 0.0
          %v808 = vmax.f32 %v792, 0.0
          %v809 = vmax.f32 %v793, 0.0
          %v810 = vmax.f32 %v794, 0.0
          %v811 = vmax.f32 %v795, 0.0
          %v812 = vmax.f32 %v796, 0.0
          %v813 = vmax.f32 %v797, 0.0
          %v814 = vmax.f32 %v798, 0.0
          %815 = vst [vmem:[%s454] sm:$0xff] %v799
          %816 = vst [vmem:[%s454 + $0x8] sm:$0xff] %v800
          %817 = vst [vmem:[%s454 + $0x10] sm:$0xff] %v801
          %818 = vst [vmem:[%s454 + $0x18] sm:$0xff] %v802
          %819 = vst [vmem:[%s454 + $0x20] sm:$0xff] %v803
          %820 = vst [vmem:[%s454 + $0x28] sm:$0xff] %v804
          %821 = vst [vmem:[%s454 + $0x30] sm:$0xff] %v805
          %822 = vst [vmem:[%s454 + $0x38] sm:$0xff] %v806
          %823 = vst [vmem:[%s454 + $0x40] sm:$0xff] %v807
          %824 = vst [vmem:[%s454 + $0x48] sm:$0xff] %v808
          %825 = vst [vmem:[%s454 + $0x50] sm:$0xff] %v809
          %826 = vst [vmem:[%s454 + $0x58] sm:$0xff] %v810
          %827 = vst [vmem:[%s454 + $0x60] sm:$0xff] %v811
          %828 = vst [vmem:[%s454 + $0x68] sm:$0xff] %v812
          %829 = vst [vmem:[%s454 + $0x70] sm:$0xff] %v813
          %830 = vst [vmem:[%s454 + $0x78] sm:$0xff] %v814
          %v831 = vld [vmem:[%s3] sm:$0xff]
          %v832 = vld [vmem:[%s3 + $0x8] sm:$0xff]
          %v833 = vld [vmem:[%s3 + $0x10] sm:$0xff]
          %v834 = vld [vmem:[%s3 + $0x18] sm:$0xff]
          %v835 = vld [vmem:[%s3 + $0x20] sm:$0xff]
          %v836 = vld [vmem:[%s3 + $0x28] sm:$0xff]
          %v837 = vld [vmem:[%s3 + $0x30] sm:$0xff]
          %v838 = vld [vmem:[%s3 + $0x38] sm:$0xff]
          %v839 = vld [vmem:[%s3 + $0x40] sm:$0xff]
          %v840 = vld [vmem:[%s3 + $0x48] sm:$0xff]
          %v841 = vld [vmem:[%s3 + $0x50] sm:$0xff]
          %v842 = vld [vmem:[%s3 + $0x58] sm:$0xff]
          %v843 = vld [vmem:[%s3 + $0x60] sm:$0xff]
          %v844 = vld [vmem:[%s3 + $0x68] sm:$0xff]
          %v845 = vld [vmem:[%s3 + $0x70] sm:$0xff]
          %v846 = vld [vmem:[%s3 + $0x78] sm:$0xff]
          %v847 = vld [vmem:[%s4] sm:$0x1]
          %v849 = vlaneseq
          %v850 = vshrl.u32 %v849, 7
          %v851 = vsub.s32 0, %v850
          %v852 = vrot.slane %v847, %v851
          %854 = vmatprep.subr.mxu0 0.0
          %855 = vmatpush1.msra.mxu0 %v831
          %856 = vmatprep.subr.mxu0 0.0
          %857 = vmatpush1.msra.mxu0 %v832
          %858 = vmatprep.subr.mxu0 0.0
          %859 = vmatpush1.msra.mxu0 %v833
          %860 = vmatprep.subr.mxu0 0.0
          %861 = vmatpush1.msra.mxu0 %v834
          %862 = vmatprep.subr.mxu0 0.0
          %863 = vmatpush1.msra.mxu0 %v835
          %864 = vmatprep.subr.mxu0 0.0
          %865 = vmatpush1.msra.mxu0 %v836
          %866 = vmatprep.subr.mxu0 0.0
          %867 = vmatpush1.msra.mxu0 %v837
          %868 = vmatprep.subr.mxu0 0.0
          %869 = vmatpush1.msra.mxu0 %v838
          %870 = vmatprep.subr.mxu0 0.0
          %871 = vmatpush1.msra.mxu0 %v839
          %872 = vmatprep.subr.mxu0 0.0
          %873 = vmatpush1.msra.mxu0 %v840
          %874 = vmatprep.subr.mxu0 0.0
          %875 = vmatpush1.msra.mxu0 %v841
          %876 = vmatprep.subr.mxu0 0.0
          %877 = vmatpush1.msra.mxu0 %v842
          %878 = vmatprep.subr.mxu0 0.0
          %879 = vmatpush1.msra.mxu0 %v843
          %880 = vmatprep.subr.mxu0 0.0
          %881 = vmatpush1.msra.mxu0 %v844
          %882 = vmatprep.subr.mxu0 0.0
          %883 = vmatpush1.msra.mxu0 %v845
          %884 = vmatprep.subr.mxu0 0.0
          %885 = vmatpush1.msra.mxu0 %v846
          %886 = vmatprep.subr.mxu0 0.0
          %887 = vmatpush1.msra.mxu0 0.0
          %888 = vmatprep.subr.mxu0 0.0
          %889 = vmatpush1.msra.mxu0 0.0
          %890 = vmatprep.subr.mxu0 0.0
          %891 = vmatpush1.msra.mxu0 0.0
          %892 = vmatprep.subr.mxu0 0.0
          %893 = vmatpush1.msra.mxu0 0.0
          %894 = vmatprep.subr.mxu0 0.0
          %895 = vmatpush1.msra.mxu0 0.0
          %896 = vmatprep.subr.mxu0 0.0
          %897 = vmatpush1.msra.mxu0 0.0
          %898 = vmatprep.subr.mxu0 0.0
          %899 = vmatpush1.msra.mxu0 0.0
          %900 = vmatprep.subr.mxu0 0.0
          %901 = vmatpush1.msra.mxu0 0.0
          %902 = vmatprep.subr.mxu0 0.0
          %903 = vmatpush1.msra.mxu0 0.0
          %904 = vmatprep.subr.mxu0 0.0
          %905 = vmatpush1.msra.mxu0 0.0
          %906 = vmatprep.subr.mxu0 0.0
          %907 = vmatpush1.msra.mxu0 0.0
          %908 = vmatprep.subr.mxu0 0.0
          %909 = vmatpush1.msra.mxu0 0.0
          %910 = vmatprep.subr.mxu0 0.0
          %911 = vmatpush1.msra.mxu0 0.0
          %912 = vmatprep.subr.mxu0 0.0
          %913 = vmatpush1.msra.mxu0 0.0
          %914 = vmatprep.subr.mxu0 0.0
          %915 = vmatpush1.msra.mxu0 0.0
          %916 = vmatprep.subr.mxu0 0.0
          %917 = vmatpush1.msra.mxu0 0.0
          %918 = vmatprep.mubr.f32.mxu0 0.0
          %919 = vmatmul.mubr.f32.gmra.mrb[0].mxu0 %v799
          %v920 = vpop.f32.mrb[0].mxu0
          %v921 = vadd.f32 %v852, %v920
          %v922 = vpop.f32.mrb[0].mxu0
          %923 = vmatprep.mubr.f32.mxu0 0.0
          %924 = vmatmul.mubr.f32.gmra.mrb[0].mxu0 %v800
          %v925 = vpop.f32.mrb[0].mxu0
          %v926 = vadd.f32 %v852, %v925
          %v927 = vpop.f32.mrb[0].mxu0
          %928 = vmatprep.mubr.f32.mxu0 0.0
          %929 = vmatmul.mubr.f32.gmra.mrb[0].mxu0 %v801
          %v930 = vpop.f32.mrb[0].mxu0
          %v931 = vadd.f32 %v852, %v930
          %v932 = vpop.f32.mrb[0].mxu0
          %933 = vmatprep.mubr.f32.mxu0 0.0
          %934 = vmatmul.mubr.f32.gmra.mrb[0].mxu0 %v802
          %v935 = vpop.f32.mrb[0].mxu0
          %v936 = vadd.f32 %v852, %v935
          %v937 = vpop.f32.mrb[0].mxu0
          %938 = vmatprep.mubr.f32.mxu0 0.0
          %939 = vmatmul.mubr.f32.gmra.mrb[0].mxu0 %v803
          %v940 = vpop.f32.mrb[0].mxu0
          %v941 = vadd.f32 %v852, %v940
          %v942 = vpop.f32.mrb[0].mxu0
          %943 = vmatprep.mubr.f32.mxu0 0.0
          %944 = vmatmul.mubr.f32.gmra.mrb[0].mxu0 %v804
          %v945 = vpop.f32.mrb[0].mxu0
          %v946 = vadd.f32 %v852, %v945
          %v947 = vpop.f32.mrb[0].mxu0
          %948 = vmatprep.mubr.f32.mxu0 0.0
          %949 = vmatmul.mubr.f32.gmra.mrb[0].mxu0 %v805
          %v950 = vpop.f32.mrb[0].mxu0
          %v951 = vadd.f32 %v852, %v950
          %v952 = vpop.f32.mrb[0].mxu0
          %953 = vmatprep.mubr.f32.mxu0 0.0
          %954 = vmatmul.mubr.f32.gmra.mrb[0].mxu0 %v806
          %v955 = vpop.f32.mrb[0].mxu0
          %v956 = vadd.f32 %v852, %v955
          %v957 = vpop.f32.mrb[0].mxu0
          %958 = vmatprep.mubr.f32.mxu0 0.0
          %959 = vmatmul.mubr.f32.gmra.mrb[0].mxu0 %v807
          %v960 = vpop.f32.mrb[0].mxu0
          %v961 = vadd.f32 %v852, %v960
          %v962 = vpop.f32.mrb[0].mxu0
          %963 = vmatprep.mubr.f32.mxu0 0.0
          %964 = vmatmul.mubr.f32.gmra.mrb[0].mxu0 %v808
          %v965 = vpop.f32.mrb[0].mxu0
          %v966 = vadd.f32 %v852, %v965
          %v967 = vpop.f32.mrb[0].mxu0
          %968 = vmatprep.mubr.f32.mxu0 0.0
          %969 = vmatmul.mubr.f32.gmra.mrb[0].mxu0 %v809
          %v970 = vpop.f32.mrb[0].mxu0
          %v971 = vadd.f32 %v852, %v970
          %v972 = vpop.f32.mrb[0].mxu0
          %973 = vmatprep.mubr.f32.mxu0 0.0
          %974 = vmatmul.mubr.f32.gmra.mrb[0].mxu0 %v810
          %v975 = vpop.f32.mrb[0].mxu0
          %v976 = vadd.f32 %v852, %v975
          %v977 = vpop.f32.mrb[0].mxu0
          %978 = vmatprep.mubr.f32.mxu0 0.0
          %979 = vmatmul.mubr.f32.gmra.mrb[0].mxu0 %v811
          %v980 = vpop.f32.mrb[0].mxu0
          %v981 = vadd.f32 %v852, %v980
          %v982 = vpop.f32.mrb[0].mxu0
          %983 = vmatprep.mubr.f32.mxu0 0.0
          %984 = vmatmul.mubr.f32.gmra.mrb[0].mxu0 %v812
          %v985 = vpop.f32.mrb[0].mxu0
          %v986 = vadd.f32 %v852, %v985
          %v987 = vpop.f32.mrb[0].mxu0
          %988 = vmatprep.mubr.f32.mxu0 0.0
          %989 = vmatmul.mubr.f32.gmra.mrb[0].mxu0 %v813
          %v990 = vpop.f32.mrb[0].mxu0
          %v991 = vadd.f32 %v852, %v990
          %v992 = vpop.f32.mrb[0].mxu0
          %993 = vmatprep.mubr.f32.mxu0 0.0
          %994 = vmatmul.mubr.f32.gmra.mrb[0].mxu0 %v814
          %v995 = vpop.f32.mrb[0].mxu0
          %v996 = vadd.f32 %v852, %v995
          %v997 = vpop.f32.mrb[0].mxu0
          %998 = vdwg.mxu0
          %v999 = vmax.f32 %v921, 0.0
          %v1000 = vmax.f32 %v926, 0.0
          %v1001 = vmax.f32 %v931, 0.0
          %v1002 = vmax.f32 %v936, 0.0
          %v1003 = vmax.f32 %v941, 0.0
          %v1004 = vmax.f32 %v946, 0.0
          %v1005 = vmax.f32 %v951, 0.0
          %v1006 = vmax.f32 %v956, 0.0
          %v1007 = vmax.f32 %v961, 0.0
          %v1008 = vmax.f32 %v966, 0.0
          %v1009 = vmax.f32 %v971, 0.0
          %v1010 = vmax.f32 %v976, 0.0
          %v1011 = vmax.f32 %v981, 0.0
          %v1012 = vmax.f32 %v986, 0.0
          %v1013 = vmax.f32 %v991, 0.0
          %v1014 = vmax.f32 %v996, 0.0
          %v1015 = vld [vmem:[%s5] sm:$0xff]
          %v1016 = vld [vmem:[%s5 + $0x8] sm:$0xff]
          %v1017 = vld [vmem:[%s5 + $0x10] sm:$0xff]
          %v1018 = vld [vmem:[%s5 + $0x18] sm:$0xff]
          %v1019 = vld [vmem:[%s5 + $0x20] sm:$0xff]
          %v1020 = vld [vmem:[%s5 + $0x28] sm:$0xff]
          %v1021 = vld [vmem:[%s5 + $0x30] sm:$0xff]
          %v1022 = vld [vmem:[%s5 + $0x38] sm:$0xff]
          %v1023 = vld [vmem:[%s5 + $0x40] sm:$0xff]
          %v1024 = vld [vmem:[%s5 + $0x48] sm:$0xff]
          %v1025 = vld [vmem:[%s5 + $0x50] sm:$0xff]
          %v1026 = vld [vmem:[%s5 + $0x58] sm:$0xff]
          %v1027 = vld [vmem:[%s5 + $0x60] sm:$0xff]
          %v1028 = vld [vmem:[%s5 + $0x68] sm:$0xff]
          %v1029 = vld [vmem:[%s5 + $0x70] sm:$0xff]
          %v1030 = vld [vmem:[%s5 + $0x78] sm:$0xff]
          %v1031 = vld [vmem:[%s6] sm:$0x1]
          %v1033 = vlaneseq
          %v1034 = vshrl.u32 %v1033, 7
          %v1035 = vsub.s32 0, %v1034
          %v1036 = vrot.slane %v1031, %v1035
          %1038 = vmatprep.subr.mxu0 0.0
          %1039 = vmatpush1.msra.mxu0 %v1015
          %1040 = vmatprep.subr.mxu0 0.0
          %1041 = vmatpush1.msra.mxu0 %v1016
          %1042 = vmatprep.subr.mxu0 0.0
          %1043 = vmatpush1.msra.mxu0 %v1017
          %1044 = vmatprep.subr.mxu0 0.0
          %1045 = vmatpush1.msra.mxu0 %v1018
          %1046 = vmatprep.subr.mxu0 0.0
          %1047 = vmatpush1.msra.mxu0 %v1019
          %1048 = vmatprep.subr.mxu0 0.0
          %1049 = vmatpush1.msra.mxu0 %v1020
          %1050 = vmatprep.subr.mxu0 0.0
          %1051 = vmatpush1.msra.mxu0 %v1021
          %1052 = vmatprep.subr.mxu0 0.0
          %1053 = vmatpush1.msra.mxu0 %v1022
          %1054 = vmatprep.subr.mxu0 0.0
          %1055 = vmatpush1.msra.mxu0 %v1023
          %1056 = vmatprep.subr.mxu0 0.0
          %1057 = vmatpush1.msra.mxu0 %v1024
          %1058 = vmatprep.subr.mxu0 0.0
          %1059 = vmatpush1.msra.mxu0 %v1025
          %1060 = vmatprep.subr.mxu0 0.0
          %1061 = vmatpush1.msra.mxu0 %v1026
          %1062 = vmatprep.subr.mxu0 0.0
          %1063 = vmatpush1.msra.mxu0 %v1027
          %1064 = vmatprep.subr.mxu0 0.0
          %1065 = vmatpush1.msra.mxu0 %v1028
          %1066 = vmatprep.subr.mxu0 0.0
          %1067 = vmatpush1.msra.mxu0 %v1029
          %1068 = vmatprep.subr.mxu0 0.0
          %1069 = vmatpush1.msra.mxu0 %v1030
          %1070 = vmatprep.subr.mxu0 0.0
          %1071 = vmatpush1.msra.mxu0 0.0
          %1072 = vmatprep.subr.mxu0 0.0
          %1073 = vmatpush1.msra.mxu0 0.0
          %1074 = vmatprep.subr.mxu0 0.0
          %1075 = vmatpush1.msra.mxu0 0.0
          %1076 = vmatprep.subr.mxu0 0.0
          %1077 = vmatpush1.msra.mxu0 0.0
          %1078 = vmatprep.subr.mxu0 0.0
          %1079 = vmatpush1.msra.mxu0 0.0
          %1080 = vmatprep.subr.mxu0 0.0
          %1081 = vmatpush1.msra.mxu0 0.0
          %1082 = vmatprep.subr.mxu0 0.0
          %1083 = vmatpush1.msra.mxu0 0.0
          %1084 = vmatprep.subr.mxu0 0.0
          %1085 = vmatpush1.msra.mxu0 0.0
          %1086 = vmatprep.subr.mxu0 0.0
          %1087 = vmatpush1.msra.mxu0 0.0
          %1088 = vmatprep.subr.mxu0 0.0
          %1089 = vmatpush1.msra.mxu0 0.0
          %1090 = vmatprep.subr.mxu0 0.0
          %1091 = vmatpush1.msra.mxu0 0.0
          %1092 = vmatprep.subr.mxu0 0.0
          %1093 = vmatpush1.msra.mxu0 0.0
          %1094 = vmatprep.subr.mxu0 0.0
          %1095 = vmatpush1.msra.mxu0 0.0
          %1096 = vmatprep.subr.mxu0 0.0
          %1097 = vmatpush1.msra.mxu0 0.0
          %1098 = vmatprep.subr.mxu0 0.0
          %1099 = vmatpush1.msra.mxu0 0.0
          %1100 = vmatprep.subr.mxu0 0.0
          %1101 = vmatpush1.msra.mxu0 0.0
          %1102 = vmatprep.mubr.f32.mxu0 0.0
          %1103 = vmatmul.mubr.f32.gmra.mrb[0].mxu0 %v999
          %v1104 = vpop.f32.mrb[0].mxu0
          %v1105 = vadd.f32 %v1036, %v1104
          %v1106 = vpop.f32.mrb[0].mxu0
          %1107 = vmatprep.mubr.f32.mxu0 0.0
          %1108 = vmatmul.mubr.f32.gmra.mrb[0].mxu0 %v1000
          %v1109 = vpop.f32.mrb[0].mxu0
          %v1110 = vadd.f32 %v1036, %v1109
          %v1111 = vpop.f32.mrb[0].mxu0
          %1112 = vmatprep.mubr.f32.mxu0 0.0
          %1113 = vmatmul.mubr.f32.gmra.mrb[0].mxu0 %v1001
          %v1114 = vpop.f32.mrb[0].mxu0
          %v1115 = vadd.f32 %v1036, %v1114
          %v1116 = vpop.f32.mrb[0].mxu0
          %1117 = vmatprep.mubr.f32.mxu0 0.0
          %1118 = vmatmul.mubr.f32.gmra.mrb[0].mxu0 %v1002
          %v1119 = vpop.f32.mrb[0].mxu0
          %v1120 = vadd.f32 %v1036, %v1119
          %v1121 = vpop.f32.mrb[0].mxu0
          %1122 = vmatprep.mubr.f32.mxu0 0.0
          %1123 = vmatmul.mubr.f32.gmra.mrb[0].mxu0 %v1003
          %v1124 = vpop.f32.mrb[0].mxu0
          %v1125 = vadd.f32 %v1036, %v1124
          %v1126 = vpop.f32.mrb[0].mxu0
          %1127 = vmatprep.mubr.f32.mxu0 0.0
          %1128 = vmatmul.mubr.f32.gmra.mrb[0].mxu0 %v1004
          %v1129 = vpop.f32.mrb[0].mxu0
          %v1130 = vadd.f32 %v1036, %v1129
          %v1131 = vpop.f32.mrb[0].mxu0
          %1132 = vmatprep.mubr.f32.mxu0 0.0
          %1133 = vmatmul.mubr.f32.gmra.mrb[0].mxu0 %v1005
          %v1134 = vpop.f32.mrb[0].mxu0
          %v1135 = vadd.f32 %v1036, %v1134
          %v1136 = vpop.f32.mrb[0].mxu0
          %1137 = vmatprep.mubr.f32.mxu0 0.0
          %1138 = vmatmul.mubr.f32.gmra.mrb[0].mxu0 %v1006
          %v1139 = vpop.f32.mrb[0].mxu0
          %v1140 = vadd.f32 %v1036, %v1139
          %v1141 = vpop.f32.mrb[0].mxu0
          %1142 = vmatprep.mubr.f32.mxu0 0.0
          %1143 = vmatmul.mubr.f32.gmra.mrb[0].mxu0 %v1007
          %v1144 = vpop.f32.mrb[0].mxu0
          %v1145 = vadd.f32 %v1036, %v1144
          %v1146 = vpop.f32.mrb[0].mxu0
          %1147 = vmatprep.mubr.f32.mxu0 0.0
          %1148 = vmatmul.mubr.f32.gmra.mrb[0].mxu0 %v1008
          %v1149 = vpop.f32.mrb[0].mxu0
          %v1150 = vadd.f32 %v1036, %v1149
          %v1151 = vpop.f32.mrb[0].mxu0
          %1152 = vmatprep.mubr.f32.mxu0 0.0
          %1153 = vmatmul.mubr.f32.gmra.mrb[0].mxu0 %v1009
          %v1154 = vpop.f32.mrb[0].mxu0
          %v1155 = vadd.f32 %v1036, %v1154
          %v1156 = vpop.f32.mrb[0].mxu0
          %1157 = vmatprep.mubr.f32.mxu0 0.0
          %1158 = vmatmul.mubr.f32.gmra.mrb[0].mxu0 %v1010
          %v1159 = vpop.f32.mrb[0].mxu0
          %v1160 = vadd.f32 %v1036, %v1159
          %v1161 = vpop.f32.mrb[0].mxu0
          %1162 = vmatprep.mubr.f32.mxu0 0.0
          %1163 = vmatmul.mubr.f32.gmra.mrb[0].mxu0 %v1011
          %v1164 = vpop.f32.mrb[0].mxu0
          %v1165 = vadd.f32 %v1036, %v1164
          %v1166 = vpop.f32.mrb[0].mxu0
          %1167 = vmatprep.mubr.f32.mxu0 0.0
          %1168 = vmatmul.mubr.f32.gmra.mrb[0].mxu0 %v1012
          %v1169 = vpop.f32.mrb[0].mxu0
          %v1170 = vadd.f32 %v1036, %v1169
          %v1171 = vpop.f32.mrb[0].mxu0
          %1172 = vmatprep.mubr.f32.mxu0 0.0
          %1173 = vmatmul.mubr.f32.gmra.mrb[0].mxu0 %v1013
          %v1174 = vpop.f32.mrb[0].mxu0
          %v1175 = vadd.f32 %v1036, %v1174
          %v1176 = vpop.f32.mrb[0].mxu0
          %1177 = vmatprep.mubr.f32.mxu0 0.0
          %1178 = vmatmul.mubr.f32.gmra.mrb[0].mxu0 %v1014
          %v1179 = vpop.f32.mrb[0].mxu0
          %v1180 = vadd.f32 %v1036, %v1179
          %v1181 = vpop.f32.mrb[0].mxu0
          %1182 = vdwg.mxu0
          %1183 = vst [vmem:[%s460] sm:$0xff] %v1105
          %1184 = vst [vmem:[%s460 + $0x8] sm:$0xff] %v1110
          %1185 = vst [vmem:[%s460 + $0x10] sm:$0xff] %v1115
          %1186 = vst [vmem:[%s460 + $0x18] sm:$0xff] %v1120
          %1187 = vst [vmem:[%s460 + $0x20] sm:$0xff] %v1125
          %1188 = vst [vmem:[%s460 + $0x28] sm:$0xff] %v1130
          %1189 = vst [vmem:[%s460 + $0x30] sm:$0xff] %v1135
          %1190 = vst [vmem:[%s460 + $0x38] sm:$0xff] %v1140
          %1191 = vst [vmem:[%s460 + $0x40] sm:$0xff] %v1145
          %1192 = vst [vmem:[%s460 + $0x48] sm:$0xff] %v1150
          %1193 = vst [vmem:[%s460 + $0x50] sm:$0xff] %v1155
          %1194 = vst [vmem:[%s460 + $0x58] sm:$0xff] %v1160
          %1195 = vst [vmem:[%s460 + $0x60] sm:$0xff] %v1165
          %1196 = vst [vmem:[%s460 + $0x68] sm:$0xff] %v1170
          %1197 = vst [vmem:[%s460 + $0x70] sm:$0xff] %v1175
          %1198 = vst [vmem:[%s460 + $0x78] sm:$0xff] %v1180
        $region97: #{shipgnn_forward.7} parent=84 // pred_fallthru
          _
        %s1199 = smul.u32 16, %s24
        %p1200 = scmp.lt.s32.totalorder %s1199, 47
        %s1201 = scalar_select %p1200, %s1199, 47
        %s1202 = smul.addr %s1201, 8
        %s1203 = scalar_lea.vmem %s7, %s1202
        %s1204 = smul.u32 16, %s24
        %p1205 = scmp.lt.s32.totalorder %s1204, 47
        %s1206 = scalar_select %p1205, %s1204, 47
        %s1207 = smul.addr %s1206, 8
        %s1208 = scalar_lea.vmem %s8, %s1207
        // Predicated region
        $region98: #{shipgnn_forward.7} parent=84 // pred_check
          %p1209 = pneg %p209
        $region99: #{shipgnn_forward.7} parent=84 // pred_check_branch
          %1211 = sbr.rel (%p1209) target = $region101
        $region100: #{shipgnn_forward.7} parent=84 // pred_region
          %s1212 = smul.u32 16, %s24
        $region101: #{shipgnn_forward.7} parent=84 // pred_fallthru
          _
        // Predicated region
        $region102: #{shipgnn_forward.7} parent=84 // pred_check
          %p1213 = pneg %p235
        $region103: #{shipgnn_forward.7} parent=84 // pred_check_branch
          %1215 = sbr.rel (%p1213) target = $region105
        $region104: #{shipgnn_forward.7} parent=84 // pred_region
          %s1216 = smul.u32 16, %s24
        $region105: #{shipgnn_forward.7} parent=84 // pred_fallthru
          _
      $region85: #{shipgnn_forward.7} parent=5 // pred_fallthru
        _
      %p1217 = scmp.le.s32.totalorder 2, %s15
      // Predicated region
      $region106: #{shipgnn_forward.7} parent=5 // pred_check
        %p1218 = pneg %p1217
      $region107: #{shipgnn_forward.7} parent=5 // pred_check_branch
        %1220 = sbr.rel (%p1218) target = $region109
      $region108: #{shipgnn_forward.7} parent=5 // pred_region
        %s1221 = ssub.s32 %s15, 2
        // Predicated region
        $region110: #{shipgnn_forward.7} parent=108 // pred_check
          %p1222 = pneg %p215
        $region111: #{shipgnn_forward.7} parent=108 // pred_check_branch
          %1224 = sbr.rel (%p1222) target = $region113
        $region112: #{shipgnn_forward.7} parent=108 // pred_region
          %s1225 = smul.u32 16, %s26
          %p1226 = scmp.lt.s32.totalorder %s1225, 47
          %s1227 = scalar_select %p1226, %s1225, 47
          %s1228 = smul.addr %s1227, 8
          %s1229 = scalar_lea.vmem %s7, %s1228
        $region113: #{shipgnn_forward.7} parent=108 // pred_fallthru
          _
        // Predicated region
        $region114: #{shipgnn_forward.7} parent=108 // pred_check
          %p1230 = pneg %p241
        $region115: #{shipgnn_forward.7} parent=108 // pred_check_branch
          %1232 = sbr.rel (%p1230) target = $region117
        $region116: #{shipgnn_forward.7} parent=108 // pred_region
          %s1233 = smul.u32 16, %s26
          %p1234 = scmp.lt.s32.totalorder %s1233, 47
          %s1235 = scalar_select %p1234, %s1233, 47
          %s1236 = smul.addr %s1235, 8
          %s1237 = scalar_lea.vmem %s8, %s1236
        $region117: #{shipgnn_forward.7} parent=108 // pred_fallthru
          _
      $region109: #{shipgnn_forward.7} parent=5 // pred_fallthru
        _
    $region6: #{shipgnn_forward.7} parent=1 // loop_footer
      %s19 = sadd.s32 1, %s15
    $region7: #{shipgnn_forward.7} parent=1 // loop_footer_branch
      %14 = sbr.rel target = $region3
    $region8: #{shipgnn_forward.7} parent=1 // loop_exit
      _

</llo_original>
